<compile_context>
chip_gen: v7x
topology: tpu7x:2x2x1
jax: 0.10.0
libtpu: 0.0.40
codegen_flags: <defaults>
</compile_context>

<pallas_src>
import math
from functools import partial

import jax
import jax.numpy as jnp
import numpy as np
from jax.experimental import pallas as pl
from jax.experimental.pallas import tpu as pltpu

# ----------------------------- configuration --------------------------------
NUM_HEADS = 2
HEAD_DIM = 16
IN_CHANNELS = NUM_HEADS * HEAD_DIM   # inner_dim == in_channels (as in SVD VAE)
NORM_GROUPS = 8                      # must divide IN_CHANNELS
EPS = 1e-5


# ------------------------------- kernel -------------------------------------
def vae_attention_kernel(x_ref, gmask_ref, wqkv_ref, bqkv_ref, wo_ref, bo_ref,
                         o_ref, *, compute_dtype):
    # x_ref block: (1, C, S) float32 — channels on sublanes, spatial on lanes.
    xt = x_ref[0]                                   # (C, S) f32, kept for residual
    x = jnp.transpose(xt)                           # (S, C) f32 (in-VMEM XLU transpose)
    S, C = x.shape
    gmask = gmask_ref[...]                          # (C, G) one-hot group membership
    G = gmask.shape[1]
    inv_n = 1.0 / float(S * (C // G))

    # -------- GroupNorm statistics: single pass (sum & sum-of-squares together) -----
    sum_c = jnp.sum(x, axis=0, keepdims=True)                                     # (1, C)
    sq_c = jnp.sum(x * x, axis=0, keepdims=True)                                  # (1, C)
    sum_g = jnp.dot(sum_c, gmask, preferred_element_type=jnp.float32)             # (1, G)
    sq_g = jnp.dot(sq_c, gmask, preferred_element_type=jnp.float32)               # (1, G)
    mean_c = jnp.dot(sum_g * inv_n, gmask.T, preferred_element_type=jnp.float32)  # (1, C)
    ex2_c = jnp.dot(sq_g * inv_n, gmask.T, preferred_element_type=jnp.float32)    # (1, C)
    var_c = ex2_c - mean_c * mean_c
    # gamma/beta are folded into the QKV weights host-side -> no affine here.
    xn = ((x - mean_c) * jax.lax.rsqrt(var_c + EPS)).astype(compute_dtype)        # (S, C)

    approx = compute_dtype != jnp.float32

    # -------- per-head attention, accumulated straight into an (S, C) register value
    acc = None
    for h in range(NUM_HEADS):                      # static unrolled loop over heads
        wq_h = wqkv_ref[3 * h + 0]                  # (C, D) compute_dtype (scale folded)
        wk_h = wqkv_ref[3 * h + 1]
        wv_h = wqkv_ref[3 * h + 2]
        bq_h = bqkv_ref[3 * h + 0]                  # (1, D) f32 (affine/scale folded)
        bk_h = bqkv_ref[3 * h + 1]
        bv_h = bqkv_ref[3 * h + 2]

        qh = (jnp.dot(xn, wq_h, preferred_element_type=jnp.float32) + bq_h).astype(compute_dtype)
        kh = (jnp.dot(xn, wk_h, preferred_element_type=jnp.float32) + bk_h).astype(compute_dtype)
        vh = (jnp.dot(xn, wv_h, preferred_element_type=jnp.float32) + bv_h).astype(compute_dtype)

        # scores = q @ k^T (the 1/sqrt(D) scale is already folded into wq/bq).
        # TODO(synk): KV-block this flash-style (online softmax) before scaling S to
        # production VAE resolutions so the (S, S) tile fits v7x's 64 MiB VMEM.
        s = jax.lax.dot_general(qh, kh, (((1,), (1,)), ((), ())),
                                preferred_element_type=jnp.float32)               # (S, S)
        s = s - jnp.max(s, axis=-1, keepdims=True)
        p = jnp.exp(s)
        denom = jnp.sum(p, axis=-1, keepdims=True)
        p = (p * pl.reciprocal(denom, approx=approx)).astype(compute_dtype)

        oh = jnp.dot(p, vh, preferred_element_type=jnp.float32)                   # (S, D)
        contrib = jnp.dot(oh.astype(compute_dtype), wo_ref[h],
                          preferred_element_type=jnp.float32)                     # (S, C)
        acc = contrib if acc is None else acc + contrib

    out = acc + bo_ref[...]                                                       # (S, C)
    # Residual add in the original (C, S) layout; store is lane-dense along S.
    o_ref[0] = jnp.transpose(out) + xt


# ------------------------------- wrapper -------------------------------------
def vae_attention_block(x_nchw, params, *, compute_dtype=jnp.bfloat16):
    """x_nchw: (B, C, H, W) float32. Returns (B, C, H, W) float32."""
    B, C, H, W = x_nchw.shape
    S = H * W
    G = NORM_GROUPS
    D = HEAD_DIM

    # Layout plumbing is now a pure reshape (no HBM transpose): NCHW -> (B, C, S).
    x_ncs = x_nchw.reshape(B, C, S)

    # One-hot group membership: channel c -> group c // (C//G).
    ch = np.arange(C)
    gmask = jnp.asarray(
        (ch[:, None] // (C // G) == np.arange(G)[None, :]).astype(np.float32))

    # ---- host-side weight prep: fold GroupNorm affine + softmax scale, split heads
    gamma = params["gamma"].astype(jnp.float32)
    beta = params["beta"].astype(jnp.float32)
    scale = 1.0 / math.sqrt(D)

    def fold(w, b, s=1.0):
        w_f = (gamma[:, None] * w) * s              # y = xn @ (diag(gamma) W) + ...
        b_f = (beta @ w + b) * s                    # ... + (beta @ W + b)
        return w_f, b_f

    wq_f, bq_f = fold(params["wq"], params["bq"], scale)
    wk_f, bk_f = fold(params["wk"], params["bk"])
    wv_f, bv_f = fold(params["wv"], params["bv"])

    w_list, b_list, wo_list = [], [], []
    for h in range(NUM_HEADS):
        lo, hi = h * D, (h + 1) * D
        for w_f, b_f in ((wq_f, bq_f), (wk_f, bk_f), (wv_f, bv_f)):
            w_list.append(w_f[:, lo:hi])            # (C, D)
            b_list.append(b_f[lo:hi][None, :])      # (1, D)
        wo_list.append(params["wo"][lo:hi, :])      # (D, C)

    w_qkv = jnp.stack(w_list).astype(compute_dtype)      # (3*NH, C, D)
    b_qkv = jnp.stack(b_list).astype(jnp.float32)        # (3*NH, 1, D)
    wo_h = jnp.stack(wo_list).astype(compute_dtype)      # (NH, D, C)
    bo2 = params["bo"].reshape(1, C).astype(jnp.float32)

    kernel = partial(vae_attention_kernel, compute_dtype=compute_dtype)

    in_specs = [
        pl.BlockSpec((1, C, S), lambda b: (b, 0, 0)),               # x (lane-dense on S)
        pl.BlockSpec((C, G), lambda b: (0, 0)),                     # group mask
        pl.BlockSpec((3 * NUM_HEADS, C, D), lambda b: (0, 0, 0)),   # per-head Wq/Wk/Wv
        pl.BlockSpec((3 * NUM_HEADS, 1, D), lambda b: (0, 0, 0)),   # per-head bq/bk/bv
        pl.BlockSpec((NUM_HEADS, D, C), lambda b: (0, 0, 0)),       # per-head Wo rows
        pl.BlockSpec((1, C), lambda b: (0, 0)),                     # bo
    ]

    out_ncs = pl.pallas_call(
        kernel,
        out_shape=jax.ShapeDtypeStruct((B, C, S), jnp.float32),
        grid_spec=pltpu.PrefetchScalarGridSpec(
            num_scalar_prefetch=0,
            grid=(B,),
            in_specs=in_specs,
            out_specs=pl.BlockSpec((1, C, S), lambda b: (b, 0, 0)),
        ),
        compiler_params=pltpu.CompilerParams(
            # Batch axis parallel -> megacore sharding on v7x; constant block indices
            # mean the weight inputs are DMA'd only once across the serial grid.
            dimension_semantics=("parallel",),
            # Explicit VMEM budget, sized to stay inside v7x's 64 MiB physical VMEM.
            vmem_limit_bytes=48 * 1024 * 1024,
        ),
    )(x_ncs, gmask, w_qkv, b_qkv, wo_h, bo2)

    # Layout plumbing back: (B, C, S) -> NCHW is again a pure reshape.
    return out_ncs.reshape(B, C, H, W)


# --------------------------- pure-JAX reference ------------------------------
def reference(x, params):
    B, C, H, W = x.shape
    G = NORM_GROUPS
    xg = x.reshape(B, G, C // G, H, W)
    mean = xg.mean(axis=(2, 3, 4), keepdims=True)
    var = ((xg - mean) ** 2).mean(axis=(2, 3, 4), keepdims=True)
    xn = ((xg - mean) / jnp.sqrt(var + EPS)).reshape(B, C, H, W)
    xn = xn * params["gamma"][None, :, None, None] + params["beta"][None, :, None, None]
    h = jnp.transpose(xn, (0, 2, 3, 1)).reshape(B, H * W, C)
    q = h @ params["wq"] + params["bq"]
    k = h @ params["wk"] + params["bk"]
    v = h @ params["wv"] + params["bv"]
    qh = q.reshape(B, -1, NUM_HEADS, HEAD_DIM).transpose(0, 2, 1, 3)
    kh = k.reshape(B, -1, NUM_HEADS, HEAD_DIM).transpose(0, 2, 1, 3)
    vh = v.reshape(B, -1, NUM_HEADS, HEAD_DIM).transpose(0, 2, 1, 3)
    s = jnp.einsum("bhqd,bhkd->bhqk", qh, kh) / math.sqrt(HEAD_DIM)
    p = jax.nn.softmax(s, axis=-1)
    o = jnp.einsum("bhqk,bhkd->bhqd", p, vh)
    o = o.transpose(0, 2, 1, 3).reshape(B, H * W, C)
    o = o @ params["wo"] + params["bo"]
    o = o.reshape(B, H, W, C).transpose(0, 3, 1, 2)
    return o + x


# ----------------------------------- main ------------------------------------
if __name__ == "__main__":
    B, C, H, W = 2, IN_CHANNELS, 16, 16   # S = H*W = 256 -> lane-dense (C, S) tiles

    key = jax.random.PRNGKey(0)
    keys = jax.random.split(key, 11)

    # Deterministic synthetic parameters (weights stored as (in, out) = W.T so both
    # kernel and reference compute y = x @ W + b, matching nn.Linear).
    params = {
        "gamma": jax.random.normal(keys[0], (C,), jnp.float32) * 0.1 + 1.0,
        "beta":  jax.random.normal(keys[1], (C,), jnp.float32) * 0.1,
        "wq": jax.random.normal(keys[2], (C, C), jnp.float32) / math.sqrt(C),
        "bq": jax.random.normal(keys[3], (C,), jnp.float32) * 0.02,
        "wk": jax.random.normal(keys[4], (C, C), jnp.float32) / math.sqrt(C),
        "bk": jax.random.normal(keys[5], (C,), jnp.float32) * 0.02,
        "wv": jax.random.normal(keys[6], (C, C), jnp.float32) / math.sqrt(C),
        "bv": jax.random.normal(keys[7], (C,), jnp.float32) * 0.02,
        "wo": jax.random.normal(keys[8], (C, C), jnp.float32) / math.sqrt(C),
        "bo": jax.random.normal(keys[9], (C,), jnp.float32) * 0.02,
    }

    x = jax.random.normal(keys[10], (B, C, H, W), jnp.float32)

    ref = jax.block_until_ready(reference(x, params))

    # 1) f32 MXU path: tight elementwise validation of the kernel math.
    out_f32 = jax.block_until_ready(
        vae_attention_block(x, params, compute_dtype=jnp.float32))
    np.testing.assert_allclose(np.asarray(out_f32), np.asarray(ref),
                               rtol=1e-4, atol=1e-4)

    # 2) bf16 MXU path (production config per perf review). bf16 operand rounding
    #    makes a 1e-4 elementwise check meaningless, so validate normalized L2 error.
    out_bf16 = jax.block_until_ready(
        vae_attention_block(x, params, compute_dtype=jnp.bfloat16))
    rel_l2 = (np.linalg.norm(np.asarray(out_bf16) - np.asarray(ref))
              / np.linalg.norm(np.asarray(ref)))
    assert rel_l2 < 2e-2, f"bf16 path relative L2 error too large: {rel_l2}"

    print("KERNEL_OK")
</pallas_src>

<mosaic_0001>
module attributes {stable_mosaic.version = 11 : i64} {
  func.func @vae_attention_kernel(%arg0: i32, %arg1: memref<1x32x256xf32, #tpu.memory_space<vmem>>, %arg2: memref<32x8xf32, #tpu.memory_space<vmem>>, %arg3: memref<6x32x16xf32, #tpu.memory_space<vmem>>, %arg4: memref<6x1x16xf32, #tpu.memory_space<vmem>>, %arg5: memref<2x16x32xf32, #tpu.memory_space<vmem>>, %arg6: memref<1x32xf32, #tpu.memory_space<vmem>>, %arg7: memref<1x32x256xf32, #tpu.memory_space<vmem>>) attributes {dimension_semantics = [#tpu.dimension_semantics<parallel>], iteration_bounds = array<i64: 2>, scalar_prefetch = 0 : i64, scratch_operands = 0 : i64, tpu.core_type = #tpu.core_type<tc>, window_params = [{transform_indices = @transform_0, window_bounds = array<i64: 1, 32, 256>}, {pipeline_mode = #tpu.pipeline_mode<synchronous>, transform_indices = @transform_1, window_bounds = array<i64: 32, 8>}, {pipeline_mode = #tpu.pipeline_mode<synchronous>, transform_indices = @transform_2, window_bounds = array<i64: 6, 32, 16>}, {pipeline_mode = #tpu.pipeline_mode<synchronous>, transform_indices = @transform_3, window_bounds = array<i64: 6, 1, 16>}, {pipeline_mode = #tpu.pipeline_mode<synchronous>, transform_indices = @transform_4, window_bounds = array<i64: 2, 16, 32>}, {pipeline_mode = #tpu.pipeline_mode<synchronous>, transform_indices = @transform_5, window_bounds = array<i64: 1, 32>}, {transform_indices = @transform_6, window_bounds = array<i64: 1, 32, 256>}]} {
    %c0 = arith.constant 0 : index
    %c0_0 = arith.constant 0 : index
    %c0_1 = arith.constant 0 : index
    %0 = vector.load %arg1[%c0, %c0_0, %c0_1] : memref<1x32x256xf32, #tpu.memory_space<vmem>>, vector<1x32x256xf32>
    %1 = vector.shape_cast %0 : vector<1x32x256xf32> to vector<32x256xf32>
    %2 = tpu.transpose %1, [1, 0] : vector<32x256xf32> -> vector<256x32xf32>
    %c0_2 = arith.constant 0 : index
    %c0_3 = arith.constant 0 : index
    %3 = vector.load %arg2[%c0_2, %c0_3] : memref<32x8xf32, #tpu.memory_space<vmem>>, vector<32x8xf32>
    %cst = arith.constant dense<0.000000e+00> : vector<32xf32>
    %4 = vector.multi_reduction <add>, %2, %cst [0] : vector<256x32xf32> to vector<32xf32>
    %5 = vector.shape_cast %4 : vector<32xf32> to vector<1x32xf32>
    %6 = arith.mulf %2, %2 : vector<256x32xf32>
    %cst_4 = arith.constant dense<0.000000e+00> : vector<32xf32>
    %7 = vector.multi_reduction <add>, %6, %cst_4 [0] : vector<256x32xf32> to vector<32xf32>
    %8 = vector.shape_cast %7 : vector<32xf32> to vector<1x32xf32>
    %cst_5 = arith.constant dense<0.000000e+00> : vector<1x8xf32>
    %9 = tpu.matmul %5, %3, %cst_5 {dimension_numbers = #tpu.dot_dimension_numbers<[1], [0], [0], [1], [0, 0, 1, 1], [], []>} : vector<1x32xf32>, vector<32x8xf32>, vector<1x8xf32> -> vector<1x8xf32>
    %cst_6 = arith.constant dense<0.000000e+00> : vector<1x8xf32>
    %10 = tpu.matmul %8, %3, %cst_6 {dimension_numbers = #tpu.dot_dimension_numbers<[1], [0], [0], [1], [0, 0, 1, 1], [], []>} : vector<1x32xf32>, vector<32x8xf32>, vector<1x8xf32> -> vector<1x8xf32>
    %cst_7 = arith.constant 9.765625E-4 : f32
    %11 = vector.broadcast %cst_7 : f32 to vector<1x8xf32>
    %12 = arith.mulf %9, %11 : vector<1x8xf32>
    %13 = tpu.transpose %3, [1, 0] : vector<32x8xf32> -> vector<8x32xf32>
    %cst_8 = arith.constant dense<0.000000e+00> : vector<1x32xf32>
    %14 = tpu.matmul %12, %13, %cst_8 {dimension_numbers = #tpu.dot_dimension_numbers<[1], [0], [0], [1], [0, 0, 1, 1], [], []>} : vector<1x8xf32>, vector<8x32xf32>, vector<1x32xf32> -> vector<1x32xf32>
    %cst_9 = arith.constant 9.765625E-4 : f32
    %15 = vector.broadcast %cst_9 : f32 to vector<1x8xf32>
    %16 = arith.mulf %10, %15 : vector<1x8xf32>
    %17 = tpu.transpose %3, [1, 0] : vector<32x8xf32> -> vector<8x32xf32>
    %cst_10 = arith.constant dense<0.000000e+00> : vector<1x32xf32>
    %18 = tpu.matmul %16, %17, %cst_10 {dimension_numbers = #tpu.dot_dimension_numbers<[1], [0], [0], [1], [0, 0, 1, 1], [], []>} : vector<1x8xf32>, vector<8x32xf32>, vector<1x32xf32> -> vector<1x32xf32>
    %19 = arith.mulf %14, %14 : vector<1x32xf32>
    %20 = arith.subf %18, %19 : vector<1x32xf32>
    %21 = vector.broadcast %14 : vector<1x32xf32> to vector<256x32xf32>
    %22 = arith.subf %2, %21 : vector<256x32xf32>
    %cst_11 = arith.constant 9.99999974E-6 : f32
    %23 = vector.broadcast %cst_11 : f32 to vector<1x32xf32>
    %24 = arith.addf %20, %23 : vector<1x32xf32>
    %25 = math.rsqrt %24 : vector<1x32xf32>
    %26 = vector.broadcast %25 : vector<1x32xf32> to vector<256x32xf32>
    %27 = arith.mulf %22, %26 : vector<256x32xf32>
    %c0_12 = arith.constant 0 : index
    %c0_13 = arith.constant 0 : index
    %c0_14 = arith.constant 0 : index
    %28 = vector.load %arg3[%c0_12, %c0_13, %c0_14] : memref<6x32x16xf32, #tpu.memory_space<vmem>>, vector<1x32x16xf32>
    %29 = vector.shape_cast %28 : vector<1x32x16xf32> to vector<32x16xf32>
    %c1 = arith.constant 1 : index
    %c0_15 = arith.constant 0 : index
    %c0_16 = arith.constant 0 : index
    %30 = vector.load %arg3[%c1, %c0_15, %c0_16] : memref<6x32x16xf32, #tpu.memory_space<vmem>>, vector<1x32x16xf32>
    %31 = vector.shape_cast %30 : vector<1x32x16xf32> to vector<32x16xf32>
    %c2 = arith.constant 2 : index
    %c0_17 = arith.constant 0 : index
    %c0_18 = arith.constant 0 : index
    %32 = vector.load %arg3[%c2, %c0_17, %c0_18] : memref<6x32x16xf32, #tpu.memory_space<vmem>>, vector<1x32x16xf32>
    %33 = vector.shape_cast %32 : vector<1x32x16xf32> to vector<32x16xf32>
    %c0_19 = arith.constant 0 : index
    %c0_20 = arith.constant 0 : index
    %c0_21 = arith.constant 0 : index
    %34 = vector.load %arg4[%c0_19, %c0_20, %c0_21] : memref<6x1x16xf32, #tpu.memory_space<vmem>>, vector<1x1x16xf32>
    %35 = vector.shape_cast %34 : vector<1x1x16xf32> to vector<1x16xf32>
    %c1_22 = arith.constant 1 : index
    %c0_23 = arith.constant 0 : index
    %c0_24 = arith.constant 0 : index
    %36 = vector.load %arg4[%c1_22, %c0_23, %c0_24] : memref<6x1x16xf32, #tpu.memory_space<vmem>>, vector<1x1x16xf32>
    %37 = vector.shape_cast %36 : vector<1x1x16xf32> to vector<1x16xf32>
    %c2_25 = arith.constant 2 : index
    %c0_26 = arith.constant 0 : index
    %c0_27 = arith.constant 0 : index
    %38 = vector.load %arg4[%c2_25, %c0_26, %c0_27] : memref<6x1x16xf32, #tpu.memory_space<vmem>>, vector<1x1x16xf32>
    %39 = vector.shape_cast %38 : vector<1x1x16xf32> to vector<1x16xf32>
    %cst_28 = arith.constant dense<0.000000e+00> : vector<256x16xf32>
    %40 = tpu.matmul %27, %29, %cst_28 {dimension_numbers = #tpu.dot_dimension_numbers<[1], [0], [0], [1], [0, 0, 1, 1], [], []>} : vector<256x32xf32>, vector<32x16xf32>, vector<256x16xf32> -> vector<256x16xf32>
    %41 = vector.broadcast %35 : vector<1x16xf32> to vector<256x16xf32>
    %42 = arith.addf %40, %41 : vector<256x16xf32>
    %cst_29 = arith.constant dense<0.000000e+00> : vector<256x16xf32>
    %43 = tpu.matmul %27, %31, %cst_29 {dimension_numbers = #tpu.dot_dimension_numbers<[1], [0], [0], [1], [0, 0, 1, 1], [], []>} : vector<256x32xf32>, vector<32x16xf32>, vector<256x16xf32> -> vector<256x16xf32>
    %44 = vector.broadcast %37 : vector<1x16xf32> to vector<256x16xf32>
    %45 = arith.addf %43, %44 : vector<256x16xf32>
    %cst_30 = arith.constant dense<0.000000e+00> : vector<256x16xf32>
    %46 = tpu.matmul %27, %33, %cst_30 {dimension_numbers = #tpu.dot_dimension_numbers<[1], [0], [0], [1], [0, 0, 1, 1], [], []>} : vector<256x32xf32>, vector<32x16xf32>, vector<256x16xf32> -> vector<256x16xf32>
    %47 = vector.broadcast %39 : vector<1x16xf32> to vector<256x16xf32>
    %48 = arith.addf %46, %47 : vector<256x16xf32>
    %cst_31 = arith.constant dense<0.000000e+00> : vector<256x256xf32>
    %49 = tpu.matmul %42, %45, %cst_31 {dimension_numbers = #tpu.dot_dimension_numbers<[1], [1], [0], [0], [0, 0, 1, 0], [], []>} : vector<256x16xf32>, vector<256x16xf32>, vector<256x256xf32> -> vector<256x256xf32>
    %cst_32 = arith.constant dense<0xFF800000> : vector<256xf32>
    %50 = vector.multi_reduction <maximumf>, %49, %cst_32 [1] : vector<256x256xf32> to vector<256xf32>
    %51 = vector.shape_cast %50 : vector<256xf32> to vector<256x1xf32>
    %52 = vector.broadcast %51 : vector<256x1xf32> to vector<256x256xf32>
    %53 = arith.subf %49, %52 : vector<256x256xf32>
    %54 = math.exp %53 : vector<256x256xf32>
    %cst_33 = arith.constant dense<0.000000e+00> : vector<256xf32>
    %55 = vector.multi_reduction <add>, %54, %cst_33 [1] : vector<256x256xf32> to vector<256xf32>
    %56 = vector.shape_cast %55 : vector<256xf32> to vector<256x1xf32>
    %57 = tpu.reciprocal %56 : vector<256x1xf32> -> vector<256x1xf32>
    %58 = vector.broadcast %57 : vector<256x1xf32> to vector<256x256xf32>
    %59 = arith.mulf %54, %58 : vector<256x256xf32>
    %cst_34 = arith.constant dense<0.000000e+00> : vector<256x16xf32>
    %60 = tpu.matmul %59, %48, %cst_34 {dimension_numbers = #tpu.dot_dimension_numbers<[1], [0], [0], [1], [0, 0, 1, 1], [], []>} : vector<256x256xf32>, vector<256x16xf32>, vector<256x16xf32> -> vector<256x16xf32>
    %c0_35 = arith.constant 0 : index
    %c0_36 = arith.constant 0 : index
    %c0_37 = arith.constant 0 : index
    %61 = vector.load %arg5[%c0_35, %c0_36, %c0_37] : memref<2x16x32xf32, #tpu.memory_space<vmem>>, vector<1x16x32xf32>
    %62 = vector.shape_cast %61 : vector<1x16x32xf32> to vector<16x32xf32>
    %cst_38 = arith.constant dense<0.000000e+00> : vector<256x32xf32>
    %63 = tpu.matmul %60, %62, %cst_38 {dimension_numbers = #tpu.dot_dimension_numbers<[1], [0], [0], [1], [0, 0, 1, 1], [], []>} : vector<256x16xf32>, vector<16x32xf32>, vector<256x32xf32> -> vector<256x32xf32>
    %c3 = arith.constant 3 : index
    %c0_39 = arith.constant 0 : index
    %c0_40 = arith.constant 0 : index
    %64 = vector.load %arg3[%c3, %c0_39, %c0_40] : memref<6x32x16xf32, #tpu.memory_space<vmem>>, vector<1x32x16xf32>
    %65 = vector.shape_cast %64 : vector<1x32x16xf32> to vector<32x16xf32>
    %c4 = arith.constant 4 : index
    %c0_41 = arith.constant 0 : index
    %c0_42 = arith.constant 0 : index
    %66 = vector.load %arg3[%c4, %c0_41, %c0_42] : memref<6x32x16xf32, #tpu.memory_space<vmem>>, vector<1x32x16xf32>
    %67 = vector.shape_cast %66 : vector<1x32x16xf32> to vector<32x16xf32>
    %c5 = arith.constant 5 : index
    %c0_43 = arith.constant 0 : index
    %c0_44 = arith.constant 0 : index
    %68 = vector.load %arg3[%c5, %c0_43, %c0_44] : memref<6x32x16xf32, #tpu.memory_space<vmem>>, vector<1x32x16xf32>
    %69 = vector.shape_cast %68 : vector<1x32x16xf32> to vector<32x16xf32>
    %c3_45 = arith.constant 3 : index
    %c0_46 = arith.constant 0 : index
    %c0_47 = arith.constant 0 : index
    %70 = vector.load %arg4[%c3_45, %c0_46, %c0_47] : memref<6x1x16xf32, #tpu.memory_space<vmem>>, vector<1x1x16xf32>
    %71 = vector.shape_cast %70 : vector<1x1x16xf32> to vector<1x16xf32>
    %c4_48 = arith.constant 4 : index
    %c0_49 = arith.constant 0 : index
    %c0_50 = arith.constant 0 : index
    %72 = vector.load %arg4[%c4_48, %c0_49, %c0_50] : memref<6x1x16xf32, #tpu.memory_space<vmem>>, vector<1x1x16xf32>
    %73 = vector.shape_cast %72 : vector<1x1x16xf32> to vector<1x16xf32>
    %c5_51 = arith.constant 5 : index
    %c0_52 = arith.constant 0 : index
    %c0_53 = arith.constant 0 : index
    %74 = vector.load %arg4[%c5_51, %c0_52, %c0_53] : memref<6x1x16xf32, #tpu.memory_space<vmem>>, vector<1x1x16xf32>
    %75 = vector.shape_cast %74 : vector<1x1x16xf32> to vector<1x16xf32>
    %cst_54 = arith.constant dense<0.000000e+00> : vector<256x16xf32>
    %76 = tpu.matmul %27, %65, %cst_54 {dimension_numbers = #tpu.dot_dimension_numbers<[1], [0], [0], [1], [0, 0, 1, 1], [], []>} : vector<256x32xf32>, vector<32x16xf32>, vector<256x16xf32> -> vector<256x16xf32>
    %77 = vector.broadcast %71 : vector<1x16xf32> to vector<256x16xf32>
    %78 = arith.addf %76, %77 : vector<256x16xf32>
    %cst_55 = arith.constant dense<0.000000e+00> : vector<256x16xf32>
    %79 = tpu.matmul %27, %67, %cst_55 {dimension_numbers = #tpu.dot_dimension_numbers<[1], [0], [0], [1], [0, 0, 1, 1], [], []>} : vector<256x32xf32>, vector<32x16xf32>, vector<256x16xf32> -> vector<256x16xf32>
    %80 = vector.broadcast %73 : vector<1x16xf32> to vector<256x16xf32>
    %81 = arith.addf %79, %80 : vector<256x16xf32>
    %cst_56 = arith.constant dense<0.000000e+00> : vector<256x16xf32>
    %82 = tpu.matmul %27, %69, %cst_56 {dimension_numbers = #tpu.dot_dimension_numbers<[1], [0], [0], [1], [0, 0, 1, 1], [], []>} : vector<256x32xf32>, vector<32x16xf32>, vector<256x16xf32> -> vector<256x16xf32>
    %83 = vector.broadcast %75 : vector<1x16xf32> to vector<256x16xf32>
    %84 = arith.addf %82, %83 : vector<256x16xf32>
    %cst_57 = arith.constant dense<0.000000e+00> : vector<256x256xf32>
    %85 = tpu.matmul %78, %81, %cst_57 {dimension_numbers = #tpu.dot_dimension_numbers<[1], [1], [0], [0], [0, 0, 1, 0], [], []>} : vector<256x16xf32>, vector<256x16xf32>, vector<256x256xf32> -> vector<256x256xf32>
    %cst_58 = arith.constant dense<0xFF800000> : vector<256xf32>
    %86 = vector.multi_reduction <maximumf>, %85, %cst_58 [1] : vector<256x256xf32> to vector<256xf32>
    %87 = vector.shape_cast %86 : vector<256xf32> to vector<256x1xf32>
    %88 = vector.broadcast %87 : vector<256x1xf32> to vector<256x256xf32>
    %89 = arith.subf %85, %88 : vector<256x256xf32>
    %90 = math.exp %89 : vector<256x256xf32>
    %cst_59 = arith.constant dense<0.000000e+00> : vector<256xf32>
    %91 = vector.multi_reduction <add>, %90, %cst_59 [1] : vector<256x256xf32> to vector<256xf32>
    %92 = vector.shape_cast %91 : vector<256xf32> to vector<256x1xf32>
    %93 = tpu.reciprocal %92 : vector<256x1xf32> -> vector<256x1xf32>
    %94 = vector.broadcast %93 : vector<256x1xf32> to vector<256x256xf32>
    %95 = arith.mulf %90, %94 : vector<256x256xf32>
    %cst_60 = arith.constant dense<0.000000e+00> : vector<256x16xf32>
    %96 = tpu.matmul %95, %84, %cst_60 {dimension_numbers = #tpu.dot_dimension_numbers<[1], [0], [0], [1], [0, 0, 1, 1], [], []>} : vector<256x256xf32>, vector<256x16xf32>, vector<256x16xf32> -> vector<256x16xf32>
    %c1_61 = arith.constant 1 : index
    %c0_62 = arith.constant 0 : index
    %c0_63 = arith.constant 0 : index
    %97 = vector.load %arg5[%c1_61, %c0_62, %c0_63] : memref<2x16x32xf32, #tpu.memory_space<vmem>>, vector<1x16x32xf32>
    %98 = vector.shape_cast %97 : vector<1x16x32xf32> to vector<16x32xf32>
    %cst_64 = arith.constant dense<0.000000e+00> : vector<256x32xf32>
    %99 = tpu.matmul %96, %98, %cst_64 {dimension_numbers = #tpu.dot_dimension_numbers<[1], [0], [0], [1], [0, 0, 1, 1], [], []>} : vector<256x16xf32>, vector<16x32xf32>, vector<256x32xf32> -> vector<256x32xf32>
    %100 = arith.addf %63, %99 : vector<256x32xf32>
    %c0_65 = arith.constant 0 : index
    %c0_66 = arith.constant 0 : index
    %101 = vector.load %arg6[%c0_65, %c0_66] : memref<1x32xf32, #tpu.memory_space<vmem>>, vector<1x32xf32>
    %102 = vector.broadcast %101 : vector<1x32xf32> to vector<256x32xf32>
    %103 = arith.addf %100, %102 : vector<256x32xf32>
    %104 = tpu.transpose %103, [1, 0] : vector<256x32xf32> -> vector<32x256xf32>
    %105 = arith.addf %104, %1 : vector<32x256xf32>
    %c0_67 = arith.constant 0 : index
    %c0_68 = arith.constant 0 : index
    %c0_69 = arith.constant 0 : index
    %106 = vector.load %arg7[%c0_67, %c0_68, %c0_69] : memref<1x32x256xf32, #tpu.memory_space<vmem>>, vector<1x32x256xf32>
    %107 = vector.shape_cast %106 : vector<1x32x256xf32> to vector<32x256xf32>
    %108 = vector.shape_cast %105 : vector<32x256xf32> to vector<1x32x256xf32>
    tpu.vector_store %arg7[%c0_67, %c0_68, %c0_69], %108 {strides = array<i32>} : memref<1x32x256xf32, #tpu.memory_space<vmem>>, vector<1x32x256xf32>,
    return
  }
  func.func @transform_0(%arg0: i32) -> (i32, i32, i32) {
    %c0_i32 = arith.constant 0 : i32
    %c0_i32_0 = arith.constant 0 : i32
    %c0_i32_1 = arith.constant 0 : i32
    return %arg0, %c0_i32, %c0_i32_0 : i32, i32, i32
  }
  func.func @transform_1(%arg0: i32) -> (i32, i32) {
    %c0_i32 = arith.constant 0 : i32
    %c0_i32_0 = arith.constant 0 : i32
    %c0_i32_1 = arith.constant 0 : i32
    return %c0_i32, %c0_i32_0 : i32, i32
  }
  func.func @transform_2(%arg0: i32) -> (i32, i32, i32) {
    %c0_i32 = arith.constant 0 : i32
    %c0_i32_0 = arith.constant 0 : i32
    %c0_i32_1 = arith.constant 0 : i32
    %c0_i32_2 = arith.constant 0 : i32
    return %c0_i32, %c0_i32_0, %c0_i32_1 : i32, i32, i32
  }
  func.func @transform_3(%arg0: i32) -> (i32, i32, i32) {
    %c0_i32 = arith.constant 0 : i32
    %c0_i32_0 = arith.constant 0 : i32
    %c0_i32_1 = arith.constant 0 : i32
    %c0_i32_2 = arith.constant 0 : i32
    return %c0_i32, %c0_i32_0, %c0_i32_1 : i32, i32, i32
  }
  func.func @transform_4(%arg0: i32) -> (i32, i32, i32) {
    %c0_i32 = arith.constant 0 : i32
    %c0_i32_0 = arith.constant 0 : i32
    %c0_i32_1 = arith.constant 0 : i32
    %c0_i32_2 = arith.constant 0 : i32
    return %c0_i32, %c0_i32_0, %c0_i32_1 : i32, i32, i32
  }
  func.func @transform_5(%arg0: i32) -> (i32, i32) {
    %c0_i32 = arith.constant 0 : i32
    %c0_i32_0 = arith.constant 0 : i32
    %c0_i32_1 = arith.constant 0 : i32
    return %c0_i32, %c0_i32_0 : i32, i32
  }
  func.func @transform_6(%arg0: i32) -> (i32, i32, i32) {
    %c0_i32 = arith.constant 0 : i32
    %c0_i32_0 = arith.constant 0 : i32
    %c0_i32_1 = arith.constant 0 : i32
    return %arg0, %c0_i32, %c0_i32_0 : i32, i32, i32
  }
}

</mosaic_0001>

<llo_original>
// kernel: tpu_custom_call.1
$region0: #{tpu_custom_call.1}
  #allocation0 [shape = 'u32[]', space=smem, size = 0x4, offset = 0x4, fixed_abs, tag = 'smem constant byte address 0x4 - core index']
  #allocation1 [shape = 'u32[144,128]{1,0:T(1,128)}', space=vmem, size = 0x12000, scoped, tag = 'internal scratch']
  %s0 = inlined_call_operand.vmem [shape: f32[2,32,256], index: 0, kind: input, shape index: {}]
  %s1 = inlined_call_operand.vmem [shape: f32[32,8], index: 1, kind: input, shape index: {}]
  %s2 = inlined_call_operand.vmem [shape: f32[6,32,16], index: 2, kind: input, shape index: {}]
  %s3 = inlined_call_operand.vmem [shape: f32[6,1,16], index: 3, kind: input, shape index: {}]
  %s4 = inlined_call_operand.vmem [shape: f32[2,16,32], index: 4, kind: input, shape index: {}]
  %s5 = inlined_call_operand.vmem [shape: f32[1,32], index: 5, kind: input, shape index: {}]
  %s6 = inlined_call_operand.hbm [shape: f32[2,32,256], index: 6, kind: output, shape index: {}]
  %s7 = sld [smem:[#allocation0]]
  $region57: #{tpu_custom_call.1} parent=0
    _
  %s9 = ssub.s32 1, %s7
  %s10 = scalar_select 0, %s9, %s7
  $region1: #{tpu_custom_call.1} parent=0
    #allocation2 [shape = 'u8[65536]{0}', space=vmem, size = 0x10000, scoped, tag = 'output window, operand 0']
    #allocation3 [shape = 's32[2]{0}', space=sflag, size = 0x8, scoped, tag = 'scoped memory for tpu_custom_call.1']
    %11 = vsyncpa [#allocation3], 0
    %s12 = scalar_lea.sflag [#allocation3], 1
    %13 = vsyncpa %s12, 0
    loop: start=0, step=1, limit=4
    $region2: #{tpu_custom_call.1} parent=1 // loop_pre_header
      _
    $region3: #{tpu_custom_call.1} parent=1 // loop_header
      %s15 = sphi 0, %s19
      %p16 = scmp.ge.s32.totalorder %s15, 4
      %s25 = sphi 0, %s27
      %s28 = sphi 0, %s25
      %s29 = sphi 0, %s28
      %s45 = sphi 0, %s29
      %s49 = sphi 0, %s49
      %s51 = sphi 0, %s49
      %s52 = sphi 0, %s51
      %s66 = sphi 0, %s52
      %s70 = sphi 0, %s70
      %s72 = sphi 0, %s70
      %s73 = sphi 0, %s72
      %s87 = sphi 0, %s73
      %s91 = sphi 0, %s91
      %s93 = sphi 0, %s91
      %s94 = sphi 0, %s93
      %s108 = sphi 0, %s94
      %s112 = sphi 0, %s112
      %s114 = sphi 0, %s112
      %s115 = sphi 0, %s114
      %s129 = sphi 0, %s115
      %s133 = sphi 0, %s133
      %s135 = sphi 0, %s133
      %s136 = sphi 0, %s135
      %s150 = sphi 0, %s136
      %s156 = sphi 0, %s158
      %s159 = sphi 0, %s156
      %s160 = sphi 0, %s159
      %s176 = sphi 0, %s160
    $region4: #{tpu_custom_call.1} parent=1 // loop_header_branch
      %18 = sbr.rel (%p16) target = $region8
    $region5: #{tpu_custom_call.1} parent=1 // loop_body
      %s20 = ssub.s32 %s15, 1
      %s21 = ssub.s32 %s15, 2
      %s22 = sadd.s32 %s15, 1
      %s23 = ssub.s32 %s15, %s22
      %p24 = scmp.eq.s32.totalorder %s23, 0
      %s26 = sadd.s32 %s25, 1
      %s27 = scalar_select %p24, %s25, %s26
      %p30 = pneg %p24
      %p31 = scmp.eq.s32.totalorder %s15, 1
      %p32 = por %p30, %p31
      %p33 = scmp.ne.s32.totalorder %s25, %s28
      %p34 = scmp.eq.s32.totalorder %s15, 0
      %p35 = por %p33, %p34
      %p36 = scmp.ne.s32.totalorder %s25, %s28
      %p37 = scmp.eq.s32.totalorder %s20, 1
      %p38 = por %p36, %p37
      %p39 = scmp.ne.s32.totalorder %s28, %s29
      %p40 = scmp.eq.s32.totalorder %s20, 0
      %p41 = por %p39, %p40
      %p42 = scmp.ne.s32.totalorder %s28, %s29
      %p43 = scmp.eq.s32.totalorder %s21, 1
      %p44 = por %p42, %p43
      %p46 = scmp.ne.s32.totalorder %s29, %s45
      %p47 = scmp.eq.s32.totalorder %s21, 0
      %p48 = por %p46, %p47
      %s50 = sadd.s32 %s49, 1
      %p53 = scmp.eq.s32.totalorder %s15, 1
      %p54 = scmp.ne.s32.totalorder %s49, %s51
      %p55 = scmp.eq.s32.totalorder %s15, 0
      %p56 = por %p54, %p55
      %p57 = scmp.ne.s32.totalorder %s49, %s51
      %p58 = scmp.eq.s32.totalorder %s20, 1
      %p59 = por %p57, %p58
      %p60 = scmp.ne.s32.totalorder %s51, %s52
      %p61 = scmp.eq.s32.totalorder %s20, 0
      %p62 = por %p60, %p61
      %p63 = scmp.ne.s32.totalorder %s51, %s52
      %p64 = scmp.eq.s32.totalorder %s21, 1
      %p65 = por %p63, %p64
      %p67 = scmp.ne.s32.totalorder %s52, %s66
      %p68 = scmp.eq.s32.totalorder %s21, 0
      %p69 = por %p67, %p68
      %s71 = sadd.s32 %s70, 1
      %p74 = scmp.eq.s32.totalorder %s15, 1
      %p75 = scmp.ne.s32.totalorder %s70, %s72
      %p76 = scmp.eq.s32.totalorder %s15, 0
      %p77 = por %p75, %p76
      %p78 = scmp.ne.s32.totalorder %s70, %s72
      %p79 = scmp.eq.s32.totalorder %s20, 1
      %p80 = por %p78, %p79
      %p81 = scmp.ne.s32.totalorder %s72, %s73
      %p82 = scmp.eq.s32.totalorder %s20, 0
      %p83 = por %p81, %p82
      %p84 = scmp.ne.s32.totalorder %s72, %s73
      %p85 = scmp.eq.s32.totalorder %s21, 1
      %p86 = por %p84, %p85
      %p88 = scmp.ne.s32.totalorder %s73, %s87
      %p89 = scmp.eq.s32.totalorder %s21, 0
      %p90 = por %p88, %p89
      %s92 = sadd.s32 %s91, 1
      %p95 = scmp.eq.s32.totalorder %s15, 1
      %p96 = scmp.ne.s32.totalorder %s91, %s93
      %p97 = scmp.eq.s32.totalorder %s15, 0
      %p98 = por %p96, %p97
      %p99 = scmp.ne.s32.totalorder %s91, %s93
      %p100 = scmp.eq.s32.totalorder %s20, 1
      %p101 = por %p99, %p100
      %p102 = scmp.ne.s32.totalorder %s93, %s94
      %p103 = scmp.eq.s32.totalorder %s20, 0
      %p104 = por %p102, %p103
      %p105 = scmp.ne.s32.totalorder %s93, %s94
      %p106 = scmp.eq.s32.totalorder %s21, 1
      %p107 = por %p105, %p106
      %p109 = scmp.ne.s32.totalorder %s94, %s108
      %p110 = scmp.eq.s32.totalorder %s21, 0
      %p111 = por %p109, %p110
      %s113 = sadd.s32 %s112, 1
      %p116 = scmp.eq.s32.totalorder %s15, 1
      %p117 = scmp.ne.s32.totalorder %s112, %s114
      %p118 = scmp.eq.s32.totalorder %s15, 0
      %p119 = por %p117, %p118
      %p120 = scmp.ne.s32.totalorder %s112, %s114
      %p121 = scmp.eq.s32.totalorder %s20, 1
      %p122 = por %p120, %p121
      %p123 = scmp.ne.s32.totalorder %s114, %s115
      %p124 = scmp.eq.s32.totalorder %s20, 0
      %p125 = por %p123, %p124
      %p126 = scmp.ne.s32.totalorder %s114, %s115
      %p127 = scmp.eq.s32.totalorder %s21, 1
      %p128 = por %p126, %p127
      %p130 = scmp.ne.s32.totalorder %s115, %s129
      %p131 = scmp.eq.s32.totalorder %s21, 0
      %p132 = por %p130, %p131
      %s134 = sadd.s32 %s133, 1
      %p137 = scmp.eq.s32.totalorder %s15, 1
      %p138 = scmp.ne.s32.totalorder %s133, %s135
      %p139 = scmp.eq.s32.totalorder %s15, 0
      %p140 = por %p138, %p139
      %p141 = scmp.ne.s32.totalorder %s133, %s135
      %p142 = scmp.eq.s32.totalorder %s20, 1
      %p143 = por %p141, %p142
      %p144 = scmp.ne.s32.totalorder %s135, %s136
      %p145 = scmp.eq.s32.totalorder %s20, 0
      %p146 = por %p144, %p145
      %p147 = scmp.ne.s32.totalorder %s135, %s136
      %p148 = scmp.eq.s32.totalorder %s21, 1
      %p149 = por %p147, %p148
      %p151 = scmp.ne.s32.totalorder %s136, %s150
      %p152 = scmp.eq.s32.totalorder %s21, 0
      %p153 = por %p151, %p152
      %s154 = ssub.s32 %s15, %s22
      %p155 = scmp.eq.s32.totalorder %s154, 0
      %s157 = sadd.s32 %s156, 1
      %s158 = scalar_select %p155, %s156, %s157
      %p161 = pneg %p155
      %p162 = scmp.eq.s32.totalorder %s15, 1
      %p163 = por %p161, %p162
      %p164 = scmp.ne.s32.totalorder %s156, %s159
      %p165 = scmp.eq.s32.totalorder %s15, 0
      %p166 = por %p164, %p165
      %p167 = scmp.ne.s32.totalorder %s156, %s159
      %p168 = scmp.eq.s32.totalorder %s20, 1
      %p169 = por %p167, %p168
      %p170 = scmp.ne.s32.totalorder %s159, %s160
      %p171 = scmp.eq.s32.totalorder %s20, 0
      %p172 = por %p170, %p171
      %p173 = scmp.ne.s32.totalorder %s159, %s160
      %p174 = scmp.eq.s32.totalorder %s21, 1
      %p175 = por %p173, %p174
      %p177 = scmp.ne.s32.totalorder %s160, %s176
      %p178 = scmp.eq.s32.totalorder %s21, 0
      %p179 = por %p177, %p178
      %p180 = scmp.le.s32.totalorder 1, %s15
      %p181 = scmp.lt.s32.totalorder %s15, 3
      %p182 = pnand %p180, %p181
      %p183 = pneg %p182
      // Predicated region
      $region9: #{tpu_custom_call.1} parent=5 // pred_check
        _
      $region10: #{tpu_custom_call.1} parent=5 // pred_check_branch
        %185 = sbr.rel (%p182) target = $region12
      $region11: #{tpu_custom_call.1} parent=5 // pred_region
        %s186 = ssub.s32 %s15, 1
        // Predicated region
        $region13: #{tpu_custom_call.1} parent=11 // pred_check
          %p187 = pneg %p62
        $region14: #{tpu_custom_call.1} parent=11 // pred_check_branch
          %189 = sbr.rel (%p187) target = $region16
        $region15: #{tpu_custom_call.1} parent=11 // pred_region
          _
        $region16: #{tpu_custom_call.1} parent=11 // pred_fallthru
          _
        // Predicated region
        $region17: #{tpu_custom_call.1} parent=11 // pred_check
          %p190 = pneg %p83
        $region18: #{tpu_custom_call.1} parent=11 // pred_check_branch
          %192 = sbr.rel (%p190) target = $region20
        $region19: #{tpu_custom_call.1} parent=11 // pred_region
          _
        $region20: #{tpu_custom_call.1} parent=11 // pred_fallthru
          _
        // Predicated region
        $region21: #{tpu_custom_call.1} parent=11 // pred_check
          %p193 = pneg %p104
        $region22: #{tpu_custom_call.1} parent=11 // pred_check_branch
          %195 = sbr.rel (%p193) target = $region24
        $region23: #{tpu_custom_call.1} parent=11 // pred_region
          _
        $region24: #{tpu_custom_call.1} parent=11 // pred_fallthru
          _
        // Predicated region
        $region25: #{tpu_custom_call.1} parent=11 // pred_check
          %p196 = pneg %p125
        $region26: #{tpu_custom_call.1} parent=11 // pred_check_branch
          %198 = sbr.rel (%p196) target = $region28
        $region27: #{tpu_custom_call.1} parent=11 // pred_region
          _
        $region28: #{tpu_custom_call.1} parent=11 // pred_fallthru
          _
        // Predicated region
        $region29: #{tpu_custom_call.1} parent=11 // pred_check
          %p199 = pneg %p146
        $region30: #{tpu_custom_call.1} parent=11 // pred_check_branch
          %201 = sbr.rel (%p199) target = $region32
        $region31: #{tpu_custom_call.1} parent=11 // pred_region
          _
        $region32: #{tpu_custom_call.1} parent=11 // pred_fallthru
          _
      $region12: #{tpu_custom_call.1} parent=5 // pred_fallthru
        _
      %p202 = scmp.lt.s32.totalorder %s15, 2
      // Predicated region
      $region33: #{tpu_custom_call.1} parent=5 // pred_check
        %p203 = pneg %p202
      $region34: #{tpu_custom_call.1} parent=5 // pred_check_branch
        %205 = sbr.rel (%p203) target = $region36
      $region35: #{tpu_custom_call.1} parent=5 // pred_region
        // Predicated region
        $region37: #{tpu_custom_call.1} parent=35 // pred_check
          %p206 = pneg %p35
        $region38: #{tpu_custom_call.1} parent=35 // pred_check_branch
          %208 = sbr.rel (%p206) target = $region40
        $region39: #{tpu_custom_call.1} parent=35 // pred_region
          %p209 = scmp.lt.s32.totalorder %s15, 1
          %s210 = scalar_select %p209, %s15, 1
          %s211 = smul.addr %s210, 8
          %s212 = smul.addr %s211, 8
          %s213 = scalar_lea.vmem %s0, %s212
        $region40: #{tpu_custom_call.1} parent=35 // pred_fallthru
          _
      $region36: #{tpu_custom_call.1} parent=5 // pred_fallthru
        _
      %p214 = scmp.le.s32.totalorder 1, %s15
      %p215 = scmp.lt.s32.totalorder %s15, 3
      %p216 = pnand %p214, %p215
      %p217 = pneg %p216
      // Predicated region
      $region41: #{tpu_custom_call.1} parent=5 // pred_check
        _
      $region42: #{tpu_custom_call.1} parent=5 // pred_check_branch
        %219 = sbr.rel (%p216) target = $region44
      $region43: #{tpu_custom_call.1} parent=5 // pred_region
        %s220 = ssub.s32 %s15, 1
        %p221 = scmp.lt.s32.totalorder %s20, 1
        %s222 = scalar_select %p221, %s20, 1
        %s223 = smul.addr %s222, 8
        %s224 = smul.addr %s223, 8
        %s225 = scalar_lea.vmem %s0, %s224
        %p226 = pneg %p41
        %p227 = pneg %p38
        %p228 = pneg %p62
        %p229 = pneg %p59
        %p230 = pneg %p83
        %p231 = pneg %p80
        %p232 = pneg %p104
        %p233 = pneg %p101
        %p234 = pneg %p125
        %p235 = pneg %p122
        %p236 = pneg %p146
        %p237 = pneg %p143
        %p238 = pneg %p172
        %p239 = pneg %p169
        %s240 = sand.u32 %s159, 1
        %s241 = scalar_lea.sflag [#allocation3], %s240
        %s242 = sand.u32 %s159, 1
        %s243 = smul.addr %s242, 64
        %s244 = scalar_lea.vmem [#allocation2], %s243
        %p245 = scmp.lt.s32.totalorder %s20, 1
        %s246 = scalar_select %p245, %s20, 1
        %s247 = smul.addr %s246, 8
        %s248 = smul.addr %s247, 8
        %s249 = scalar_lea.vmem %s0, %s248
        %v250 = vld [vmem:[%s249] sm:$0xff]
        %v251 = vld [vmem:[%s249 + $0x8] sm:$0xff]
        %v252 = vld [vmem:[%s249 + $0x10] sm:$0xff]
        %v253 = vld [vmem:[%s249 + $0x18] sm:$0xff]
        %v254 = vld [vmem:[%s249 + $0x20] sm:$0xff]
        %v255 = vld [vmem:[%s249 + $0x28] sm:$0xff]
        %v256 = vld [vmem:[%s249 + $0x30] sm:$0xff]
        %v257 = vld [vmem:[%s249 + $0x38] sm:$0xff]
        %258 = vxpose.xlu0.b32.start [1/16] %v250, 128
        %259 = vxpose.xlu0.b32.cont [2/16] %v252, 128
        %260 = vxpose.xlu0.b32.cont [3/16] %v254, 128
        %261 = vxpose.xlu0.b32.cont [4/16] %v256, 128
        %262 = vxpose.xlu0.b32.cont [5/16] 0.0, 128
        %263 = vxpose.xlu0.b32.cont [6/16] 0.0, 128
        %264 = vxpose.xlu0.b32.cont [7/16] 0.0, 128
        %265 = vxpose.xlu0.b32.cont [8/16] 0.0, 128
        %266 = vxpose.xlu0.b32.cont [9/16] 0.0, 128
        %267 = vxpose.xlu0.b32.cont [10/16] 0.0, 128
        %268 = vxpose.xlu0.b32.cont [11/16] 0.0, 128
        %269 = vxpose.xlu0.b32.cont [12/16] 0.0, 128
        %270 = vxpose.xlu0.b32.cont [13/16] 0.0, 128
        %271 = vxpose.xlu0.b32.cont [14/16] 0.0, 128
        %272 = vxpose.xlu0.b32.cont [15/16] 0.0, 128
        %273 = vxpose.xlu0.b32.end [16/16] 0.0, 128
        %v274 = vpop.trf.xlu0
        %v275 = vpop.trf.xlu0
        %v276 = vpop.trf.xlu0
        %v277 = vpop.trf.xlu0
        %v278 = vpop.trf.xlu0
        %v279 = vpop.trf.xlu0
        %v280 = vpop.trf.xlu0
        %v281 = vpop.trf.xlu0
        %v282 = vpop.trf.xlu0
        %v283 = vpop.trf.xlu0
        %v284 = vpop.trf.xlu0
        %v285 = vpop.trf.xlu0
        %v286 = vpop.trf.xlu0
        %v287 = vpop.trf.xlu0
        %v288 = vpop.trf.xlu0
        %v289 = vpop.trf.xlu0
        %290 = vxpose.xlu0.b32.start [1/16] %v251, 128
        %291 = vxpose.xlu0.b32.cont [2/16] %v253, 128
        %292 = vxpose.xlu0.b32.cont [3/16] %v255, 128
        %293 = vxpose.xlu0.b32.cont [4/16] %v257, 128
        %294 = vxpose.xlu0.b32.cont [5/16] 0.0, 128
        %295 = vxpose.xlu0.b32.cont [6/16] 0.0, 128
        %296 = vxpose.xlu0.b32.cont [7/16] 0.0, 128
        %297 = vxpose.xlu0.b32.cont [8/16] 0.0, 128
        %298 = vxpose.xlu0.b32.cont [9/16] 0.0, 128
        %299 = vxpose.xlu0.b32.cont [10/16] 0.0, 128
        %300 = vxpose.xlu0.b32.cont [11/16] 0.0, 128
        %301 = vxpose.xlu0.b32.cont [12/16] 0.0, 128
        %302 = vxpose.xlu0.b32.cont [13/16] 0.0, 128
        %303 = vxpose.xlu0.b32.cont [14/16] 0.0, 128
        %304 = vxpose.xlu0.b32.cont [15/16] 0.0, 128
        %305 = vxpose.xlu0.b32.end [16/16] 0.0, 128
        %v306 = vpop.trf.xlu0
        %v307 = vpop.trf.xlu0
        %v308 = vpop.trf.xlu0
        %v309 = vpop.trf.xlu0
        %v310 = vpop.trf.xlu0
        %v311 = vpop.trf.xlu0
        %v312 = vpop.trf.xlu0
        %v313 = vpop.trf.xlu0
        %v314 = vpop.trf.xlu0
        %v315 = vpop.trf.xlu0
        %v316 = vpop.trf.xlu0
        %v317 = vpop.trf.xlu0
        %v318 = vpop.trf.xlu0
        %v319 = vpop.trf.xlu0
        %v320 = vpop.trf.xlu0
        %v321 = vpop.trf.xlu0
        %v322 = vld [vmem:[%s1] sm:$0xff]
        %v323 = vld [vmem:[%s1 + $0x8] sm:$0xff]
        %v324 = vld [vmem:[%s1 + $0x10] sm:$0xff]
        %v325 = vld [vmem:[%s1 + $0x18] sm:$0xff]
        %vm326 = vcmask 261120
        %v327 = vsel %vm326, %v274, 0.0
        %v328 = vsel %vm326, %v275, 0.0
        %v329 = vadd.f32 %v327, %v328
        %v330 = vsel %vm326, %v276, 0.0
        %v331 = vadd.f32 %v329, %v330
        %v332 = vsel %vm326, %v277, 0.0
        %v333 = vadd.f32 %v331, %v332
        %v334 = vsel %vm326, %v278, 0.0
        %v335 = vadd.f32 %v333, %v334
        %v336 = vsel %vm326, %v279, 0.0
        %v337 = vadd.f32 %v335, %v336
        %v338 = vsel %vm326, %v280, 0.0
        %v339 = vadd.f32 %v337, %v338
        %v340 = vsel %vm326, %v281, 0.0
        %v341 = vadd.f32 %v339, %v340
        %v342 = vsel %vm326, %v282, 0.0
        %v343 = vadd.f32 %v341, %v342
        %v344 = vsel %vm326, %v283, 0.0
        %v345 = vadd.f32 %v343, %v344
        %v346 = vsel %vm326, %v284, 0.0
        %v347 = vadd.f32 %v345, %v346
        %v348 = vsel %vm326, %v285, 0.0
        %v349 = vadd.f32 %v347, %v348
        %v350 = vsel %vm326, %v286, 0.0
        %v351 = vadd.f32 %v349, %v350
        %v352 = vsel %vm326, %v287, 0.0
        %v353 = vadd.f32 %v351, %v352
        %v354 = vsel %vm326, %v288, 0.0
        %v355 = vadd.f32 %v353, %v354
        %v356 = vsel %vm326, %v289, 0.0
        %v357 = vadd.f32 %v355, %v356
        %v358 = vsel %vm326, %v306, 0.0
        %v359 = vadd.f32 %v357, %v358
        %v360 = vsel %vm326, %v307, 0.0
        %v361 = vadd.f32 %v359, %v360
        %v362 = vsel %vm326, %v308, 0.0
        %v363 = vadd.f32 %v361, %v362
        %v364 = vsel %vm326, %v309, 0.0
        %v365 = vadd.f32 %v363, %v364
        %v366 = vsel %vm326, %v310, 0.0
        %v367 = vadd.f32 %v365, %v366
        %v368 = vsel %vm326, %v311, 0.0
        %v369 = vadd.f32 %v367, %v368
        %v370 = vsel %vm326, %v312, 0.0
        %v371 = vadd.f32 %v369, %v370
        %v372 = vsel %vm326, %v313, 0.0
        %v373 = vadd.f32 %v371, %v372
        %v374 = vsel %vm326, %v314, 0.0
        %v375 = vadd.f32 %v373, %v374
        %v376 = vsel %vm326, %v315, 0.0
        %v377 = vadd.f32 %v375, %v376
        %v378 = vsel %vm326, %v316, 0.0
        %v379 = vadd.f32 %v377, %v378
        %v380 = vsel %vm326, %v317, 0.0
        %v381 = vadd.f32 %v379, %v380
        %v382 = vsel %vm326, %v318, 0.0
        %v383 = vadd.f32 %v381, %v382
        %v384 = vsel %vm326, %v319, 0.0
        %v385 = vadd.f32 %v383, %v384
        %v386 = vsel %vm326, %v320, 0.0
        %v387 = vadd.f32 %v385, %v386
        %v388 = vsel %vm326, %v321, 0.0
        %v389 = vadd.f32 %v387, %v388
        %v390 = vrot.slane %v389, 4
        %v391 = vadd.f32 %v389, %v390
        %v392 = vrot.slane %v391, 2
        %v393 = vadd.f32 %v391, %v392
        %v394 = vrot.slane %v393, 1
        %v395 = vadd.f32 %v393, %v394
        %v396 = vmul.f32 %v274, %v274
        %v397 = vmul.f32 %v275, %v275
        %v398 = vmul.f32 %v276, %v276
        %v399 = vmul.f32 %v277, %v277
        %v400 = vmul.f32 %v278, %v278
        %v401 = vmul.f32 %v279, %v279
        %v402 = vmul.f32 %v280, %v280
        %v403 = vmul.f32 %v281, %v281
        %v404 = vmul.f32 %v282, %v282
        %v405 = vmul.f32 %v283, %v283
        %v406 = vmul.f32 %v284, %v284
        %v407 = vmul.f32 %v285, %v285
        %v408 = vmul.f32 %v286, %v286
        %v409 = vmul.f32 %v287, %v287
        %v410 = vmul.f32 %v288, %v288
        %v411 = vmul.f32 %v289, %v289
        %v412 = vmul.f32 %v306, %v306
        %v413 = vmul.f32 %v307, %v307
        %v414 = vmul.f32 %v308, %v308
        %v415 = vmul.f32 %v309, %v309
        %v416 = vmul.f32 %v310, %v310
        %v417 = vmul.f32 %v311, %v311
        %v418 = vmul.f32 %v312, %v312
        %v419 = vmul.f32 %v313, %v313
        %v420 = vmul.f32 %v314, %v314
        %v421 = vmul.f32 %v315, %v315
        %v422 = vmul.f32 %v316, %v316
        %v423 = vmul.f32 %v317, %v317
        %v424 = vmul.f32 %v318, %v318
        %v425 = vmul.f32 %v319, %v319
        %v426 = vmul.f32 %v320, %v320
        %v427 = vmul.f32 %v321, %v321
        %v428 = vsel %vm326, %v396, 0.0
        %v429 = vsel %vm326, %v397, 0.0
        %v430 = vadd.f32 %v428, %v429
        %v431 = vsel %vm326, %v398, 0.0
        %v432 = vadd.f32 %v430, %v431
        %v433 = vsel %vm326, %v399, 0.0
        %v434 = vadd.f32 %v432, %v433
        %v435 = vsel %vm326, %v400, 0.0
        %v436 = vadd.f32 %v434, %v435
        %v437 = vsel %vm326, %v401, 0.0
        %v438 = vadd.f32 %v436, %v437
        %v439 = vsel %vm326, %v402, 0.0
        %v440 = vadd.f32 %v438, %v439
        %v441 = vsel %vm326, %v403, 0.0
        %v442 = vadd.f32 %v440, %v441
        %v443 = vsel %vm326, %v404, 0.0
        %v444 = vadd.f32 %v442, %v443
        %v445 = vsel %vm326, %v405, 0.0
        %v446 = vadd.f32 %v444, %v445
        %v447 = vsel %vm326, %v406, 0.0
        %v448 = vadd.f32 %v446, %v447
        %v449 = vsel %vm326, %v407, 0.0
        %v450 = vadd.f32 %v448, %v449
        %v451 = vsel %vm326, %v408, 0.0
        %v452 = vadd.f32 %v450, %v451
        %v453 = vsel %vm326, %v409, 0.0
        %v454 = vadd.f32 %v452, %v453
        %v455 = vsel %vm326, %v410, 0.0
        %v456 = vadd.f32 %v454, %v455
        %v457 = vsel %vm326, %v411, 0.0
        %v458 = vadd.f32 %v456, %v457
        %v459 = vsel %vm326, %v412, 0.0
        %v460 = vadd.f32 %v458, %v459
        %v461 = vsel %vm326, %v413, 0.0
        %v462 = vadd.f32 %v460, %v461
        %v463 = vsel %vm326, %v414, 0.0
        %v464 = vadd.f32 %v462, %v463
        %v465 = vsel %vm326, %v415, 0.0
        %v466 = vadd.f32 %v464, %v465
        %v467 = vsel %vm326, %v416, 0.0
        %v468 = vadd.f32 %v466, %v467
        %v469 = vsel %vm326, %v417, 0.0
        %v470 = vadd.f32 %v468, %v469
        %v471 = vsel %vm326, %v418, 0.0
        %v472 = vadd.f32 %v470, %v471
        %v473 = vsel %vm326, %v419, 0.0
        %v474 = vadd.f32 %v472, %v473
        %v475 = vsel %vm326, %v420, 0.0
        %v476 = vadd.f32 %v474, %v475
        %v477 = vsel %vm326, %v421, 0.0
        %v478 = vadd.f32 %v476, %v477
        %v479 = vsel %vm326, %v422, 0.0
        %v480 = vadd.f32 %v478, %v479
        %v481 = vsel %vm326, %v423, 0.0
        %v482 = vadd.f32 %v480, %v481
        %v483 = vsel %vm326, %v424, 0.0
        %v484 = vadd.f32 %v482, %v483
        %v485 = vsel %vm326, %v425, 0.0
        %v486 = vadd.f32 %v484, %v485
        %v487 = vsel %vm326, %v426, 0.0
        %v488 = vadd.f32 %v486, %v487
        %v489 = vsel %vm326, %v427, 0.0
        %v490 = vadd.f32 %v488, %v489
        %v491 = vrot.slane %v490, 4
        %v492 = vadd.f32 %v490, %v491
        %v493 = vrot.slane %v492, 2
        %v494 = vadd.f32 %v492, %v493
        %v495 = vrot.slane %v494, 1
        %v496 = vadd.f32 %v494, %v495
        %v498 = vsel %vm326, %v395, 0
        %500 = vmatprep.subr.mxu0 0.0
        %501 = vmatpush1.msra.mxu0 %v322
        %502 = vmatprep.subr.mxu0 0.0
        %503 = vmatpush1.msra.mxu0 %v323
        %504 = vmatprep.subr.mxu0 0.0
        %505 = vmatpush1.msra.mxu0 %v324
        %506 = vmatprep.subr.mxu0 0.0
        %507 = vmatpush1.msra.mxu0 %v325
        %508 = vmatprep.subr.mxu0 0.0
        %509 = vmatpush1.msra.mxu0 0.0
        %510 = vmatprep.subr.mxu0 0.0
        %511 = vmatpush1.msra.mxu0 0.0
        %512 = vmatprep.subr.mxu0 0.0
        %513 = vmatpush1.msra.mxu0 0.0
        %514 = vmatprep.subr.mxu0 0.0
        %515 = vmatpush1.msra.mxu0 0.0
        %516 = vmatprep.subr.mxu0 0.0
        %517 = vmatpush1.msra.mxu0 0.0
        %518 = vmatprep.subr.mxu0 0.0
        %519 = vmatpush1.msra.mxu0 0.0
        %520 = vmatprep.subr.mxu0 0.0
        %521 = vmatpush1.msra.mxu0 0.0
        %522 = vmatprep.subr.mxu0 0.0
        %523 = vmatpush1.msra.mxu0 0.0
        %524 = vmatprep.subr.mxu0 0.0
        %525 = vmatpush1.msra.mxu0 0.0
        %526 = vmatprep.subr.mxu0 0.0
        %527 = vmatpush1.msra.mxu0 0.0
        %528 = vmatprep.subr.mxu0 0.0
        %529 = vmatpush1.msra.mxu0 0.0
        %530 = vmatprep.subr.mxu0 0.0
        %531 = vmatpush1.msra.mxu0 0.0
        %532 = vmatprep.subr.mxu0 0.0
        %533 = vmatpush1.msra.mxu0 0.0
        %534 = vmatprep.subr.mxu0 0.0
        %535 = vmatpush1.msra.mxu0 0.0
        %536 = vmatprep.subr.mxu0 0.0
        %537 = vmatpush1.msra.mxu0 0.0
        %538 = vmatprep.subr.mxu0 0.0
        %539 = vmatpush1.msra.mxu0 0.0
        %540 = vmatprep.subr.mxu0 0.0
        %541 = vmatpush1.msra.mxu0 0.0
        %542 = vmatprep.subr.mxu0 0.0
        %543 = vmatpush1.msra.mxu0 0.0
        %544 = vmatprep.subr.mxu0 0.0
        %545 = vmatpush1.msra.mxu0 0.0
        %546 = vmatprep.subr.mxu0 0.0
        %547 = vmatpush1.msra.mxu0 0.0
        %548 = vmatprep.subr.mxu0 0.0
        %549 = vmatpush1.msra.mxu0 0.0
        %550 = vmatprep.subr.mxu0 0.0
        %551 = vmatpush1.msra.mxu0 0.0
        %552 = vmatprep.subr.mxu0 0.0
        %553 = vmatpush1.msra.mxu0 0.0
        %554 = vmatprep.subr.mxu0 0.0
        %555 = vmatpush1.msra.mxu0 0.0
        %556 = vmatprep.subr.mxu0 0.0
        %557 = vmatpush1.msra.mxu0 0.0
        %558 = vmatprep.subr.mxu0 0.0
        %559 = vmatpush1.msra.mxu0 0.0
        %560 = vmatprep.subr.mxu0 0.0
        %561 = vmatpush1.msra.mxu0 0.0
        %562 = vmatprep.subr.mxu0 0.0
        %563 = vmatpush1.msra.mxu0 0.0
        %564 = vmatprep.mubr.f32.mxu0 0.0
        %565 = vmatmul.mubr.f32.gmra.mrb[0].mxu0 %v498
        %v566 = vpop.f32.mrb[0].mxu0
        %v567 = vadd.f32 0.0, %v566
        %v568 = vpop.f32.mrb[0].mxu0
        %569 = vdwg.mxu0
        %v571 = vsel %vm326, %v496, 0
        %573 = vmatprep.subr.mxu0 0.0
        %574 = vmatpush1.msra.mxu0 %v322
        %575 = vmatprep.subr.mxu0 0.0
        %576 = vmatpush1.msra.mxu0 %v323
        %577 = vmatprep.subr.mxu0 0.0
        %578 = vmatpush1.msra.mxu0 %v324
        %579 = vmatprep.subr.mxu0 0.0
        %580 = vmatpush1.msra.mxu0 %v325
        %581 = vmatprep.subr.mxu0 0.0
        %582 = vmatpush1.msra.mxu0 0.0
        %583 = vmatprep.subr.mxu0 0.0
        %584 = vmatpush1.msra.mxu0 0.0
        %585 = vmatprep.subr.mxu0 0.0
        %586 = vmatpush1.msra.mxu0 0.0
        %587 = vmatprep.subr.mxu0 0.0
        %588 = vmatpush1.msra.mxu0 0.0
        %589 = vmatprep.subr.mxu0 0.0
        %590 = vmatpush1.msra.mxu0 0.0
        %591 = vmatprep.subr.mxu0 0.0
        %592 = vmatpush1.msra.mxu0 0.0
        %593 = vmatprep.subr.mxu0 0.0
        %594 = vmatpush1.msra.mxu0 0.0
        %595 = vmatprep.subr.mxu0 0.0
        %596 = vmatpush1.msra.mxu0 0.0
        %597 = vmatprep.subr.mxu0 0.0
        %598 = vmatpush1.msra.mxu0 0.0
        %599 = vmatprep.subr.mxu0 0.0
        %600 = vmatpush1.msra.mxu0 0.0
        %601 = vmatprep.subr.mxu0 0.0
        %602 = vmatpush1.msra.mxu0 0.0
        %603 = vmatprep.subr.mxu0 0.0
        %604 = vmatpush1.msra.mxu0 0.0
        %605 = vmatprep.subr.mxu0 0.0
        %606 = vmatpush1.msra.mxu0 0.0
        %607 = vmatprep.subr.mxu0 0.0
        %608 = vmatpush1.msra.mxu0 0.0
        %609 = vmatprep.subr.mxu0 0.0
        %610 = vmatpush1.msra.mxu0 0.0
        %611 = vmatprep.subr.mxu0 0.0
        %612 = vmatpush1.msra.mxu0 0.0
        %613 = vmatprep.subr.mxu0 0.0
        %614 = vmatpush1.msra.mxu0 0.0
        %615 = vmatprep.subr.mxu0 0.0
        %616 = vmatpush1.msra.mxu0 0.0
        %617 = vmatprep.subr.mxu0 0.0
        %618 = vmatpush1.msra.mxu0 0.0
        %619 = vmatprep.subr.mxu0 0.0
        %620 = vmatpush1.msra.mxu0 0.0
        %621 = vmatprep.subr.mxu0 0.0
        %622 = vmatpush1.msra.mxu0 0.0
        %623 = vmatprep.subr.mxu0 0.0
        %624 = vmatpush1.msra.mxu0 0.0
        %625 = vmatprep.subr.mxu0 0.0
        %626 = vmatpush1.msra.mxu0 0.0
        %627 = vmatprep.subr.mxu0 0.0
        %628 = vmatpush1.msra.mxu0 0.0
        %629 = vmatprep.subr.mxu0 0.0
        %630 = vmatpush1.msra.mxu0 0.0
        %631 = vmatprep.subr.mxu0 0.0
        %632 = vmatpush1.msra.mxu0 0.0
        %633 = vmatprep.subr.mxu0 0.0
        %634 = vmatpush1.msra.mxu0 0.0
        %635 = vmatprep.subr.mxu0 0.0
        %636 = vmatpush1.msra.mxu0 0.0
        %637 = vmatprep.mubr.f32.mxu0 0.0
        %638 = vmatmul.mubr.f32.gmra.mrb[0].mxu0 %v571
        %v639 = vpop.f32.mrb[0].mxu0
        %v640 = vadd.f32 0.0, %v639
        %v641 = vpop.f32.mrb[0].mxu0
        %642 = vdwg.mxu0
        %v643 = vmul.f32 %v567, 0.0009765625
        %vm644 = vcmask 64512
        %v646 = vsel %vm644, %v643, 0
        %v649 = vsel %vm644, %v322, 0
        %v652 = vsel %vm644, %v323, 0
        %v655 = vsel %vm644, %v324, 0
        %v658 = vsel %vm644, %v325, 0
        %660 = vmatprep.subr.mxu0 0.0
        %661 = vmatpush1.xpose.msra.mxu0 %v649
        %662 = vmatprep.subr.mxu0 0.0
        %663 = vmatpush1.xpose.msra.mxu0 %v652
        %664 = vmatprep.subr.mxu0 0.0
        %665 = vmatpush1.xpose.msra.mxu0 %v655
        %666 = vmatprep.subr.mxu0 0.0
        %667 = vmatpush1.xpose.msra.mxu0 %v658
        %668 = vmatprep.subr.mxu0 0.0
        %669 = vmatpush1.xpose.msra.mxu0 0.0
        %670 = vmatprep.subr.mxu0 0.0
        %671 = vmatpush1.xpose.msra.mxu0 0.0
        %672 = vmatprep.subr.mxu0 0.0
        %673 = vmatpush1.xpose.msra.mxu0 0.0
        %674 = vmatprep.subr.mxu0 0.0
        %675 = vmatpush1.xpose.msra.mxu0 0.0
        %676 = vmatprep.subr.mxu0 0.0
        %677 = vmatpush1.xpose.msra.mxu0 0.0
        %678 = vmatprep.subr.mxu0 0.0
        %679 = vmatpush1.xpose.msra.mxu0 0.0
        %680 = vmatprep.subr.mxu0 0.0
        %681 = vmatpush1.xpose.msra.mxu0 0.0
        %682 = vmatprep.subr.mxu0 0.0
        %683 = vmatpush1.xpose.msra.mxu0 0.0
        %684 = vmatprep.subr.mxu0 0.0
        %685 = vmatpush1.xpose.msra.mxu0 0.0
        %686 = vmatprep.subr.mxu0 0.0
        %687 = vmatpush1.xpose.msra.mxu0 0.0
        %688 = vmatprep.subr.mxu0 0.0
        %689 = vmatpush1.xpose.msra.mxu0 0.0
        %690 = vmatprep.subr.mxu0 0.0
        %691 = vmatpush1.xpose.msra.mxu0 0.0
        %692 = vmatprep.subr.mxu0 0.0
        %693 = vmatpush1.xpose.msra.mxu0 0.0
        %694 = vmatprep.subr.mxu0 0.0
        %695 = vmatpush1.xpose.msra.mxu0 0.0
        %696 = vmatprep.subr.mxu0 0.0
        %697 = vmatpush1.xpose.msra.mxu0 0.0
        %698 = vmatprep.subr.mxu0 0.0
        %699 = vmatpush1.xpose.msra.mxu0 0.0
        %700 = vmatprep.subr.mxu0 0.0
        %701 = vmatpush1.xpose.msra.mxu0 0.0
        %702 = vmatprep.subr.mxu0 0.0
        %703 = vmatpush1.xpose.msra.mxu0 0.0
        %704 = vmatprep.subr.mxu0 0.0
        %705 = vmatpush1.xpose.msra.mxu0 0.0
        %706 = vmatprep.subr.mxu0 0.0
        %707 = vmatpush1.xpose.msra.mxu0 0.0
        %708 = vmatprep.subr.mxu0 0.0
        %709 = vmatpush1.xpose.msra.mxu0 0.0
        %710 = vmatprep.subr.mxu0 0.0
        %711 = vmatpush1.xpose.msra.mxu0 0.0
        %712 = vmatprep.subr.mxu0 0.0
        %713 = vmatpush1.xpose.msra.mxu0 0.0
        %714 = vmatprep.subr.mxu0 0.0
        %715 = vmatpush1.xpose.msra.mxu0 0.0
        %716 = vmatprep.subr.mxu0 0.0
        %717 = vmatpush1.xpose.msra.mxu0 0.0
        %718 = vmatprep.subr.mxu0 0.0
        %719 = vmatpush1.xpose.msra.mxu0 0.0
        %720 = vmatprep.subr.mxu0 0.0
        %721 = vmatpush1.xpose.msra.mxu0 0.0
        %722 = vmatprep.subr.mxu0 0.0
        %723 = vmatpush1.xpose.msra.mxu0 0.0
        %724 = vmatprep.mubr.f32.mxu0 0.0
        %725 = vmatmul.mubr.f32.gmra.mrb[0].mxu0 %v646
        %v726 = vpop.f32.mrb[0].mxu0
        %v727 = vadd.f32 0.0, %v726
        %v728 = vpop.f32.mrb[0].mxu0
        %729 = vdwg.mxu0
        %v730 = vmul.f32 %v640, 0.0009765625
        %v732 = vsel %vm644, %v730, 0
        %734 = vmatprep.subr.mxu0 0.0
        %735 = vmatpush1.xpose.msra.mxu0 %v649
        %736 = vmatprep.subr.mxu0 0.0
        %737 = vmatpush1.xpose.msra.mxu0 %v652
        %738 = vmatprep.subr.mxu0 0.0
        %739 = vmatpush1.xpose.msra.mxu0 %v655
        %740 = vmatprep.subr.mxu0 0.0
        %741 = vmatpush1.xpose.msra.mxu0 %v658
        %742 = vmatprep.subr.mxu0 0.0
        %743 = vmatpush1.xpose.msra.mxu0 0.0
        %744 = vmatprep.subr.mxu0 0.0
        %745 = vmatpush1.xpose.msra.mxu0 0.0
        %746 = vmatprep.subr.mxu0 0.0
        %747 = vmatpush1.xpose.msra.mxu0 0.0
        %748 = vmatprep.subr.mxu0 0.0
        %749 = vmatpush1.xpose.msra.mxu0 0.0
        %750 = vmatprep.subr.mxu0 0.0
        %751 = vmatpush1.xpose.msra.mxu0 0.0
        %752 = vmatprep.subr.mxu0 0.0
        %753 = vmatpush1.xpose.msra.mxu0 0.0
        %754 = vmatprep.subr.mxu0 0.0
        %755 = vmatpush1.xpose.msra.mxu0 0.0
        %756 = vmatprep.subr.mxu0 0.0
        %757 = vmatpush1.xpose.msra.mxu0 0.0
        %758 = vmatprep.subr.mxu0 0.0
        %759 = vmatpush1.xpose.msra.mxu0 0.0
        %760 = vmatprep.subr.mxu0 0.0
        %761 = vmatpush1.xpose.msra.mxu0 0.0
        %762 = vmatprep.subr.mxu0 0.0
        %763 = vmatpush1.xpose.msra.mxu0 0.0
        %764 = vmatprep.subr.mxu0 0.0
        %765 = vmatpush1.xpose.msra.mxu0 0.0
        %766 = vmatprep.subr.mxu0 0.0
        %767 = vmatpush1.xpose.msra.mxu0 0.0
        %768 = vmatprep.subr.mxu0 0.0
        %769 = vmatpush1.xpose.msra.mxu0 0.0
        %770 = vmatprep.subr.mxu0 0.0
        %771 = vmatpush1.xpose.msra.mxu0 0.0
        %772 = vmatprep.subr.mxu0 0.0
        %773 = vmatpush1.xpose.msra.mxu0 0.0
        %774 = vmatprep.subr.mxu0 0.0
        %775 = vmatpush1.xpose.msra.mxu0 0.0
        %776 = vmatprep.subr.mxu0 0.0
        %777 = vmatpush1.xpose.msra.mxu0 0.0
        %778 = vmatprep.subr.mxu0 0.0
        %779 = vmatpush1.xpose.msra.mxu0 0.0
        %780 = vmatprep.subr.mxu0 0.0
        %781 = vmatpush1.xpose.msra.mxu0 0.0
        %782 = vmatprep.subr.mxu0 0.0
        %783 = vmatpush1.xpose.msra.mxu0 0.0
        %784 = vmatprep.subr.mxu0 0.0
        %785 = vmatpush1.xpose.msra.mxu0 0.0
        %786 = vmatprep.subr.mxu0 0.0
        %787 = vmatpush1.xpose.msra.mxu0 0.0
        %788 = vmatprep.subr.mxu0 0.0
        %789 = vmatpush1.xpose.msra.mxu0 0.0
        %790 = vmatprep.subr.mxu0 0.0
        %791 = vmatpush1.xpose.msra.mxu0 0.0
        %792 = vmatprep.subr.mxu0 0.0
        %793 = vmatpush1.xpose.msra.mxu0 0.0
        %794 = vmatprep.subr.mxu0 0.0
        %795 = vmatpush1.xpose.msra.mxu0 0.0
        %796 = vmatprep.subr.mxu0 0.0
        %797 = vmatpush1.xpose.msra.mxu0 0.0
        %798 = vmatprep.mubr.f32.mxu0 0.0
        %799 = vmatmul.mubr.f32.gmra.mrb[0].mxu0 %v732
        %v800 = vpop.f32.mrb[0].mxu0
        %v801 = vadd.f32 0.0, %v800
        %v802 = vpop.f32.mrb[0].mxu0
        %803 = vdwg.mxu0
        %v804 = vmul.f32 %v727, %v727
        %v805 = vsub.f32 %v801, %v804
        %v806 = vlaneseq
        %v807 = vshrl.u32 %v806, 7
        %v808 = vsub.s32 0, %v807
        %v809 = vrot.slane %v727, %v808
        %v810 = vsub.f32 %v274, %v809
        %v811 = vsub.f32 %v275, %v809
        %v812 = vsub.f32 %v276, %v809
        %v813 = vsub.f32 %v277, %v809
        %v814 = vsub.f32 %v278, %v809
        %v815 = vsub.f32 %v279, %v809
        %v816 = vsub.f32 %v280, %v809
        %v817 = vsub.f32 %v281, %v809
        %v818 = vsub.f32 %v282, %v809
        %v819 = vsub.f32 %v283, %v809
        %v820 = vsub.f32 %v284, %v809
        %v821 = vsub.f32 %v285, %v809
        %v822 = vsub.f32 %v286, %v809
        %v823 = vsub.f32 %v287, %v809
        %v824 = vsub.f32 %v288, %v809
        %v825 = vsub.f32 %v289, %v809
        %v826 = vsub.f32 %v306, %v809
        %v827 = vsub.f32 %v307, %v809
        %v828 = vsub.f32 %v308, %v809
        %v829 = vsub.f32 %v309, %v809
        %v830 = vsub.f32 %v310, %v809
        %v831 = vsub.f32 %v311, %v809
        %v832 = vsub.f32 %v312, %v809
        %v833 = vsub.f32 %v313, %v809
        %v834 = vsub.f32 %v314, %v809
        %v835 = vsub.f32 %v315, %v809
        %v836 = vsub.f32 %v316, %v809
        %v837 = vsub.f32 %v317, %v809
        %v838 = vsub.f32 %v318, %v809
        %v839 = vsub.f32 %v319, %v809
        %v840 = vsub.f32 %v320, %v809
        %v841 = vsub.f32 %v321, %v809
        %v842 = vadd.f32 %v805, 1e-05
        %v843 = vrsqrt.pop %v842
        %v844 = vlaneseq
        %v845 = vshrl.u32 %v844, 7
        %v846 = vsub.s32 0, %v845
        %v847 = vrot.slane %v843, %v846
        %v848 = vmul.f32 %v810, %v847
        %v849 = vmul.f32 %v811, %v847
        %v850 = vmul.f32 %v812, %v847
        %v851 = vmul.f32 %v813, %v847
        %v852 = vmul.f32 %v814, %v847
        %v853 = vmul.f32 %v815, %v847
        %v854 = vmul.f32 %v816, %v847
        %v855 = vmul.f32 %v817, %v847
        %v856 = vmul.f32 %v818, %v847
        %v857 = vmul.f32 %v819, %v847
        %v858 = vmul.f32 %v820, %v847
        %v859 = vmul.f32 %v821, %v847
        %v860 = vmul.f32 %v822, %v847
        %v861 = vmul.f32 %v823, %v847
        %v862 = vmul.f32 %v824, %v847
        %v863 = vmul.f32 %v825, %v847
        %v864 = vmul.f32 %v826, %v847
        %v865 = vmul.f32 %v827, %v847
        %v866 = vmul.f32 %v828, %v847
        %v867 = vmul.f32 %v829, %v847
        %v868 = vmul.f32 %v830, %v847
        %v869 = vmul.f32 %v831, %v847
        %v870 = vmul.f32 %v832, %v847
        %v871 = vmul.f32 %v833, %v847
        %v872 = vmul.f32 %v834, %v847
        %v873 = vmul.f32 %v835, %v847
        %v874 = vmul.f32 %v836, %v847
        %v875 = vmul.f32 %v837, %v847
        %v876 = vmul.f32 %v838, %v847
        %v877 = vmul.f32 %v839, %v847
        %v878 = vmul.f32 %v840, %v847
        %v879 = vmul.f32 %v841, %v847
        %v880 = vld [vmem:[%s2] sm:$0xff]
        %v881 = vld [vmem:[%s2 + $0x8] sm:$0xff]
        %v882 = vld [vmem:[%s2 + $0x10] sm:$0xff]
        %v883 = vld [vmem:[%s2 + $0x18] sm:$0xff]
        %s884 = scalar_lea.vmem %s2, 32
        %v885 = vld [vmem:[%s884] sm:$0xff]
        %v886 = vld [vmem:[%s884 + $0x8] sm:$0xff]
        %v887 = vld [vmem:[%s884 + $0x10] sm:$0xff]
        %v888 = vld [vmem:[%s884 + $0x18] sm:$0xff]
        %s889 = scalar_lea.vmem %s2, 64
        %v890 = vld [vmem:[%s889] sm:$0xff]
        %v891 = vld [vmem:[%s889 + $0x8] sm:$0xff]
        %v892 = vld [vmem:[%s889 + $0x10] sm:$0xff]
        %v893 = vld [vmem:[%s889 + $0x18] sm:$0xff]
        %v894 = vld [vmem:[%s3] sm:$0x1]
        %s895 = scalar_lea.vmem %s3, 1
        %v896 = vld [vmem:[%s895] sm:$0x1]
        %s897 = scalar_lea.vmem %s3, 2
        %v898 = vld [vmem:[%s897] sm:$0x1]
        %v900 = vlaneseq
        %v901 = vshrl.u32 %v900, 7
        %v902 = vsub.s32 0, %v901
        %v903 = vrot.slane %v894, %v902
        %v906 = vsel %vm326, %v848, 0
        %v909 = vsel %vm326, %v849, 0
        %v912 = vsel %vm326, %v850, 0
        %v915 = vsel %vm326, %v851, 0
        %v918 = vsel %vm326, %v852, 0
        %v921 = vsel %vm326, %v853, 0
        %v924 = vsel %vm326, %v854, 0
        %v927 = vsel %vm326, %v855, 0
        %v930 = vsel %vm326, %v856, 0
        %v933 = vsel %vm326, %v857, 0
        %v936 = vsel %vm326, %v858, 0
        %v939 = vsel %vm326, %v859, 0
        %v942 = vsel %vm326, %v860, 0
        %v945 = vsel %vm326, %v861, 0
        %v948 = vsel %vm326, %v862, 0
        %v951 = vsel %vm326, %v863, 0
        %v954 = vsel %vm326, %v864, 0
        %v957 = vsel %vm326, %v865, 0
        %v960 = vsel %vm326, %v866, 0
        %v963 = vsel %vm326, %v867, 0
        %v966 = vsel %vm326, %v868, 0
        %v969 = vsel %vm326, %v869, 0
        %v972 = vsel %vm326, %v870, 0
        %v975 = vsel %vm326, %v871, 0
        %v978 = vsel %vm326, %v872, 0
        %v981 = vsel %vm326, %v873, 0
        %v984 = vsel %vm326, %v874, 0
        %v987 = vsel %vm326, %v875, 0
        %v990 = vsel %vm326, %v876, 0
        %v993 = vsel %vm326, %v877, 0
        %v996 = vsel %vm326, %v878, 0
        %v999 = vsel %vm326, %v879, 0
        %1001 = vmatprep.subr.mxu0 0.0
        %1002 = vmatpush1.msra.mxu0 %v880
        %1003 = vmatprep.subr.mxu0 0.0
        %1004 = vmatpush1.msra.mxu0 %v881
        %1005 = vmatprep.subr.mxu0 0.0
        %1006 = vmatpush1.msra.mxu0 %v882
        %1007 = vmatprep.subr.mxu0 0.0
        %1008 = vmatpush1.msra.mxu0 %v883
        %1009 = vmatprep.subr.mxu0 0.0
        %1010 = vmatpush1.msra.mxu0 0.0
        %1011 = vmatprep.subr.mxu0 0.0
        %1012 = vmatpush1.msra.mxu0 0.0
        %1013 = vmatprep.subr.mxu0 0.0
        %1014 = vmatpush1.msra.mxu0 0.0
        %1015 = vmatprep.subr.mxu0 0.0
        %1016 = vmatpush1.msra.mxu0 0.0
        %1017 = vmatprep.subr.mxu0 0.0
        %1018 = vmatpush1.msra.mxu0 0.0
        %1019 = vmatprep.subr.mxu0 0.0
        %1020 = vmatpush1.msra.mxu0 0.0
        %1021 = vmatprep.subr.mxu0 0.0
        %1022 = vmatpush1.msra.mxu0 0.0
        %1023 = vmatprep.subr.mxu0 0.0
        %1024 = vmatpush1.msra.mxu0 0.0
        %1025 = vmatprep.subr.mxu0 0.0
        %1026 = vmatpush1.msra.mxu0 0.0
        %1027 = vmatprep.subr.mxu0 0.0
        %1028 = vmatpush1.msra.mxu0 0.0
        %1029 = vmatprep.subr.mxu0 0.0
        %1030 = vmatpush1.msra.mxu0 0.0
        %1031 = vmatprep.subr.mxu0 0.0
        %1032 = vmatpush1.msra.mxu0 0.0
        %1033 = vmatprep.subr.mxu0 0.0
        %1034 = vmatpush1.msra.mxu0 0.0
        %1035 = vmatprep.subr.mxu0 0.0
        %1036 = vmatpush1.msra.mxu0 0.0
        %1037 = vmatprep.subr.mxu0 0.0
        %1038 = vmatpush1.msra.mxu0 0.0
        %1039 = vmatprep.subr.mxu0 0.0
        %1040 = vmatpush1.msra.mxu0 0.0
        %1041 = vmatprep.subr.mxu0 0.0
        %1042 = vmatpush1.msra.mxu0 0.0
        %1043 = vmatprep.subr.mxu0 0.0
        %1044 = vmatpush1.msra.mxu0 0.0
        %1045 = vmatprep.subr.mxu0 0.0
        %1046 = vmatpush1.msra.mxu0 0.0
        %1047 = vmatprep.subr.mxu0 0.0
        %1048 = vmatpush1.msra.mxu0 0.0
        %1049 = vmatprep.subr.mxu0 0.0
        %1050 = vmatpush1.msra.mxu0 0.0
        %1051 = vmatprep.subr.mxu0 0.0
        %1052 = vmatpush1.msra.mxu0 0.0
        %1053 = vmatprep.subr.mxu0 0.0
        %1054 = vmatpush1.msra.mxu0 0.0
        %1055 = vmatprep.subr.mxu0 0.0
        %1056 = vmatpush1.msra.mxu0 0.0
        %1057 = vmatprep.subr.mxu0 0.0
        %1058 = vmatpush1.msra.mxu0 0.0
        %1059 = vmatprep.subr.mxu0 0.0
        %1060 = vmatpush1.msra.mxu0 0.0
        %1061 = vmatprep.subr.mxu0 0.0
        %1062 = vmatpush1.msra.mxu0 0.0
        %1063 = vmatprep.subr.mxu0 0.0
        %1064 = vmatpush1.msra.mxu0 0.0
        %1065 = vmatprep.mubr.f32.mxu0 0.0
        %1066 = vmatmul.mubr.f32.gmra.mrb[0].mxu0 %v906
        %v1067 = vpop.f32.mrb[0].mxu0
        %v1068 = vadd.f32 %v903, %v1067
        %v1069 = vpop.f32.mrb[0].mxu0
        %1070 = vmatprep.mubr.f32.mxu0 0.0
        %1071 = vmatmul.mubr.f32.gmra.mrb[0].mxu0 %v909
        %v1072 = vpop.f32.mrb[0].mxu0
        %v1073 = vadd.f32 %v903, %v1072
        %v1074 = vpop.f32.mrb[0].mxu0
        %1075 = vmatprep.mubr.f32.mxu0 0.0
        %1076 = vmatmul.mubr.f32.gmra.mrb[0].mxu0 %v912
        %v1077 = vpop.f32.mrb[0].mxu0
        %v1078 = vadd.f32 %v903, %v1077
        %v1079 = vpop.f32.mrb[0].mxu0
        %1080 = vmatprep.mubr.f32.mxu0 0.0
        %1081 = vmatmul.mubr.f32.gmra.mrb[0].mxu0 %v915
        %v1082 = vpop.f32.mrb[0].mxu0
        %v1083 = vadd.f32 %v903, %v1082
        %v1084 = vpop.f32.mrb[0].mxu0
        %1085 = vmatprep.mubr.f32.mxu0 0.0
        %1086 = vmatmul.mubr.f32.gmra.mrb[0].mxu0 %v918
        %v1087 = vpop.f32.mrb[0].mxu0
        %v1088 = vadd.f32 %v903, %v1087
        %v1089 = vpop.f32.mrb[0].mxu0
        %1090 = vmatprep.mubr.f32.mxu0 0.0
        %1091 = vmatmul.mubr.f32.gmra.mrb[0].mxu0 %v921
        %v1092 = vpop.f32.mrb[0].mxu0
        %v1093 = vadd.f32 %v903, %v1092
        %v1094 = vpop.f32.mrb[0].mxu0
        %1095 = vmatprep.mubr.f32.mxu0 0.0
        %1096 = vmatmul.mubr.f32.gmra.mrb[0].mxu0 %v924
        %v1097 = vpop.f32.mrb[0].mxu0
        %v1098 = vadd.f32 %v903, %v1097
        %v1099 = vpop.f32.mrb[0].mxu0
        %1100 = vmatprep.mubr.f32.mxu0 0.0
        %1101 = vmatmul.mubr.f32.gmra.mrb[0].mxu0 %v927
        %v1102 = vpop.f32.mrb[0].mxu0
        %v1103 = vadd.f32 %v903, %v1102
        %v1104 = vpop.f32.mrb[0].mxu0
        %1105 = vmatprep.mubr.f32.mxu0 0.0
        %1106 = vmatmul.mubr.f32.gmra.mrb[0].mxu0 %v930
        %v1107 = vpop.f32.mrb[0].mxu0
        %v1108 = vadd.f32 %v903, %v1107
        %v1109 = vpop.f32.mrb[0].mxu0
        %1110 = vmatprep.mubr.f32.mxu0 0.0
        %1111 = vmatmul.mubr.f32.gmra.mrb[0].mxu0 %v933
        %v1112 = vpop.f32.mrb[0].mxu0
        %v1113 = vadd.f32 %v903, %v1112
        %v1114 = vpop.f32.mrb[0].mxu0
        %1115 = vmatprep.mubr.f32.mxu0 0.0
        %1116 = vmatmul.mubr.f32.gmra.mrb[0].mxu0 %v936
        %v1117 = vpop.f32.mrb[0].mxu0
        %v1118 = vadd.f32 %v903, %v1117
        %v1119 = vpop.f32.mrb[0].mxu0
        %1120 = vmatprep.mubr.f32.mxu0 0.0
        %1121 = vmatmul.mubr.f32.gmra.mrb[0].mxu0 %v939
        %v1122 = vpop.f32.mrb[0].mxu0
        %v1123 = vadd.f32 %v903, %v1122
        %v1124 = vpop.f32.mrb[0].mxu0
        %1125 = vmatprep.mubr.f32.mxu0 0.0
        %1126 = vmatmul.mubr.f32.gmra.mrb[0].mxu0 %v942
        %v1127 = vpop.f32.mrb[0].mxu0
        %v1128 = vadd.f32 %v903, %v1127
        %v1129 = vpop.f32.mrb[0].mxu0
        %1130 = vmatprep.mubr.f32.mxu0 0.0
        %1131 = vmatmul.mubr.f32.gmra.mrb[0].mxu0 %v945
        %v1132 = vpop.f32.mrb[0].mxu0
        %v1133 = vadd.f32 %v903, %v1132
        %v1134 = vpop.f32.mrb[0].mxu0
        %1135 = vmatprep.mubr.f32.mxu0 0.0
        %1136 = vmatmul.mubr.f32.gmra.mrb[0].mxu0 %v948
        %v1137 = vpop.f32.mrb[0].mxu0
        %v1138 = vadd.f32 %v903, %v1137
        %v1139 = vpop.f32.mrb[0].mxu0
        %1140 = vmatprep.mubr.f32.mxu0 0.0
        %1141 = vmatmul.mubr.f32.gmra.mrb[0].mxu0 %v951
        %v1142 = vpop.f32.mrb[0].mxu0
        %v1143 = vadd.f32 %v903, %v1142
        %v1144 = vpop.f32.mrb[0].mxu0
        %1145 = vmatprep.mubr.f32.mxu0 0.0
        %1146 = vmatmul.mubr.f32.gmra.mrb[0].mxu0 %v954
        %v1147 = vpop.f32.mrb[0].mxu0
        %v1148 = vadd.f32 %v903, %v1147
        %v1149 = vpop.f32.mrb[0].mxu0
        %1150 = vmatprep.mubr.f32.mxu0 0.0
        %1151 = vmatmul.mubr.f32.gmra.mrb[0].mxu0 %v957
        %v1152 = vpop.f32.mrb[0].mxu0
        %v1153 = vadd.f32 %v903, %v1152
        %v1154 = vpop.f32.mrb[0].mxu0
        %1155 = vmatprep.mubr.f32.mxu0 0.0
        %1156 = vmatmul.mubr.f32.gmra.mrb[0].mxu0 %v960
        %v1157 = vpop.f32.mrb[0].mxu0
        %v1158 = vadd.f32 %v903, %v1157
        %v1159 = vpop.f32.mrb[0].mxu0
        %1160 = vmatprep.mubr.f32.mxu0 0.0
        %1161 = vmatmul.mubr.f32.gmra.mrb[0].mxu0 %v963
        %v1162 = vpop.f32.mrb[0].mxu0
        %v1163 = vadd.f32 %v903, %v1162
        %v1164 = vpop.f32.mrb[0].mxu0
        %1165 = vmatprep.mubr.f32.mxu0 0.0
        %1166 = vmatmul.mubr.f32.gmra.mrb[0].mxu0 %v966
        %v1167 = vpop.f32.mrb[0].mxu0
        %v1168 = vadd.f32 %v903, %v1167
        %v1169 = vpop.f32.mrb[0].mxu0
        %1170 = vmatprep.mubr.f32.mxu0 0.0
        %1171 = vmatmul.mubr.f32.gmra.mrb[0].mxu0 %v969
        %v1172 = vpop.f32.mrb[0].mxu0
        %v1173 = vadd.f32 %v903, %v1172
        %v1174 = vpop.f32.mrb[0].mxu0
        %1175 = vmatprep.mubr.f32.mxu0 0.0
        %1176 = vmatmul.mubr.f32.gmra.mrb[0].mxu0 %v972
        %v1177 = vpop.f32.mrb[0].mxu0
        %v1178 = vadd.f32 %v903, %v1177
        %v1179 = vpop.f32.mrb[0].mxu0
        %1180 = vmatprep.mubr.f32.mxu0 0.0
        %1181 = vmatmul.mubr.f32.gmra.mrb[0].mxu0 %v975
        %v1182 = vpop.f32.mrb[0].mxu0
        %v1183 = vadd.f32 %v903, %v1182
        %v1184 = vpop.f32.mrb[0].mxu0
        %1185 = vmatprep.mubr.f32.mxu0 0.0
        %1186 = vmatmul.mubr.f32.gmra.mrb[0].mxu0 %v978
        %v1187 = vpop.f32.mrb[0].mxu0
        %v1188 = vadd.f32 %v903, %v1187
        %v1189 = vpop.f32.mrb[0].mxu0
        %1190 = vmatprep.mubr.f32.mxu0 0.0
        %1191 = vmatmul.mubr.f32.gmra.mrb[0].mxu0 %v981
        %v1192 = vpop.f32.mrb[0].mxu0
        %v1193 = vadd.f32 %v903, %v1192
        %v1194 = vpop.f32.mrb[0].mxu0
        %1195 = vmatprep.mubr.f32.mxu0 0.0
        %1196 = vmatmul.mubr.f32.gmra.mrb[0].mxu0 %v984
        %v1197 = vpop.f32.mrb[0].mxu0
        %v1198 = vadd.f32 %v903, %v1197
        %v1199 = vpop.f32.mrb[0].mxu0
        %1200 = vmatprep.mubr.f32.mxu0 0.0
        %1201 = vmatmul.mubr.f32.gmra.mrb[0].mxu0 %v987
        %v1202 = vpop.f32.mrb[0].mxu0
        %v1203 = vadd.f32 %v903, %v1202
        %v1204 = vpop.f32.mrb[0].mxu0
        %1205 = vmatprep.mubr.f32.mxu0 0.0
        %1206 = vmatmul.mubr.f32.gmra.mrb[0].mxu0 %v990
        %v1207 = vpop.f32.mrb[0].mxu0
        %v1208 = vadd.f32 %v903, %v1207
        %v1209 = vpop.f32.mrb[0].mxu0
        %1210 = vmatprep.mubr.f32.mxu0 0.0
        %1211 = vmatmul.mubr.f32.gmra.mrb[0].mxu0 %v993
        %v1212 = vpop.f32.mrb[0].mxu0
        %v1213 = vadd.f32 %v903, %v1212
        %v1214 = vpop.f32.mrb[0].mxu0
        %1215 = vmatprep.mubr.f32.mxu0 0.0
        %1216 = vmatmul.mubr.f32.gmra.mrb[0].mxu0 %v996
        %v1217 = vpop.f32.mrb[0].mxu0
        %v1218 = vadd.f32 %v903, %v1217
        %v1219 = vpop.f32.mrb[0].mxu0
        %1220 = vmatprep.mubr.f32.mxu0 0.0
        %1221 = vmatmul.mubr.f32.gmra.mrb[0].mxu0 %v999
        %v1222 = vpop.f32.mrb[0].mxu0
        %v1223 = vadd.f32 %v903, %v1222
        %v1224 = vpop.f32.mrb[0].mxu0
        %1225 = vdwg.mxu0
        %v1227 = vlaneseq
        %v1228 = vshrl.u32 %v1227, 7
        %v1229 = vsub.s32 0, %v1228
        %v1230 = vrot.slane %v896, %v1229
        %1232 = vmatprep.subr.mxu0 0.0
        %1233 = vmatpush1.msra.mxu0 %v885
        %1234 = vmatprep.subr.mxu0 0.0
        %1235 = vmatpush1.msra.mxu0 %v886
        %1236 = vmatprep.subr.mxu0 0.0
        %1237 = vmatpush1.msra.mxu0 %v887
        %1238 = vmatprep.subr.mxu0 0.0
        %1239 = vmatpush1.msra.mxu0 %v888
        %1240 = vmatprep.subr.mxu0 0.0
        %1241 = vmatpush1.msra.mxu0 0.0
        %1242 = vmatprep.subr.mxu0 0.0
        %1243 = vmatpush1.msra.mxu0 0.0
        %1244 = vmatprep.subr.mxu0 0.0
        %1245 = vmatpush1.msra.mxu0 0.0
        %1246 = vmatprep.subr.mxu0 0.0
        %1247 = vmatpush1.msra.mxu0 0.0
        %1248 = vmatprep.subr.mxu0 0.0
        %1249 = vmatpush1.msra.mxu0 0.0
        %1250 = vmatprep.subr.mxu0 0.0
        %1251 = vmatpush1.msra.mxu0 0.0
        %1252 = vmatprep.subr.mxu0 0.0
        %1253 = vmatpush1.msra.mxu0 0.0
        %1254 = vmatprep.subr.mxu0 0.0
        %1255 = vmatpush1.msra.mxu0 0.0
        %1256 = vmatprep.subr.mxu0 0.0
        %1257 = vmatpush1.msra.mxu0 0.0
        %1258 = vmatprep.subr.mxu0 0.0
        %1259 = vmatpush1.msra.mxu0 0.0
        %1260 = vmatprep.subr.mxu0 0.0
        %1261 = vmatpush1.msra.mxu0 0.0
        %1262 = vmatprep.subr.mxu0 0.0
        %1263 = vmatpush1.msra.mxu0 0.0
        %1264 = vmatprep.subr.mxu0 0.0
        %1265 = vmatpush1.msra.mxu0 0.0
        %1266 = vmatprep.subr.mxu0 0.0
        %1267 = vmatpush1.msra.mxu0 0.0
        %1268 = vmatprep.subr.mxu0 0.0
        %1269 = vmatpush1.msra.mxu0 0.0
        %1270 = vmatprep.subr.mxu0 0.0
        %1271 = vmatpush1.msra.mxu0 0.0
        %1272 = vmatprep.subr.mxu0 0.0
        %1273 = vmatpush1.msra.mxu0 0.0
        %1274 = vmatprep.subr.mxu0 0.0
        %1275 = vmatpush1.msra.mxu0 0.0
        %1276 = vmatprep.subr.mxu0 0.0
        %1277 = vmatpush1.msra.mxu0 0.0
        %1278 = vmatprep.subr.mxu0 0.0
        %1279 = vmatpush1.msra.mxu0 0.0
        %1280 = vmatprep.subr.mxu0 0.0
        %1281 = vmatpush1.msra.mxu0 0.0
        %1282 = vmatprep.subr.mxu0 0.0
        %1283 = vmatpush1.msra.mxu0 0.0
        %1284 = vmatprep.subr.mxu0 0.0
        %1285 = vmatpush1.msra.mxu0 0.0
        %1286 = vmatprep.subr.mxu0 0.0
        %1287 = vmatpush1.msra.mxu0 0.0
        %1288 = vmatprep.subr.mxu0 0.0
        %1289 = vmatpush1.msra.mxu0 0.0
        %1290 = vmatprep.subr.mxu0 0.0
        %1291 = vmatpush1.msra.mxu0 0.0
        %1292 = vmatprep.subr.mxu0 0.0
        %1293 = vmatpush1.msra.mxu0 0.0
        %1294 = vmatprep.subr.mxu0 0.0
        %1295 = vmatpush1.msra.mxu0 0.0
        %1296 = vmatprep.mubr.f32.mxu0 0.0
        %1297 = vmatmul.mubr.f32.gmra.mrb[0].mxu0 %v906
        %v1298 = vpop.f32.mrb[0].mxu0
        %v1299 = vadd.f32 %v1230, %v1298
        %v1300 = vpop.f32.mrb[0].mxu0
        %1301 = vmatprep.mubr.f32.mxu0 0.0
        %1302 = vmatmul.mubr.f32.gmra.mrb[0].mxu0 %v909
        %v1303 = vpop.f32.mrb[0].mxu0
        %v1304 = vadd.f32 %v1230, %v1303
        %v1305 = vpop.f32.mrb[0].mxu0
        %1306 = vmatprep.mubr.f32.mxu0 0.0
        %1307 = vmatmul.mubr.f32.gmra.mrb[0].mxu0 %v912
        %v1308 = vpop.f32.mrb[0].mxu0
        %v1309 = vadd.f32 %v1230, %v1308
        %v1310 = vpop.f32.mrb[0].mxu0
        %1311 = vmatprep.mubr.f32.mxu0 0.0
        %1312 = vmatmul.mubr.f32.gmra.mrb[0].mxu0 %v915
        %v1313 = vpop.f32.mrb[0].mxu0
        %v1314 = vadd.f32 %v1230, %v1313
        %v1315 = vpop.f32.mrb[0].mxu0
        %1316 = vmatprep.mubr.f32.mxu0 0.0
        %1317 = vmatmul.mubr.f32.gmra.mrb[0].mxu0 %v918
        %v1318 = vpop.f32.mrb[0].mxu0
        %v1319 = vadd.f32 %v1230, %v1318
        %v1320 = vpop.f32.mrb[0].mxu0
        %1321 = vmatprep.mubr.f32.mxu0 0.0
        %1322 = vmatmul.mubr.f32.gmra.mrb[0].mxu0 %v921
        %v1323 = vpop.f32.mrb[0].mxu0
        %v1324 = vadd.f32 %v1230, %v1323
        %v1325 = vpop.f32.mrb[0].mxu0
        %1326 = vmatprep.mubr.f32.mxu0 0.0
        %1327 = vmatmul.mubr.f32.gmra.mrb[0].mxu0 %v924
        %v1328 = vpop.f32.mrb[0].mxu0
        %v1329 = vadd.f32 %v1230, %v1328
        %v1330 = vpop.f32.mrb[0].mxu0
        %1331 = vmatprep.mubr.f32.mxu0 0.0
        %1332 = vmatmul.mubr.f32.gmra.mrb[0].mxu0 %v927
        %v1333 = vpop.f32.mrb[0].mxu0
        %v1334 = vadd.f32 %v1230, %v1333
        %v1335 = vpop.f32.mrb[0].mxu0
        %1336 = vmatprep.mubr.f32.mxu0 0.0
        %1337 = vmatmul.mubr.f32.gmra.mrb[0].mxu0 %v930
        %v1338 = vpop.f32.mrb[0].mxu0
        %v1339 = vadd.f32 %v1230, %v1338
        %v1340 = vpop.f32.mrb[0].mxu0
        %1341 = vmatprep.mubr.f32.mxu0 0.0
        %1342 = vmatmul.mubr.f32.gmra.mrb[0].mxu0 %v933
        %v1343 = vpop.f32.mrb[0].mxu0
        %v1344 = vadd.f32 %v1230, %v1343
        %v1345 = vpop.f32.mrb[0].mxu0
        %1346 = vmatprep.mubr.f32.mxu0 0.0
        %1347 = vmatmul.mubr.f32.gmra.mrb[0].mxu0 %v936
        %v1348 = vpop.f32.mrb[0].mxu0
        %v1349 = vadd.f32 %v1230, %v1348
        %v1350 = vpop.f32.mrb[0].mxu0
        %1351 = vmatprep.mubr.f32.mxu0 0.0
        %1352 = vmatmul.mubr.f32.gmra.mrb[0].mxu0 %v939
        %v1353 = vpop.f32.mrb[0].mxu0
        %v1354 = vadd.f32 %v1230, %v1353
        %v1355 = vpop.f32.mrb[0].mxu0
        %1356 = vmatprep.mubr.f32.mxu0 0.0
        %1357 = vmatmul.mubr.f32.gmra.mrb[0].mxu0 %v942
        %v1358 = vpop.f32.mrb[0].mxu0
        %v1359 = vadd.f32 %v1230, %v1358
        %v1360 = vpop.f32.mrb[0].mxu0
        %1361 = vmatprep.mubr.f32.mxu0 0.0
        %1362 = vmatmul.mubr.f32.gmra.mrb[0].mxu0 %v945
        %v1363 = vpop.f32.mrb[0].mxu0
        %v1364 = vadd.f32 %v1230, %v1363
        %v1365 = vpop.f32.mrb[0].mxu0
        %1366 = vmatprep.mubr.f32.mxu0 0.0
        %1367 = vmatmul.mubr.f32.gmra.mrb[0].mxu0 %v948
        %v1368 = vpop.f32.mrb[0].mxu0
        %v1369 = vadd.f32 %v1230, %v1368
        %v1370 = vpop.f32.mrb[0].mxu0
        %1371 = vmatprep.mubr.f32.mxu0 0.0
        %1372 = vmatmul.mubr.f32.gmra.mrb[0].mxu0 %v951
        %v1373 = vpop.f32.mrb[0].mxu0
        %v1374 = vadd.f32 %v1230, %v1373
        %v1375 = vpop.f32.mrb[0].mxu0
        %1376 = vmatprep.mubr.f32.mxu0 0.0
        %1377 = vmatmul.mubr.f32.gmra.mrb[0].mxu0 %v954
        %v1378 = vpop.f32.mrb[0].mxu0
        %v1379 = vadd.f32 %v1230, %v1378
        %v1380 = vpop.f32.mrb[0].mxu0
        %1381 = vmatprep.mubr.f32.mxu0 0.0
        %1382 = vmatmul.mubr.f32.gmra.mrb[0].mxu0 %v957
        %v1383 = vpop.f32.mrb[0].mxu0
        %v1384 = vadd.f32 %v1230, %v1383
        %v1385 = vpop.f32.mrb[0].mxu0
        %1386 = vmatprep.mubr.f32.mxu0 0.0
        %1387 = vmatmul.mubr.f32.gmra.mrb[0].mxu0 %v960
        %v1388 = vpop.f32.mrb[0].mxu0
        %v1389 = vadd.f32 %v1230, %v1388
        %v1390 = vpop.f32.mrb[0].mxu0
        %1391 = vmatprep.mubr.f32.mxu0 0.0
        %1392 = vmatmul.mubr.f32.gmra.mrb[0].mxu0 %v963
        %v1393 = vpop.f32.mrb[0].mxu0
        %v1394 = vadd.f32 %v1230, %v1393
        %v1395 = vpop.f32.mrb[0].mxu0
        %1396 = vmatprep.mubr.f32.mxu0 0.0
        %1397 = vmatmul.mubr.f32.gmra.mrb[0].mxu0 %v966
        %v1398 = vpop.f32.mrb[0].mxu0
        %v1399 = vadd.f32 %v1230, %v1398
        %v1400 = vpop.f32.mrb[0].mxu0
        %1401 = vmatprep.mubr.f32.mxu0 0.0
        %1402 = vmatmul.mubr.f32.gmra.mrb[0].mxu0 %v969
        %v1403 = vpop.f32.mrb[0].mxu0
        %v1404 = vadd.f32 %v1230, %v1403
        %v1405 = vpop.f32.mrb[0].mxu0
        %1406 = vmatprep.mubr.f32.mxu0 0.0
        %1407 = vmatmul.mubr.f32.gmra.mrb[0].mxu0 %v972
        %v1408 = vpop.f32.mrb[0].mxu0
        %v1409 = vadd.f32 %v1230, %v1408
        %v1410 = vpop.f32.mrb[0].mxu0
        %1411 = vmatprep.mubr.f32.mxu0 0.0
        %1412 = vmatmul.mubr.f32.gmra.mrb[0].mxu0 %v975
        %v1413 = vpop.f32.mrb[0].mxu0
        %v1414 = vadd.f32 %v1230, %v1413
        %v1415 = vpop.f32.mrb[0].mxu0
        %1416 = vmatprep.mubr.f32.mxu0 0.0
        %1417 = vmatmul.mubr.f32.gmra.mrb[0].mxu0 %v978
        %v1418 = vpop.f32.mrb[0].mxu0
        %v1419 = vadd.f32 %v1230, %v1418
        %v1420 = vpop.f32.mrb[0].mxu0
        %1421 = vmatprep.mubr.f32.mxu0 0.0
        %1422 = vmatmul.mubr.f32.gmra.mrb[0].mxu0 %v981
        %v1423 = vpop.f32.mrb[0].mxu0
        %v1424 = vadd.f32 %v1230, %v1423
        %v1425 = vpop.f32.mrb[0].mxu0
        %1426 = vmatprep.mubr.f32.mxu0 0.0
        %1427 = vmatmul.mubr.f32.gmra.mrb[0].mxu0 %v984
        %v1428 = vpop.f32.mrb[0].mxu0
        %v1429 = vadd.f32 %v1230, %v1428
        %v1430 = vpop.f32.mrb[0].mxu0
        %1431 = vmatprep.mubr.f32.mxu0 0.0
        %1432 = vmatmul.mubr.f32.gmra.mrb[0].mxu0 %v987
        %v1433 = vpop.f32.mrb[0].mxu0
        %v1434 = vadd.f32 %v1230, %v1433
        %v1435 = vpop.f32.mrb[0].mxu0
        %1436 = vmatprep.mubr.f32.mxu0 0.0
        %1437 = vmatmul.mubr.f32.gmra.mrb[0].mxu0 %v990
        %v1438 = vpop.f32.mrb[0].mxu0
        %v1439 = vadd.f32 %v1230, %v1438
        %v1440 = vpop.f32.mrb[0].mxu0
        %1441 = vmatprep.mubr.f32.mxu0 0.0
        %1442 = vmatmul.mubr.f32.gmra.mrb[0].mxu0 %v993
        %v1443 = vpop.f32.mrb[0].mxu0
        %v1444 = vadd.f32 %v1230, %v1443
        %v1445 = vpop.f32.mrb[0].mxu0
        %1446 = vmatprep.mubr.f32.mxu0 0.0
        %1447 = vmatmul.mubr.f32.gmra.mrb[0].mxu0 %v996
        %v1448 = vpop.f32.mrb[0].mxu0
        %v1449 = vadd.f32 %v1230, %v1448
        %v1450 = vpop.f32.mrb[0].mxu0
        %1451 = vmatprep.mubr.f32.mxu0 0.0
        %1452 = vmatmul.mubr.f32.gmra.mrb[0].mxu0 %v999
        %v1453 = vpop.f32.mrb[0].mxu0
        %v1454 = vadd.f32 %v1230, %v1453
        %v1455 = vpop.f32.mrb[0].mxu0
        %1456 = vdwg.mxu0
        %v1458 = vlaneseq
        %v1459 = vshrl.u32 %v1458, 7
        %v1460 = vsub.s32 0, %v1459
        %v1461 = vrot.slane %v898, %v1460
        %1463 = vmatprep.subr.mxu0 0.0
        %1464 = vmatpush1.msra.mxu0 %v890
        %1465 = vmatprep.subr.mxu0 0.0
        %1466 = vmatpush1.msra.mxu0 %v891
        %1467 = vmatprep.subr.mxu0 0.0
        %1468 = vmatpush1.msra.mxu0 %v892
        %1469 = vmatprep.subr.mxu0 0.0
        %1470 = vmatpush1.msra.mxu0 %v893
        %1471 = vmatprep.subr.mxu0 0.0
        %1472 = vmatpush1.msra.mxu0 0.0
        %1473 = vmatprep.subr.mxu0 0.0
        %1474 = vmatpush1.msra.mxu0 0.0
        %1475 = vmatprep.subr.mxu0 0.0
        %1476 = vmatpush1.msra.mxu0 0.0
        %1477 = vmatprep.subr.mxu0 0.0
        %1478 = vmatpush1.msra.mxu0 0.0
        %1479 = vmatprep.subr.mxu0 0.0
        %1480 = vmatpush1.msra.mxu0 0.0
        %1481 = vmatprep.subr.mxu0 0.0
        %1482 = vmatpush1.msra.mxu0 0.0
        %1483 = vmatprep.subr.mxu0 0.0
        %1484 = vmatpush1.msra.mxu0 0.0
        %1485 = vmatprep.subr.mxu0 0.0
        %1486 = vmatpush1.msra.mxu0 0.0
        %1487 = vmatprep.subr.mxu0 0.0
        %1488 = vmatpush1.msra.mxu0 0.0
        %1489 = vmatprep.subr.mxu0 0.0
        %1490 = vmatpush1.msra.mxu0 0.0
        %1491 = vmatprep.subr.mxu0 0.0
        %1492 = vmatpush1.msra.mxu0 0.0
        %1493 = vmatprep.subr.mxu0 0.0
        %1494 = vmatpush1.msra.mxu0 0.0
        %1495 = vmatprep.subr.mxu0 0.0
        %1496 = vmatpush1.msra.mxu0 0.0
        %1497 = vmatprep.subr.mxu0 0.0
        %1498 = vmatpush1.msra.mxu0 0.0
        %1499 = vmatprep.subr.mxu0 0.0
        %1500 = vmatpush1.msra.mxu0 0.0
        %1501 = vmatprep.subr.mxu0 0.0
        %1502 = vmatpush1.msra.mxu0 0.0
        %1503 = vmatprep.subr.mxu0 0.0
        %1504 = vmatpush1.msra.mxu0 0.0
        %1505 = vmatprep.subr.mxu0 0.0
        %1506 = vmatpush1.msra.mxu0 0.0
        %1507 = vmatprep.subr.mxu0 0.0
        %1508 = vmatpush1.msra.mxu0 0.0
        %1509 = vmatprep.subr.mxu0 0.0
        %1510 = vmatpush1.msra.mxu0 0.0
        %1511 = vmatprep.subr.mxu0 0.0
        %1512 = vmatpush1.msra.mxu0 0.0
        %1513 = vmatprep.subr.mxu0 0.0
        %1514 = vmatpush1.msra.mxu0 0.0
        %1515 = vmatprep.subr.mxu0 0.0
        %1516 = vmatpush1.msra.mxu0 0.0
        %1517 = vmatprep.subr.mxu0 0.0
        %1518 = vmatpush1.msra.mxu0 0.0
        %1519 = vmatprep.subr.mxu0 0.0
        %1520 = vmatpush1.msra.mxu0 0.0
        %1521 = vmatprep.subr.mxu0 0.0
        %1522 = vmatpush1.msra.mxu0 0.0
        %1523 = vmatprep.subr.mxu0 0.0
        %1524 = vmatpush1.msra.mxu0 0.0
        %1525 = vmatprep.subr.mxu0 0.0
        %1526 = vmatpush1.msra.mxu0 0.0
        %1527 = vmatprep.mubr.f32.mxu0 0.0
        %1528 = vmatmul.mubr.f32.gmra.mrb[0].mxu0 %v906
        %v1529 = vpop.f32.mrb[0].mxu0
        %v1530 = vadd.f32 %v1461, %v1529
        %v1531 = vpop.f32.mrb[0].mxu0
        %1532 = vmatprep.mubr.f32.mxu0 0.0
        %1533 = vmatmul.mubr.f32.gmra.mrb[0].mxu0 %v909
        %v1534 = vpop.f32.mrb[0].mxu0
        %v1535 = vadd.f32 %v1461, %v1534
        %v1536 = vpop.f32.mrb[0].mxu0
        %1537 = vmatprep.mubr.f32.mxu0 0.0
        %1538 = vmatmul.mubr.f32.gmra.mrb[0].mxu0 %v912
        %v1539 = vpop.f32.mrb[0].mxu0
        %v1540 = vadd.f32 %v1461, %v1539
        %v1541 = vpop.f32.mrb[0].mxu0
        %1542 = vmatprep.mubr.f32.mxu0 0.0
        %1543 = vmatmul.mubr.f32.gmra.mrb[0].mxu0 %v915
        %v1544 = vpop.f32.mrb[0].mxu0
        %v1545 = vadd.f32 %v1461, %v1544
        %v1546 = vpop.f32.mrb[0].mxu0
        %1547 = vmatprep.mubr.f32.mxu0 0.0
        %1548 = vmatmul.mubr.f32.gmra.mrb[0].mxu0 %v918
        %v1549 = vpop.f32.mrb[0].mxu0
        %v1550 = vadd.f32 %v1461, %v1549
        %v1551 = vpop.f32.mrb[0].mxu0
        %1552 = vmatprep.mubr.f32.mxu0 0.0
        %1553 = vmatmul.mubr.f32.gmra.mrb[0].mxu0 %v921
        %v1554 = vpop.f32.mrb[0].mxu0
        %v1555 = vadd.f32 %v1461, %v1554
        %v1556 = vpop.f32.mrb[0].mxu0
        %1557 = vmatprep.mubr.f32.mxu0 0.0
        %1558 = vmatmul.mubr.f32.gmra.mrb[0].mxu0 %v924
        %v1559 = vpop.f32.mrb[0].mxu0
        %v1560 = vadd.f32 %v1461, %v1559
        %v1561 = vpop.f32.mrb[0].mxu0
        %1562 = vmatprep.mubr.f32.mxu0 0.0
        %1563 = vmatmul.mubr.f32.gmra.mrb[0].mxu0 %v927
        %v1564 = vpop.f32.mrb[0].mxu0
        %v1565 = vadd.f32 %v1461, %v1564
        %v1566 = vpop.f32.mrb[0].mxu0
        %1567 = vmatprep.mubr.f32.mxu0 0.0
        %1568 = vmatmul.mubr.f32.gmra.mrb[0].mxu0 %v930
        %v1569 = vpop.f32.mrb[0].mxu0
        %v1570 = vadd.f32 %v1461, %v1569
        %v1571 = vpop.f32.mrb[0].mxu0
        %1572 = vmatprep.mubr.f32.mxu0 0.0
        %1573 = vmatmul.mubr.f32.gmra.mrb[0].mxu0 %v933
        %v1574 = vpop.f32.mrb[0].mxu0
        %v1575 = vadd.f32 %v1461, %v1574
        %v1576 = vpop.f32.mrb[0].mxu0
        %1577 = vmatprep.mubr.f32.mxu0 0.0
        %1578 = vmatmul.mubr.f32.gmra.mrb[0].mxu0 %v936
        %v1579 = vpop.f32.mrb[0].mxu0
        %v1580 = vadd.f32 %v1461, %v1579
        %v1581 = vpop.f32.mrb[0].mxu0
        %1582 = vmatprep.mubr.f32.mxu0 0.0
        %1583 = vmatmul.mubr.f32.gmra.mrb[0].mxu0 %v939
        %v1584 = vpop.f32.mrb[0].mxu0
        %v1585 = vadd.f32 %v1461, %v1584
        %v1586 = vpop.f32.mrb[0].mxu0
        %1587 = vmatprep.mubr.f32.mxu0 0.0
        %1588 = vmatmul.mubr.f32.gmra.mrb[0].mxu0 %v942
        %v1589 = vpop.f32.mrb[0].mxu0
        %v1590 = vadd.f32 %v1461, %v1589
        %v1591 = vpop.f32.mrb[0].mxu0
        %1592 = vmatprep.mubr.f32.mxu0 0.0
        %1593 = vmatmul.mubr.f32.gmra.mrb[0].mxu0 %v945
        %v1594 = vpop.f32.mrb[0].mxu0
        %v1595 = vadd.f32 %v1461, %v1594
        %v1596 = vpop.f32.mrb[0].mxu0
        %1597 = vmatprep.mubr.f32.mxu0 0.0
        %1598 = vmatmul.mubr.f32.gmra.mrb[0].mxu0 %v948
        %v1599 = vpop.f32.mrb[0].mxu0
        %v1600 = vadd.f32 %v1461, %v1599
        %v1601 = vpop.f32.mrb[0].mxu0
        %1602 = vmatprep.mubr.f32.mxu0 0.0
        %1603 = vmatmul.mubr.f32.gmra.mrb[0].mxu0 %v951
        %v1604 = vpop.f32.mrb[0].mxu0
        %v1605 = vadd.f32 %v1461, %v1604
        %v1606 = vpop.f32.mrb[0].mxu0
        %1607 = vmatprep.mubr.f32.mxu0 0.0
        %1608 = vmatmul.mubr.f32.gmra.mrb[0].mxu0 %v954
        %v1609 = vpop.f32.mrb[0].mxu0
        %v1610 = vadd.f32 %v1461, %v1609
        %v1611 = vpop.f32.mrb[0].mxu0
        %1612 = vmatprep.mubr.f32.mxu0 0.0
        %1613 = vmatmul.mubr.f32.gmra.mrb[0].mxu0 %v957
        %v1614 = vpop.f32.mrb[0].mxu0
        %v1615 = vadd.f32 %v1461, %v1614
        %v1616 = vpop.f32.mrb[0].mxu0
        %1617 = vmatprep.mubr.f32.mxu0 0.0
        %1618 = vmatmul.mubr.f32.gmra.mrb[0].mxu0 %v960
        %v1619 = vpop.f32.mrb[0].mxu0
        %v1620 = vadd.f32 %v1461, %v1619
        %v1621 = vpop.f32.mrb[0].mxu0
        %1622 = vmatprep.mubr.f32.mxu0 0.0
        %1623 = vmatmul.mubr.f32.gmra.mrb[0].mxu0 %v963
        %v1624 = vpop.f32.mrb[0].mxu0
        %v1625 = vadd.f32 %v1461, %v1624
        %v1626 = vpop.f32.mrb[0].mxu0
        %1627 = vmatprep.mubr.f32.mxu0 0.0
        %1628 = vmatmul.mubr.f32.gmra.mrb[0].mxu0 %v966
        %v1629 = vpop.f32.mrb[0].mxu0
        %v1630 = vadd.f32 %v1461, %v1629
        %v1631 = vpop.f32.mrb[0].mxu0
        %1632 = vmatprep.mubr.f32.mxu0 0.0
        %1633 = vmatmul.mubr.f32.gmra.mrb[0].mxu0 %v969
        %v1634 = vpop.f32.mrb[0].mxu0
        %v1635 = vadd.f32 %v1461, %v1634
        %v1636 = vpop.f32.mrb[0].mxu0
        %1637 = vmatprep.mubr.f32.mxu0 0.0
        %1638 = vmatmul.mubr.f32.gmra.mrb[0].mxu0 %v972
        %v1639 = vpop.f32.mrb[0].mxu0
        %v1640 = vadd.f32 %v1461, %v1639
        %v1641 = vpop.f32.mrb[0].mxu0
        %1642 = vmatprep.mubr.f32.mxu0 0.0
        %1643 = vmatmul.mubr.f32.gmra.mrb[0].mxu0 %v975
        %v1644 = vpop.f32.mrb[0].mxu0
        %v1645 = vadd.f32 %v1461, %v1644
        %v1646 = vpop.f32.mrb[0].mxu0
        %1647 = vmatprep.mubr.f32.mxu0 0.0
        %1648 = vmatmul.mubr.f32.gmra.mrb[0].mxu0 %v978
        %v1649 = vpop.f32.mrb[0].mxu0
        %v1650 = vadd.f32 %v1461, %v1649
        %v1651 = vpop.f32.mrb[0].mxu0
        %1652 = vmatprep.mubr.f32.mxu0 0.0
        %1653 = vmatmul.mubr.f32.gmra.mrb[0].mxu0 %v981
        %v1654 = vpop.f32.mrb[0].mxu0
        %v1655 = vadd.f32 %v1461, %v1654
        %v1656 = vpop.f32.mrb[0].mxu0
        %1657 = vmatprep.mubr.f32.mxu0 0.0
        %1658 = vmatmul.mubr.f32.gmra.mrb[0].mxu0 %v984
        %v1659 = vpop.f32.mrb[0].mxu0
        %v1660 = vadd.f32 %v1461, %v1659
        %v1661 = vpop.f32.mrb[0].mxu0
        %1662 = vmatprep.mubr.f32.mxu0 0.0
        %1663 = vmatmul.mubr.f32.gmra.mrb[0].mxu0 %v987
        %v1664 = vpop.f32.mrb[0].mxu0
        %v1665 = vadd.f32 %v1461, %v1664
        %v1666 = vpop.f32.mrb[0].mxu0
        %1667 = vmatprep.mubr.f32.mxu0 0.0
        %1668 = vmatmul.mubr.f32.gmra.mrb[0].mxu0 %v990
        %v1669 = vpop.f32.mrb[0].mxu0
        %v1670 = vadd.f32 %v1461, %v1669
        %v1671 = vpop.f32.mrb[0].mxu0
        %1672 = vmatprep.mubr.f32.mxu0 0.0
        %1673 = vmatmul.mubr.f32.gmra.mrb[0].mxu0 %v993
        %v1674 = vpop.f32.mrb[0].mxu0
        %v1675 = vadd.f32 %v1461, %v1674
        %v1676 = vpop.f32.mrb[0].mxu0
        %1677 = vmatprep.mubr.f32.mxu0 0.0
        %1678 = vmatmul.mubr.f32.gmra.mrb[0].mxu0 %v996
        %v1679 = vpop.f32.mrb[0].mxu0
        %v1680 = vadd.f32 %v1461, %v1679
        %v1681 = vpop.f32.mrb[0].mxu0
        %1682 = vmatprep.mubr.f32.mxu0 0.0
        %1683 = vmatmul.mubr.f32.gmra.mrb[0].mxu0 %v999
        %v1684 = vpop.f32.mrb[0].mxu0
        %v1685 = vadd.f32 %v1461, %v1684
        %v1686 = vpop.f32.mrb[0].mxu0
        %1687 = vdwg.mxu0
        %vm1688 = vcmask 130048
        %v1690 = vsel %vm1688, %v1068, 0
        %v1693 = vsel %vm1688, %v1073, 0
        %v1696 = vsel %vm1688, %v1078, 0
        %v1699 = vsel %vm1688, %v1083, 0
        %v1702 = vsel %vm1688, %v1088, 0
        %v1705 = vsel %vm1688, %v1093, 0
        %v1708 = vsel %vm1688, %v1098, 0
        %v1711 = vsel %vm1688, %v1103, 0
        %v1714 = vsel %vm1688, %v1108, 0
        %v1717 = vsel %vm1688, %v1113, 0
        %v1720 = vsel %vm1688, %v1118, 0
        %v1723 = vsel %vm1688, %v1123, 0
        %v1726 = vsel %vm1688, %v1128, 0
        %v1729 = vsel %vm1688, %v1133, 0
        %v1732 = vsel %vm1688, %v1138, 0
        %v1735 = vsel %vm1688, %v1143, 0
        %v1738 = vsel %vm1688, %v1148, 0
        %v1741 = vsel %vm1688, %v1153, 0
        %v1744 = vsel %vm1688, %v1158, 0
        %v1747 = vsel %vm1688, %v1163, 0
        %v1750 = vsel %vm1688, %v1168, 0
        %v1753 = vsel %vm1688, %v1173, 0
        %v1756 = vsel %vm1688, %v1178, 0
        %v1759 = vsel %vm1688, %v1183, 0
        %v1762 = vsel %vm1688, %v1188, 0
        %v1765 = vsel %vm1688, %v1193, 0
        %v1768 = vsel %vm1688, %v1198, 0
        %v1771 = vsel %vm1688, %v1203, 0
        %v1774 = vsel %vm1688, %v1208, 0
        %v1777 = vsel %vm1688, %v1213, 0
        %v1780 = vsel %vm1688, %v1218, 0
        %v1783 = vsel %vm1688, %v1223, 0
        %v1786 = vsel %vm1688, %v1299, 0
        %v1789 = vsel %vm1688, %v1304, 0
        %v1792 = vsel %vm1688, %v1309, 0
        %v1795 = vsel %vm1688, %v1314, 0
        %v1798 = vsel %vm1688, %v1319, 0
        %v1801 = vsel %vm1688, %v1324, 0
        %v1804 = vsel %vm1688, %v1329, 0
        %v1807 = vsel %vm1688, %v1334, 0
        %v1810 = vsel %vm1688, %v1339, 0
        %v1813 = vsel %vm1688, %v1344, 0
        %v1816 = vsel %vm1688, %v1349, 0
        %v1819 = vsel %vm1688, %v1354, 0
        %v1822 = vsel %vm1688, %v1359, 0
        %v1825 = vsel %vm1688, %v1364, 0
        %v1828 = vsel %vm1688, %v1369, 0
        %v1831 = vsel %vm1688, %v1374, 0
        %v1834 = vsel %vm1688, %v1379, 0
        %v1837 = vsel %vm1688, %v1384, 0
        %v1840 = vsel %vm1688, %v1389, 0
        %v1843 = vsel %vm1688, %v1394, 0
        %v1846 = vsel %vm1688, %v1399, 0
        %v1849 = vsel %vm1688, %v1404, 0
        %v1852 = vsel %vm1688, %v1409, 0
        %v1855 = vsel %vm1688, %v1414, 0
        %v1858 = vsel %vm1688, %v1419, 0
        %v1861 = vsel %vm1688, %v1424, 0
        %v1864 = vsel %vm1688, %v1429, 0
        %v1867 = vsel %vm1688, %v1434, 0
        %v1870 = vsel %vm1688, %v1439, 0
        %v1873 = vsel %vm1688, %v1444, 0
        %v1876 = vsel %vm1688, %v1449, 0
        %v1879 = vsel %vm1688, %v1454, 0
        %1881 = vmatprep.subr.mxu0 0.0
        %1882 = vmatpush1.xpose.msra.mxu0 %v1786
        %1883 = vmatprep.subr.mxu0 0.0
        %1884 = vmatpush1.xpose.msra.mxu0 %v1789
        %1885 = vmatprep.subr.mxu0 0.0
        %1886 = vmatpush1.xpose.msra.mxu0 %v1792
        %1887 = vmatprep.subr.mxu0 0.0
        %1888 = vmatpush1.xpose.msra.mxu0 %v1795
        %1889 = vmatprep.subr.mxu0 0.0
        %1890 = vmatpush1.xpose.msra.mxu0 %v1798
        %1891 = vmatprep.subr.mxu0 0.0
        %1892 = vmatpush1.xpose.msra.mxu0 %v1801
        %1893 = vmatprep.subr.mxu0 0.0
        %1894 = vmatpush1.xpose.msra.mxu0 %v1804
        %1895 = vmatprep.subr.mxu0 0.0
        %1896 = vmatpush1.xpose.msra.mxu0 %v1807
        %1897 = vmatprep.subr.mxu0 0.0
        %1898 = vmatpush1.xpose.msra.mxu0 %v1810
        %1899 = vmatprep.subr.mxu0 0.0
        %1900 = vmatpush1.xpose.msra.mxu0 %v1813
        %1901 = vmatprep.subr.mxu0 0.0
        %1902 = vmatpush1.xpose.msra.mxu0 %v1816
        %1903 = vmatprep.subr.mxu0 0.0
        %1904 = vmatpush1.xpose.msra.mxu0 %v1819
        %1905 = vmatprep.subr.mxu0 0.0
        %1906 = vmatpush1.xpose.msra.mxu0 %v1822
        %1907 = vmatprep.subr.mxu0 0.0
        %1908 = vmatpush1.xpose.msra.mxu0 %v1825
        %1909 = vmatprep.subr.mxu0 0.0
        %1910 = vmatpush1.xpose.msra.mxu0 %v1828
        %1911 = vmatprep.subr.mxu0 0.0
        %1912 = vmatpush1.xpose.msra.mxu0 %v1831
        %1913 = vmatprep.subr.mxu0 0.0
        %1914 = vmatpush1.xpose.msra.mxu0 %v1834
        %1915 = vmatprep.subr.mxu0 0.0
        %1916 = vmatpush1.xpose.msra.mxu0 %v1837
        %1917 = vmatprep.subr.mxu0 0.0
        %1918 = vmatpush1.xpose.msra.mxu0 %v1840
        %1919 = vmatprep.subr.mxu0 0.0
        %1920 = vmatpush1.xpose.msra.mxu0 %v1843
        %1921 = vmatprep.subr.mxu0 0.0
        %1922 = vmatpush1.xpose.msra.mxu0 %v1846
        %1923 = vmatprep.subr.mxu0 0.0
        %1924 = vmatpush1.xpose.msra.mxu0 %v1849
        %1925 = vmatprep.subr.mxu0 0.0
        %1926 = vmatpush1.xpose.msra.mxu0 %v1852
        %1927 = vmatprep.subr.mxu0 0.0
        %1928 = vmatpush1.xpose.msra.mxu0 %v1855
        %1929 = vmatprep.subr.mxu0 0.0
        %1930 = vmatpush1.xpose.msra.mxu0 %v1858
        %1931 = vmatprep.subr.mxu0 0.0
        %1932 = vmatpush1.xpose.msra.mxu0 %v1861
        %1933 = vmatprep.subr.mxu0 0.0
        %1934 = vmatpush1.xpose.msra.mxu0 %v1864
        %1935 = vmatprep.subr.mxu0 0.0
        %1936 = vmatpush1.xpose.msra.mxu0 %v1867
        %1937 = vmatprep.subr.mxu0 0.0
        %1938 = vmatpush1.xpose.msra.mxu0 %v1870
        %1939 = vmatprep.subr.mxu0 0.0
        %1940 = vmatpush1.xpose.msra.mxu0 %v1873
        %1941 = vmatprep.subr.mxu0 0.0
        %1942 = vmatpush1.xpose.msra.mxu0 %v1876
        %1943 = vmatprep.subr.mxu0 0.0
        %1944 = vmatpush1.xpose.msra.mxu0 %v1879
        %1945 = vmatprep.mubr.f32.mxu0 0.0
        %1946 = vmatmul.mubr.f32.gmra.mrb[0].mxu0 %v1690
        %v1947 = vpop.f32.mrb[0].mxu0
        %v1948 = vadd.f32 0.0, %v1947
        %v1949 = vpop.f32.mrb[0].mxu0
        %v1950 = vadd.f32 0.0, %v1949
        %1951 = vmatprep.mubr.f32.mxu0 0.0
        %1952 = vmatmul.mubr.f32.gmra.mrb[0].mxu0 %v1693
        %v1953 = vpop.f32.mrb[0].mxu0
        %v1954 = vadd.f32 0.0, %v1953
        %v1955 = vpop.f32.mrb[0].mxu0
        %v1956 = vadd.f32 0.0, %v1955
        %1957 = vmatprep.mubr.f32.mxu0 0.0
        %1958 = vmatmul.mubr.f32.gmra.mrb[0].mxu0 %v1696
        %v1959 = vpop.f32.mrb[0].mxu0
        %v1960 = vadd.f32 0.0, %v1959
        %v1961 = vpop.f32.mrb[0].mxu0
        %v1962 = vadd.f32 0.0, %v1961
        %1963 = vmatprep.mubr.f32.mxu0 0.0
        %1964 = vmatmul.mubr.f32.gmra.mrb[0].mxu0 %v1699
        %v1965 = vpop.f32.mrb[0].mxu0
        %v1966 = vadd.f32 0.0, %v1965
        %v1967 = vpop.f32.mrb[0].mxu0
        %v1968 = vadd.f32 0.0, %v1967
        %1969 = vmatprep.mubr.f32.mxu0 0.0
        %1970 = vmatmul.mubr.f32.gmra.mrb[0].mxu0 %v1702
        %v1971 = vpop.f32.mrb[0].mxu0
        %v1972 = vadd.f32 0.0, %v1971
        %v1973 = vpop.f32.mrb[0].mxu0
        %v1974 = vadd.f32 0.0, %v1973
        %1975 = vmatprep.mubr.f32.mxu0 0.0
        %1976 = vmatmul.mubr.f32.gmra.mrb[0].mxu0 %v1705
        %v1977 = vpop.f32.mrb[0].mxu0
        %v1978 = vadd.f32 0.0, %v1977
        %v1979 = vpop.f32.mrb[0].mxu0
        %v1980 = vadd.f32 0.0, %v1979
        %1981 = vmatprep.mubr.f32.mxu0 0.0
        %1982 = vmatmul.mubr.f32.gmra.mrb[0].mxu0 %v1708
        %v1983 = vpop.f32.mrb[0].mxu0
        %v1984 = vadd.f32 0.0, %v1983
        %v1985 = vpop.f32.mrb[0].mxu0
        %v1986 = vadd.f32 0.0, %v1985
        %1987 = vmatprep.mubr.f32.mxu0 0.0
        %1988 = vmatmul.mubr.f32.gmra.mrb[0].mxu0 %v1711
        %v1989 = vpop.f32.mrb[0].mxu0
        %v1990 = vadd.f32 0.0, %v1989
        %v1991 = vpop.f32.mrb[0].mxu0
        %v1992 = vadd.f32 0.0, %v1991
        %1993 = vmatprep.mubr.f32.mxu0 0.0
        %1994 = vmatmul.mubr.f32.gmra.mrb[0].mxu0 %v1714
        %v1995 = vpop.f32.mrb[0].mxu0
        %v1996 = vadd.f32 0.0, %v1995
        %v1997 = vpop.f32.mrb[0].mxu0
        %v1998 = vadd.f32 0.0, %v1997
        %1999 = vmatprep.mubr.f32.mxu0 0.0
        %2000 = vmatmul.mubr.f32.gmra.mrb[0].mxu0 %v1717
        %v2001 = vpop.f32.mrb[0].mxu0
        %v2002 = vadd.f32 0.0, %v2001
        %v2003 = vpop.f32.mrb[0].mxu0
        %v2004 = vadd.f32 0.0, %v2003
        %2005 = vmatprep.mubr.f32.mxu0 0.0
        %2006 = vmatmul.mubr.f32.gmra.mrb[0].mxu0 %v1720
        %v2007 = vpop.f32.mrb[0].mxu0
        %v2008 = vadd.f32 0.0, %v2007
        %v2009 = vpop.f32.mrb[0].mxu0
        %v2010 = vadd.f32 0.0, %v2009
        %2011 = vmatprep.mubr.f32.mxu0 0.0
        %2012 = vmatmul.mubr.f32.gmra.mrb[0].mxu0 %v1723
        %v2013 = vpop.f32.mrb[0].mxu0
        %v2014 = vadd.f32 0.0, %v2013
        %v2015 = vpop.f32.mrb[0].mxu0
        %v2016 = vadd.f32 0.0, %v2015
        %2017 = vmatprep.mubr.f32.mxu0 0.0
        %2018 = vmatmul.mubr.f32.gmra.mrb[0].mxu0 %v1726
        %v2019 = vpop.f32.mrb[0].mxu0
        %v2020 = vadd.f32 0.0, %v2019
        %v2021 = vpop.f32.mrb[0].mxu0
        %v2022 = vadd.f32 0.0, %v2021
        %2023 = vmatprep.mubr.f32.mxu0 0.0
        %2024 = vmatmul.mubr.f32.gmra.mrb[0].mxu0 %v1729
        %v2025 = vpop.f32.mrb[0].mxu0
        %v2026 = vadd.f32 0.0, %v2025
        %v2027 = vpop.f32.mrb[0].mxu0
        %v2028 = vadd.f32 0.0, %v2027
        %2029 = vmatprep.mubr.f32.mxu0 0.0
        %2030 = vmatmul.mubr.f32.gmra.mrb[0].mxu0 %v1732
        %v2031 = vpop.f32.mrb[0].mxu0
        %v2032 = vadd.f32 0.0, %v2031
        %v2033 = vpop.f32.mrb[0].mxu0
        %v2034 = vadd.f32 0.0, %v2033
        %2035 = vmatprep.mubr.f32.mxu0 0.0
        %2036 = vmatmul.mubr.f32.gmra.mrb[0].mxu0 %v1735
        %v2037 = vpop.f32.mrb[0].mxu0
        %v2038 = vadd.f32 0.0, %v2037
        %v2039 = vpop.f32.mrb[0].mxu0
        %v2040 = vadd.f32 0.0, %v2039
        %2041 = vmatprep.mubr.f32.mxu0 0.0
        %2042 = vmatmul.mubr.f32.gmra.mrb[0].mxu0 %v1738
        %v2043 = vpop.f32.mrb[0].mxu0
        %v2044 = vadd.f32 0.0, %v2043
        %v2045 = vpop.f32.mrb[0].mxu0
        %v2046 = vadd.f32 0.0, %v2045
        %2047 = vmatprep.mubr.f32.mxu0 0.0
        %2048 = vmatmul.mubr.f32.gmra.mrb[0].mxu0 %v1741
        %v2049 = vpop.f32.mrb[0].mxu0
        %v2050 = vadd.f32 0.0, %v2049
        %v2051 = vpop.f32.mrb[0].mxu0
        %v2052 = vadd.f32 0.0, %v2051
        %2053 = vmatprep.mubr.f32.mxu0 0.0
        %2054 = vmatmul.mubr.f32.gmra.mrb[0].mxu0 %v1744
        %v2055 = vpop.f32.mrb[0].mxu0
        %v2056 = vadd.f32 0.0, %v2055
        %v2057 = vpop.f32.mrb[0].mxu0
        %v2058 = vadd.f32 0.0, %v2057
        %2059 = vmatprep.mubr.f32.mxu0 0.0
        %2060 = vmatmul.mubr.f32.gmra.mrb[0].mxu0 %v1747
        %v2061 = vpop.f32.mrb[0].mxu0
        %v2062 = vadd.f32 0.0, %v2061
        %v2063 = vpop.f32.mrb[0].mxu0
        %v2064 = vadd.f32 0.0, %v2063
        %2065 = vmatprep.mubr.f32.mxu0 0.0
        %2066 = vmatmul.mubr.f32.gmra.mrb[0].mxu0 %v1750
        %v2067 = vpop.f32.mrb[0].mxu0
        %v2068 = vadd.f32 0.0, %v2067
        %v2069 = vpop.f32.mrb[0].mxu0
        %v2070 = vadd.f32 0.0, %v2069
        %2071 = vmatprep.mubr.f32.mxu0 0.0
        %2072 = vmatmul.mubr.f32.gmra.mrb[0].mxu0 %v1753
        %v2073 = vpop.f32.mrb[0].mxu0
        %v2074 = vadd.f32 0.0, %v2073
        %v2075 = vpop.f32.mrb[0].mxu0
        %v2076 = vadd.f32 0.0, %v2075
        %2077 = vmatprep.mubr.f32.mxu0 0.0
        %2078 = vmatmul.mubr.f32.gmra.mrb[0].mxu0 %v1756
        %v2079 = vpop.f32.mrb[0].mxu0
        %v2080 = vadd.f32 0.0, %v2079
        %v2081 = vpop.f32.mrb[0].mxu0
        %v2082 = vadd.f32 0.0, %v2081
        %2083 = vmatprep.mubr.f32.mxu0 0.0
        %2084 = vmatmul.mubr.f32.gmra.mrb[0].mxu0 %v1759
        %v2085 = vpop.f32.mrb[0].mxu0
        %v2086 = vadd.f32 0.0, %v2085
        %v2087 = vpop.f32.mrb[0].mxu0
        %v2088 = vadd.f32 0.0, %v2087
        %2089 = vmatprep.mubr.f32.mxu0 0.0
        %2090 = vmatmul.mubr.f32.gmra.mrb[0].mxu0 %v1762
        %v2091 = vpop.f32.mrb[0].mxu0
        %v2092 = vadd.f32 0.0, %v2091
        %v2093 = vpop.f32.mrb[0].mxu0
        %v2094 = vadd.f32 0.0, %v2093
        %2095 = vmatprep.mubr.f32.mxu0 0.0
        %2096 = vmatmul.mubr.f32.gmra.mrb[0].mxu0 %v1765
        %v2097 = vpop.f32.mrb[0].mxu0
        %v2098 = vadd.f32 0.0, %v2097
        %v2099 = vpop.f32.mrb[0].mxu0
        %v2100 = vadd.f32 0.0, %v2099
        %2101 = vmatprep.mubr.f32.mxu0 0.0
        %2102 = vmatmul.mubr.f32.gmra.mrb[0].mxu0 %v1768
        %v2103 = vpop.f32.mrb[0].mxu0
        %v2104 = vadd.f32 0.0, %v2103
        %v2105 = vpop.f32.mrb[0].mxu0
        %v2106 = vadd.f32 0.0, %v2105
        %2107 = vmatprep.mubr.f32.mxu0 0.0
        %2108 = vmatmul.mubr.f32.gmra.mrb[0].mxu0 %v1771
        %v2109 = vpop.f32.mrb[0].mxu0
        %v2110 = vadd.f32 0.0, %v2109
        %v2111 = vpop.f32.mrb[0].mxu0
        %v2112 = vadd.f32 0.0, %v2111
        %2113 = vmatprep.mubr.f32.mxu0 0.0
        %2114 = vmatmul.mubr.f32.gmra.mrb[0].mxu0 %v1774
        %v2115 = vpop.f32.mrb[0].mxu0
        %v2116 = vadd.f32 0.0, %v2115
        %v2117 = vpop.f32.mrb[0].mxu0
        %v2118 = vadd.f32 0.0, %v2117
        %2119 = vmatprep.mubr.f32.mxu0 0.0
        %2120 = vmatmul.mubr.f32.gmra.mrb[0].mxu0 %v1777
        %v2121 = vpop.f32.mrb[0].mxu0
        %v2122 = vadd.f32 0.0, %v2121
        %v2123 = vpop.f32.mrb[0].mxu0
        %v2124 = vadd.f32 0.0, %v2123
        %2125 = vmatprep.mubr.f32.mxu0 0.0
        %2126 = vmatmul.mubr.f32.gmra.mrb[0].mxu0 %v1780
        %v2127 = vpop.f32.mrb[0].mxu0
        %v2128 = vadd.f32 0.0, %v2127
        %v2129 = vpop.f32.mrb[0].mxu0
        %v2130 = vadd.f32 0.0, %v2129
        %2131 = vmatprep.mubr.f32.mxu0 0.0
        %2132 = vmatmul.mubr.f32.gmra.mrb[0].mxu0 %v1783
        %v2133 = vpop.f32.mrb[0].mxu0
        %v2134 = vadd.f32 0.0, %v2133
        %v2135 = vpop.f32.mrb[0].mxu0
        %v2136 = vadd.f32 0.0, %v2135
        %2137 = vdwg.mxu0
        %v2138 = vmax.f32 %v1948, %v1950
        %2139 = vmax.xlane.f32.xlu0 %v2138
        %v2140 = vpop.xlane.xlu0 %2139
        %v2141 = vmax.f32 %v1954, %v1956
        %2142 = vmax.xlane.f32.xlu0 %v2141
        %v2143 = vpop.xlane.xlu0 %2142
        %v2144 = vmax.f32 %v1960, %v1962
        %2145 = vmax.xlane.f32.xlu0 %v2144
        %v2146 = vpop.xlane.xlu0 %2145
        %v2147 = vmax.f32 %v1966, %v1968
        %2148 = vmax.xlane.f32.xlu0 %v2147
        %v2149 = vpop.xlane.xlu0 %2148
        %v2150 = vmax.f32 %v1972, %v1974
        %2151 = vmax.xlane.f32.xlu0 %v2150
        %v2152 = vpop.xlane.xlu0 %2151
        %v2153 = vmax.f32 %v1978, %v1980
        %2154 = vmax.xlane.f32.xlu0 %v2153
        %v2155 = vpop.xlane.xlu0 %2154
        %v2156 = vmax.f32 %v1984, %v1986
        %2157 = vmax.xlane.f32.xlu0 %v2156
        %v2158 = vpop.xlane.xlu0 %2157
        %v2159 = vmax.f32 %v1990, %v1992
        %2160 = vmax.xlane.f32.xlu0 %v2159
        %v2161 = vpop.xlane.xlu0 %2160
        %v2162 = vmax.f32 %v1996, %v1998
        %2163 = vmax.xlane.f32.xlu0 %v2162
        %v2164 = vpop.xlane.xlu0 %2163
        %v2165 = vmax.f32 %v2002, %v2004
        %2166 = vmax.xlane.f32.xlu0 %v2165
        %v2167 = vpop.xlane.xlu0 %2166
        %v2168 = vmax.f32 %v2008, %v2010
        %2169 = vmax.xlane.f32.xlu0 %v2168
        %v2170 = vpop.xlane.xlu0 %2169
        %v2171 = vmax.f32 %v2014, %v2016
        %2172 = vmax.xlane.f32.xlu0 %v2171
        %v2173 = vpop.xlane.xlu0 %2172
        %v2174 = vmax.f32 %v2020, %v2022
        %2175 = vmax.xlane.f32.xlu0 %v2174
        %v2176 = vpop.xlane.xlu0 %2175
        %v2177 = vmax.f32 %v2026, %v2028
        %2178 = vmax.xlane.f32.xlu0 %v2177
        %v2179 = vpop.xlane.xlu0 %2178
        %v2180 = vmax.f32 %v2032, %v2034
        %2181 = vmax.xlane.f32.xlu0 %v2180
        %v2182 = vpop.xlane.xlu0 %2181
        %v2183 = vmax.f32 %v2038, %v2040
        %2184 = vmax.xlane.f32.xlu0 %v2183
        %v2185 = vpop.xlane.xlu0 %2184
        %v2186 = vmax.f32 %v2044, %v2046
        %2187 = vmax.xlane.f32.xlu0 %v2186
        %v2188 = vpop.xlane.xlu0 %2187
        %v2189 = vmax.f32 %v2050, %v2052
        %2190 = vmax.xlane.f32.xlu0 %v2189
        %v2191 = vpop.xlane.xlu0 %2190
        %v2192 = vmax.f32 %v2056, %v2058
        %2193 = vmax.xlane.f32.xlu0 %v2192
        %v2194 = vpop.xlane.xlu0 %2193
        %v2195 = vmax.f32 %v2062, %v2064
        %2196 = vmax.xlane.f32.xlu0 %v2195
        %v2197 = vpop.xlane.xlu0 %2196
        %v2198 = vmax.f32 %v2068, %v2070
        %2199 = vmax.xlane.f32.xlu0 %v2198
        %v2200 = vpop.xlane.xlu0 %2199
        %v2201 = vmax.f32 %v2074, %v2076
        %2202 = vmax.xlane.f32.xlu0 %v2201
        %v2203 = vpop.xlane.xlu0 %2202
        %v2204 = vmax.f32 %v2080, %v2082
        %2205 = vmax.xlane.f32.xlu0 %v2204
        %v2206 = vpop.xlane.xlu0 %2205
        %v2207 = vmax.f32 %v2086, %v2088
        %2208 = vmax.xlane.f32.xlu0 %v2207
        %v2209 = vpop.xlane.xlu0 %2208
        %v2210 = vmax.f32 %v2092, %v2094
        %2211 = vmax.xlane.f32.xlu0 %v2210
        %v2212 = vpop.xlane.xlu0 %2211
        %v2213 = vmax.f32 %v2098, %v2100
        %2214 = vmax.xlane.f32.xlu0 %v2213
        %v2215 = vpop.xlane.xlu0 %2214
        %v2216 = vmax.f32 %v2104, %v2106
        %2217 = vmax.xlane.f32.xlu0 %v2216
        %v2218 = vpop.xlane.xlu0 %2217
        %v2219 = vmax.f32 %v2110, %v2112
        %2220 = vmax.xlane.f32.xlu0 %v2219
        %v2221 = vpop.xlane.xlu0 %2220
        %v2222 = vmax.f32 %v2116, %v2118
        %2223 = vmax.xlane.f32.xlu0 %v2222
        %v2224 = vpop.xlane.xlu0 %2223
        %v2225 = vmax.f32 %v2122, %v2124
        %2226 = vmax.xlane.f32.xlu0 %v2225
        %v2227 = vpop.xlane.xlu0 %2226
        %v2228 = vmax.f32 %v2128, %v2130
        %2229 = vmax.xlane.f32.xlu0 %v2228
        %v2230 = vpop.xlane.xlu0 %2229
        %v2231 = vmax.f32 %v2134, %v2136
        %2232 = vmax.xlane.f32.xlu0 %v2231
        %v2233 = vpop.xlane.xlu0 %2232
        %v2234 = vsub.f32 %v1948, %v2140
        %v2235 = vsub.f32 %v1950, %v2140
        %v2236 = vsub.f32 %v1954, %v2143
        %v2237 = vsub.f32 %v1956, %v2143
        %v2238 = vsub.f32 %v1960, %v2146
        %v2239 = vsub.f32 %v1962, %v2146
        %v2240 = vsub.f32 %v1966, %v2149
        %v2241 = vsub.f32 %v1968, %v2149
        %v2242 = vsub.f32 %v1972, %v2152
        %v2243 = vsub.f32 %v1974, %v2152
        %v2244 = vsub.f32 %v1978, %v2155
        %v2245 = vsub.f32 %v1980, %v2155
        %v2246 = vsub.f32 %v1984, %v2158
        %v2247 = vsub.f32 %v1986, %v2158
        %v2248 = vsub.f32 %v1990, %v2161
        %v2249 = vsub.f32 %v1992, %v2161
        %v2250 = vsub.f32 %v1996, %v2164
        %v2251 = vsub.f32 %v1998, %v2164
        %v2252 = vsub.f32 %v2002, %v2167
        %v2253 = vsub.f32 %v2004, %v2167
        %v2254 = vsub.f32 %v2008, %v2170
        %v2255 = vsub.f32 %v2010, %v2170
        %v2256 = vsub.f32 %v2014, %v2173
        %v2257 = vsub.f32 %v2016, %v2173
        %v2258 = vsub.f32 %v2020, %v2176
        %v2259 = vsub.f32 %v2022, %v2176
        %v2260 = vsub.f32 %v2026, %v2179
        %v2261 = vsub.f32 %v2028, %v2179
        %v2262 = vsub.f32 %v2032, %v2182
        %v2263 = vsub.f32 %v2034, %v2182
        %v2264 = vsub.f32 %v2038, %v2185
        %v2265 = vsub.f32 %v2040, %v2185
        %v2266 = vsub.f32 %v2044, %v2188
        %v2267 = vsub.f32 %v2046, %v2188
        %v2268 = vsub.f32 %v2050, %v2191
        %v2269 = vsub.f32 %v2052, %v2191
        %v2270 = vsub.f32 %v2056, %v2194
        %v2271 = vsub.f32 %v2058, %v2194
        %v2272 = vsub.f32 %v2062, %v2197
        %v2273 = vsub.f32 %v2064, %v2197
        %v2274 = vsub.f32 %v2068, %v2200
        %v2275 = vsub.f32 %v2070, %v2200
        %v2276 = vsub.f32 %v2074, %v2203
        %v2277 = vsub.f32 %v2076, %v2203
        %v2278 = vsub.f32 %v2080, %v2206
        %v2279 = vsub.f32 %v2082, %v2206
        %v2280 = vsub.f32 %v2086, %v2209
        %v2281 = vsub.f32 %v2088, %v2209
        %v2282 = vsub.f32 %v2092, %v2212
        %v2283 = vsub.f32 %v2094, %v2212
        %v2284 = vsub.f32 %v2098, %v2215
        %v2285 = vsub.f32 %v2100, %v2215
        %v2286 = vsub.f32 %v2104, %v2218
        %v2287 = vsub.f32 %v2106, %v2218
        %v2288 = vsub.f32 %v2110, %v2221
        %v2289 = vsub.f32 %v2112, %v2221
        %v2290 = vsub.f32 %v2116, %v2224
        %v2291 = vsub.f32 %v2118, %v2224
        %v2292 = vsub.f32 %v2122, %v2227
        %v2293 = vsub.f32 %v2124, %v2227
        %v2294 = vsub.f32 %v2128, %v2230
        %v2295 = vsub.f32 %v2130, %v2230
        %v2296 = vsub.f32 %v2134, %v2233
        %v2297 = vsub.f32 %v2136, %v2233
        %v2298 = vmul.f32 %v2234, 1.442695
        %v2299 = vpow.pop %v2298
        %v2300 = vmul.f32 %v2235, 1.442695
        %v2301 = vpow.pop %v2300
        %v2302 = vmul.f32 %v2236, 1.442695
        %v2303 = vpow.pop %v2302
        %v2304 = vmul.f32 %v2237, 1.442695
        %v2305 = vpow.pop %v2304
        %v2306 = vmul.f32 %v2238, 1.442695
        %v2307 = vpow.pop %v2306
        %v2308 = vmul.f32 %v2239, 1.442695
        %v2309 = vpow.pop %v2308
        %v2310 = vmul.f32 %v2240, 1.442695
        %v2311 = vpow.pop %v2310
        %v2312 = vmul.f32 %v2241, 1.442695
        %v2313 = vpow.pop %v2312
        %v2314 = vmul.f32 %v2242, 1.442695
        %v2315 = vpow.pop %v2314
        %v2316 = vmul.f32 %v2243, 1.442695
        %v2317 = vpow.pop %v2316
        %v2318 = vmul.f32 %v2244, 1.442695
        %v2319 = vpow.pop %v2318
        %v2320 = vmul.f32 %v2245, 1.442695
        %v2321 = vpow.pop %v2320
        %v2322 = vmul.f32 %v2246, 1.442695
        %v2323 = vpow.pop %v2322
        %v2324 = vmul.f32 %v2247, 1.442695
        %v2325 = vpow.pop %v2324
        %v2326 = vmul.f32 %v2248, 1.442695
        %v2327 = vpow.pop %v2326
        %v2328 = vmul.f32 %v2249, 1.442695
        %v2329 = vpow.pop %v2328
        %v2330 = vmul.f32 %v2250, 1.442695
        %v2331 = vpow.pop %v2330
        %v2332 = vmul.f32 %v2251, 1.442695
        %v2333 = vpow.pop %v2332
        %v2334 = vmul.f32 %v2252, 1.442695
        %v2335 = vpow.pop %v2334
        %v2336 = vmul.f32 %v2253, 1.442695
        %v2337 = vpow.pop %v2336
        %v2338 = vmul.f32 %v2254, 1.442695
        %v2339 = vpow.pop %v2338
        %v2340 = vmul.f32 %v2255, 1.442695
        %v2341 = vpow.pop %v2340
        %v2342 = vmul.f32 %v2256, 1.442695
        %v2343 = vpow.pop %v2342
        %v2344 = vmul.f32 %v2257, 1.442695
        %v2345 = vpow.pop %v2344
        %v2346 = vmul.f32 %v2258, 1.442695
        %v2347 = vpow.pop %v2346
        %v2348 = vmul.f32 %v2259, 1.442695
        %v2349 = vpow.pop %v2348
        %v2350 = vmul.f32 %v2260, 1.442695
        %v2351 = vpow.pop %v2350
        %v2352 = vmul.f32 %v2261, 1.442695
        %v2353 = vpow.pop %v2352
        %v2354 = vmul.f32 %v2262, 1.442695
        %v2355 = vpow.pop %v2354
        %v2356 = vmul.f32 %v2263, 1.442695
        %v2357 = vpow.pop %v2356
        %v2358 = vmul.f32 %v2264, 1.442695
        %v2359 = vpow.pop %v2358
        %v2360 = vmul.f32 %v2265, 1.442695
        %v2361 = vpow.pop %v2360
        %v2362 = vmul.f32 %v2266, 1.442695
        %v2363 = vpow.pop %v2362
        %v2364 = vmul.f32 %v2267, 1.442695
        %v2365 = vpow.pop %v2364
        %v2366 = vmul.f32 %v2268, 1.442695
        %v2367 = vpow.pop %v2366
        %v2368 = vmul.f32 %v2269, 1.442695
        %v2369 = vpow.pop %v2368
        %v2370 = vmul.f32 %v2270, 1.442695
        %v2371 = vpow.pop %v2370
        %v2372 = vmul.f32 %v2271, 1.442695
        %v2373 = vpow.pop %v2372
        %v2374 = vmul.f32 %v2272, 1.442695
        %v2375 = vpow.pop %v2374
        %v2376 = vmul.f32 %v2273, 1.442695
        %v2377 = vpow.pop %v2376
        %v2378 = vmul.f32 %v2274, 1.442695
        %v2379 = vpow.pop %v2378
        %v2380 = vmul.f32 %v2275, 1.442695
        %v2381 = vpow.pop %v2380
        %v2382 = vmul.f32 %v2276, 1.442695
        %v2383 = vpow.pop %v2382
        %v2384 = vmul.f32 %v2277, 1.442695
        %v2385 = vpow.pop %v2384
        %v2386 = vmul.f32 %v2278, 1.442695
        %v2387 = vpow.pop %v2386
        %v2388 = vmul.f32 %v2279, 1.442695
        %v2389 = vpow.pop %v2388
        %v2390 = vmul.f32 %v2280, 1.442695
        %v2391 = vpow.pop %v2390
        %v2392 = vmul.f32 %v2281, 1.442695
        %v2393 = vpow.pop %v2392
        %v2394 = vmul.f32 %v2282, 1.442695
        %v2395 = vpow.pop %v2394
        %v2396 = vmul.f32 %v2283, 1.442695
        %v2397 = vpow.pop %v2396
        %v2398 = vmul.f32 %v2284, 1.442695
        %v2399 = vpow.pop %v2398
        %v2400 = vmul.f32 %v2285, 1.442695
        %v2401 = vpow.pop %v2400
        %v2402 = vmul.f32 %v2286, 1.442695
        %v2403 = vpow.pop %v2402
        %v2404 = vmul.f32 %v2287, 1.442695
        %v2405 = vpow.pop %v2404
        %v2406 = vmul.f32 %v2288, 1.442695
        %v2407 = vpow.pop %v2406
        %v2408 = vmul.f32 %v2289, 1.442695
        %v2409 = vpow.pop %v2408
        %v2410 = vmul.f32 %v2290, 1.442695
        %v2411 = vpow.pop %v2410
        %v2412 = vmul.f32 %v2291, 1.442695
        %v2413 = vpow.pop %v2412
        %v2414 = vmul.f32 %v2292, 1.442695
        %v2415 = vpow.pop %v2414
        %v2416 = vmul.f32 %v2293, 1.442695
        %v2417 = vpow.pop %v2416
        %v2418 = vmul.f32 %v2294, 1.442695
        %v2419 = vpow.pop %v2418
        %v2420 = vmul.f32 %v2295, 1.442695
        %v2421 = vpow.pop %v2420
        %v2422 = vmul.f32 %v2296, 1.442695
        %v2423 = vpow.pop %v2422
        %v2424 = vmul.f32 %v2297, 1.442695
        %v2425 = vpow.pop %v2424
        %v2426 = vadd.f32 %v2299, %v2301
        %2427 = vadd.xlane.f32.xlu0 %v2426
        %v2428 = vpop.xlane.xlu0 %2427
        %v2429 = vadd.f32 %v2303, %v2305
        %2430 = vadd.xlane.f32.xlu0 %v2429
        %v2431 = vpop.xlane.xlu0 %2430
        %v2432 = vadd.f32 %v2307, %v2309
        %2433 = vadd.xlane.f32.xlu0 %v2432
        %v2434 = vpop.xlane.xlu0 %2433
        %v2435 = vadd.f32 %v2311, %v2313
        %2436 = vadd.xlane.f32.xlu0 %v2435
        %v2437 = vpop.xlane.xlu0 %2436
        %v2438 = vadd.f32 %v2315, %v2317
        %2439 = vadd.xlane.f32.xlu0 %v2438
        %v2440 = vpop.xlane.xlu0 %2439
        %v2441 = vadd.f32 %v2319, %v2321
        %2442 = vadd.xlane.f32.xlu0 %v2441
        %v2443 = vpop.xlane.xlu0 %2442
        %v2444 = vadd.f32 %v2323, %v2325
        %2445 = vadd.xlane.f32.xlu0 %v2444
        %v2446 = vpop.xlane.xlu0 %2445
        %v2447 = vadd.f32 %v2327, %v2329
        %2448 = vadd.xlane.f32.xlu0 %v2447
        %v2449 = vpop.xlane.xlu0 %2448
        %v2450 = vadd.f32 %v2331, %v2333
        %2451 = vadd.xlane.f32.xlu0 %v2450
        %v2452 = vpop.xlane.xlu0 %2451
        %v2453 = vadd.f32 %v2335, %v2337
        %2454 = vadd.xlane.f32.xlu0 %v2453
        %v2455 = vpop.xlane.xlu0 %2454
        %v2456 = vadd.f32 %v2339, %v2341
        %2457 = vadd.xlane.f32.xlu0 %v2456
        %v2458 = vpop.xlane.xlu0 %2457
        %v2459 = vadd.f32 %v2343, %v2345
        %2460 = vadd.xlane.f32.xlu0 %v2459
        %v2461 = vpop.xlane.xlu0 %2460
        %v2462 = vadd.f32 %v2347, %v2349
        %2463 = vadd.xlane.f32.xlu0 %v2462
        %v2464 = vpop.xlane.xlu0 %2463
        %v2465 = vadd.f32 %v2351, %v2353
        %2466 = vadd.xlane.f32.xlu0 %v2465
        %v2467 = vpop.xlane.xlu0 %2466
        %v2468 = vadd.f32 %v2355, %v2357
        %2469 = vadd.xlane.f32.xlu0 %v2468
        %v2470 = vpop.xlane.xlu0 %2469
        %v2471 = vadd.f32 %v2359, %v2361
        %2472 = vadd.xlane.f32.xlu0 %v2471
        %v2473 = vpop.xlane.xlu0 %2472
        %v2474 = vadd.f32 %v2363, %v2365
        %2475 = vadd.xlane.f32.xlu0 %v2474
        %v2476 = vpop.xlane.xlu0 %2475
        %v2477 = vadd.f32 %v2367, %v2369
        %2478 = vadd.xlane.f32.xlu0 %v2477
        %v2479 = vpop.xlane.xlu0 %2478
        %v2480 = vadd.f32 %v2371, %v2373
        %2481 = vadd.xlane.f32.xlu0 %v2480
        %v2482 = vpop.xlane.xlu0 %2481
        %v2483 = vadd.f32 %v2375, %v2377
        %2484 = vadd.xlane.f32.xlu0 %v2483
        %v2485 = vpop.xlane.xlu0 %2484
        %v2486 = vadd.f32 %v2379, %v2381
        %2487 = vadd.xlane.f32.xlu0 %v2486
        %v2488 = vpop.xlane.xlu0 %2487
        %v2489 = vadd.f32 %v2383, %v2385
        %2490 = vadd.xlane.f32.xlu0 %v2489
        %v2491 = vpop.xlane.xlu0 %2490
        %v2492 = vadd.f32 %v2387, %v2389
        %2493 = vadd.xlane.f32.xlu0 %v2492
        %v2494 = vpop.xlane.xlu0 %2493
        %v2495 = vadd.f32 %v2391, %v2393
        %2496 = vadd.xlane.f32.xlu0 %v2495
        %v2497 = vpop.xlane.xlu0 %2496
        %v2498 = vadd.f32 %v2395, %v2397
        %2499 = vadd.xlane.f32.xlu0 %v2498
        %v2500 = vpop.xlane.xlu0 %2499
        %v2501 = vadd.f32 %v2399, %v2401
        %2502 = vadd.xlane.f32.xlu0 %v2501
        %v2503 = vpop.xlane.xlu0 %2502
        %v2504 = vadd.f32 %v2403, %v2405
        %2505 = vadd.xlane.f32.xlu0 %v2504
        %v2506 = vpop.xlane.xlu0 %2505
        %v2507 = vadd.f32 %v2407, %v2409
        %2508 = vadd.xlane.f32.xlu0 %v2507
        %v2509 = vpop.xlane.xlu0 %2508
        %v2510 = vadd.f32 %v2411, %v2413
        %2511 = vadd.xlane.f32.xlu0 %v2510
        %v2512 = vpop.xlane.xlu0 %2511
        %v2513 = vadd.f32 %v2415, %v2417
        %2514 = vadd.xlane.f32.xlu0 %v2513
        %v2515 = vpop.xlane.xlu0 %2514
        %v2516 = vadd.f32 %v2419, %v2421
        %2517 = vadd.xlane.f32.xlu0 %v2516
        %v2518 = vpop.xlane.xlu0 %2517
        %v2519 = vadd.f32 %v2423, %v2425
        %2520 = vadd.xlane.f32.xlu0 %v2519
        %v2521 = vpop.xlane.xlu0 %2520
        %v2522 = vrcp.pop %v2428
        %v2523 = vrcp.pop %v2431
        %v2524 = vrcp.pop %v2434
        %v2525 = vrcp.pop %v2437
        %v2526 = vrcp.pop %v2440
        %v2527 = vrcp.pop %v2443
        %v2528 = vrcp.pop %v2446
        %v2529 = vrcp.pop %v2449
        %v2530 = vrcp.pop %v2452
        %v2531 = vrcp.pop %v2455
        %v2532 = vrcp.pop %v2458
        %v2533 = vrcp.pop %v2461
        %v2534 = vrcp.pop %v2464
        %v2535 = vrcp.pop %v2467
        %v2536 = vrcp.pop %v2470
        %v2537 = vrcp.pop %v2473
        %v2538 = vrcp.pop %v2476
        %v2539 = vrcp.pop %v2479
        %v2540 = vrcp.pop %v2482
        %v2541 = vrcp.pop %v2485
        %v2542 = vrcp.pop %v2488
        %v2543 = vrcp.pop %v2491
        %v2544 = vrcp.pop %v2494
        %v2545 = vrcp.pop %v2497
        %v2546 = vrcp.pop %v2500
        %v2547 = vrcp.pop %v2503
        %v2548 = vrcp.pop %v2506
        %v2549 = vrcp.pop %v2509
        %v2550 = vrcp.pop %v2512
        %v2551 = vrcp.pop %v2515
        %v2552 = vrcp.pop %v2518
        %v2553 = vrcp.pop %v2521
        %v2554 = vmul.f32 %v2299, %v2522
        %v2555 = vmul.f32 %v2301, %v2522
        %v2556 = vmul.f32 %v2303, %v2523
        %v2557 = vmul.f32 %v2305, %v2523
        %v2558 = vmul.f32 %v2307, %v2524
        %v2559 = vmul.f32 %v2309, %v2524
        %v2560 = vmul.f32 %v2311, %v2525
        %v2561 = vmul.f32 %v2313, %v2525
        %v2562 = vmul.f32 %v2315, %v2526
        %v2563 = vmul.f32 %v2317, %v2526
        %v2564 = vmul.f32 %v2319, %v2527
        %v2565 = vmul.f32 %v2321, %v2527
        %v2566 = vmul.f32 %v2323, %v2528
        %v2567 = vmul.f32 %v2325, %v2528
        %v2568 = vmul.f32 %v2327, %v2529
        %v2569 = vmul.f32 %v2329, %v2529
        %v2570 = vmul.f32 %v2331, %v2530
        %v2571 = vmul.f32 %v2333, %v2530
        %v2572 = vmul.f32 %v2335, %v2531
        %v2573 = vmul.f32 %v2337, %v2531
        %v2574 = vmul.f32 %v2339, %v2532
        %v2575 = vmul.f32 %v2341, %v2532
        %v2576 = vmul.f32 %v2343, %v2533
        %v2577 = vmul.f32 %v2345, %v2533
        %v2578 = vmul.f32 %v2347, %v2534
        %v2579 = vmul.f32 %v2349, %v2534
        %v2580 = vmul.f32 %v2351, %v2535
        %v2581 = vmul.f32 %v2353, %v2535
        %v2582 = vmul.f32 %v2355, %v2536
        %v2583 = vmul.f32 %v2357, %v2536
        %v2584 = vmul.f32 %v2359, %v2537
        %v2585 = vmul.f32 %v2361, %v2537
        %v2586 = vmul.f32 %v2363, %v2538
        %v2587 = vmul.f32 %v2365, %v2538
        %v2588 = vmul.f32 %v2367, %v2539
        %v2589 = vmul.f32 %v2369, %v2539
        %v2590 = vmul.f32 %v2371, %v2540
        %v2591 = vmul.f32 %v2373, %v2540
        %v2592 = vmul.f32 %v2375, %v2541
        %v2593 = vmul.f32 %v2377, %v2541
        %v2594 = vmul.f32 %v2379, %v2542
        %v2595 = vmul.f32 %v2381, %v2542
        %v2596 = vmul.f32 %v2383, %v2543
        %v2597 = vmul.f32 %v2385, %v2543
        %v2598 = vmul.f32 %v2387, %v2544
        %v2599 = vmul.f32 %v2389, %v2544
        %v2600 = vmul.f32 %v2391, %v2545
        %v2601 = vmul.f32 %v2393, %v2545
        %v2602 = vmul.f32 %v2395, %v2546
        %v2603 = vmul.f32 %v2397, %v2546
        %v2604 = vmul.f32 %v2399, %v2547
        %v2605 = vmul.f32 %v2401, %v2547
        %v2606 = vmul.f32 %v2403, %v2548
        %v2607 = vmul.f32 %v2405, %v2548
        %v2608 = vmul.f32 %v2407, %v2549
        %v2609 = vmul.f32 %v2409, %v2549
        %v2610 = vmul.f32 %v2411, %v2550
        %v2611 = vmul.f32 %v2413, %v2550
        %v2612 = vmul.f32 %v2415, %v2551
        %v2613 = vmul.f32 %v2417, %v2551
        %v2614 = vmul.f32 %v2419, %v2552
        %v2615 = vmul.f32 %v2421, %v2552
        %v2616 = vmul.f32 %v2423, %v2553
        %v2617 = vmul.f32 %v2425, %v2553
        %2618 = vmatprep.subr.mxu0 0.0
        %2619 = vmatpush1.msra.mxu0 %v1530
        %2620 = vmatprep.subr.mxu0 0.0
        %2621 = vmatpush1.msra.mxu0 %v1535
        %2622 = vmatprep.subr.mxu0 0.0
        %2623 = vmatpush1.msra.mxu0 %v1540
        %2624 = vmatprep.subr.mxu0 0.0
        %2625 = vmatpush1.msra.mxu0 %v1545
        %2626 = vmatprep.subr.mxu0 0.0
        %2627 = vmatpush1.msra.mxu0 %v1550
        %2628 = vmatprep.subr.mxu0 0.0
        %2629 = vmatpush1.msra.mxu0 %v1555
        %2630 = vmatprep.subr.mxu0 0.0
        %2631 = vmatpush1.msra.mxu0 %v1560
        %2632 = vmatprep.subr.mxu0 0.0
        %2633 = vmatpush1.msra.mxu0 %v1565
        %2634 = vmatprep.subr.mxu0 0.0
        %2635 = vmatpush1.msra.mxu0 %v1570
        %2636 = vmatprep.subr.mxu0 0.0
        %2637 = vmatpush1.msra.mxu0 %v1575
        %2638 = vmatprep.subr.mxu0 0.0
        %2639 = vmatpush1.msra.mxu0 %v1580
        %2640 = vmatprep.subr.mxu0 0.0
        %2641 = vmatpush1.msra.mxu0 %v1585
        %2642 = vmatprep.subr.mxu0 0.0
        %2643 = vmatpush1.msra.mxu0 %v1590
        %2644 = vmatprep.subr.mxu0 0.0
        %2645 = vmatpush1.msra.mxu0 %v1595
        %2646 = vmatprep.subr.mxu0 0.0
        %2647 = vmatpush1.msra.mxu0 %v1600
        %2648 = vmatprep.subr.mxu0 0.0
        %2649 = vmatpush1.msra.mxu0 %v1605
        %2650 = vmatprep.subr.mxu0 0.0
        %2651 = vmatpush1.msra.mxu0 %v1610
        %2652 = vmatprep.subr.mxu0 0.0
        %2653 = vmatpush1.msra.mxu0 %v1615
        %2654 = vmatprep.subr.mxu0 0.0
        %2655 = vmatpush1.msra.mxu0 %v1620
        %2656 = vmatprep.subr.mxu0 0.0
        %2657 = vmatpush1.msra.mxu0 %v1625
        %2658 = vmatprep.subr.mxu0 0.0
        %2659 = vmatpush1.msra.mxu0 %v1630
        %2660 = vmatprep.subr.mxu0 0.0
        %2661 = vmatpush1.msra.mxu0 %v1635
        %2662 = vmatprep.subr.mxu0 0.0
        %2663 = vmatpush1.msra.mxu0 %v1640
        %2664 = vmatprep.subr.mxu0 0.0
        %2665 = vmatpush1.msra.mxu0 %v1645
        %2666 = vmatprep.subr.mxu0 0.0
        %2667 = vmatpush1.msra.mxu0 %v1650
        %2668 = vmatprep.subr.mxu0 0.0
        %2669 = vmatpush1.msra.mxu0 %v1655
        %2670 = vmatprep.subr.mxu0 0.0
        %2671 = vmatpush1.msra.mxu0 %v1660
        %2672 = vmatprep.subr.mxu0 0.0
        %2673 = vmatpush1.msra.mxu0 %v1665
        %2674 = vmatprep.subr.mxu0 0.0
        %2675 = vmatpush1.msra.mxu0 %v1670
        %2676 = vmatprep.subr.mxu0 0.0
        %2677 = vmatpush1.msra.mxu0 %v1675
        %2678 = vmatprep.subr.mxu0 0.0
        %2679 = vmatpush1.msra.mxu0 %v1680
        %2680 = vmatprep.subr.mxu0 0.0
        %2681 = vmatpush1.msra.mxu0 %v1685
        %2682 = vmatprep.mubr.f32.mxu0 %v2555
        %2683 = vmatmul.mubr.f32.gmra.mrb[0].mxu0 %v2554
        %v2684 = vpop.f32.mrb[0].mxu0
        %v2685 = vadd.f32 0.0, %v2684
        %v2686 = vpop.f32.mrb[0].mxu0
        %2687 = vmatprep.mubr.f32.mxu0 %v2557
        %2688 = vmatmul.mubr.f32.gmra.mrb[0].mxu0 %v2556
        %v2689 = vpop.f32.mrb[0].mxu0
        %v2690 = vadd.f32 0.0, %v2689
        %v2691 = vpop.f32.mrb[0].mxu0
        %2692 = vmatprep.mubr.f32.mxu0 %v2559
        %2693 = vmatmul.mubr.f32.gmra.mrb[0].mxu0 %v2558
        %v2694 = vpop.f32.mrb[0].mxu0
        %v2695 = vadd.f32 0.0, %v2694
        %v2696 = vpop.f32.mrb[0].mxu0
        %2697 = vmatprep.mubr.f32.mxu0 %v2561
        %2698 = vmatmul.mubr.f32.gmra.mrb[0].mxu0 %v2560
        %v2699 = vpop.f32.mrb[0].mxu0
        %v2700 = vadd.f32 0.0, %v2699
        %v2701 = vpop.f32.mrb[0].mxu0
        %2702 = vmatprep.mubr.f32.mxu0 %v2563
        %2703 = vmatmul.mubr.f32.gmra.mrb[0].mxu0 %v2562
        %v2704 = vpop.f32.mrb[0].mxu0
        %v2705 = vadd.f32 0.0, %v2704
        %v2706 = vpop.f32.mrb[0].mxu0
        %2707 = vmatprep.mubr.f32.mxu0 %v2565
        %2708 = vmatmul.mubr.f32.gmra.mrb[0].mxu0 %v2564
        %v2709 = vpop.f32.mrb[0].mxu0
        %v2710 = vadd.f32 0.0, %v2709
        %v2711 = vpop.f32.mrb[0].mxu0
        %2712 = vmatprep.mubr.f32.mxu0 %v2567
        %2713 = vmatmul.mubr.f32.gmra.mrb[0].mxu0 %v2566
        %v2714 = vpop.f32.mrb[0].mxu0
        %v2715 = vadd.f32 0.0, %v2714
        %v2716 = vpop.f32.mrb[0].mxu0
        %2717 = vmatprep.mubr.f32.mxu0 %v2569
        %2718 = vmatmul.mubr.f32.gmra.mrb[0].mxu0 %v2568
        %v2719 = vpop.f32.mrb[0].mxu0
        %v2720 = vadd.f32 0.0, %v2719
        %v2721 = vpop.f32.mrb[0].mxu0
        %2722 = vmatprep.mubr.f32.mxu0 %v2571
        %2723 = vmatmul.mubr.f32.gmra.mrb[0].mxu0 %v2570
        %v2724 = vpop.f32.mrb[0].mxu0
        %v2725 = vadd.f32 0.0, %v2724
        %v2726 = vpop.f32.mrb[0].mxu0
        %2727 = vmatprep.mubr.f32.mxu0 %v2573
        %2728 = vmatmul.mubr.f32.gmra.mrb[0].mxu0 %v2572
        %v2729 = vpop.f32.mrb[0].mxu0
        %v2730 = vadd.f32 0.0, %v2729
        %v2731 = vpop.f32.mrb[0].mxu0
        %2732 = vmatprep.mubr.f32.mxu0 %v2575
        %2733 = vmatmul.mubr.f32.gmra.mrb[0].mxu0 %v2574
        %v2734 = vpop.f32.mrb[0].mxu0
        %v2735 = vadd.f32 0.0, %v2734
        %v2736 = vpop.f32.mrb[0].mxu0
        %2737 = vmatprep.mubr.f32.mxu0 %v2577
        %2738 = vmatmul.mubr.f32.gmra.mrb[0].mxu0 %v2576
        %v2739 = vpop.f32.mrb[0].mxu0
        %v2740 = vadd.f32 0.0, %v2739
        %v2741 = vpop.f32.mrb[0].mxu0
        %2742 = vmatprep.mubr.f32.mxu0 %v2579
        %2743 = vmatmul.mubr.f32.gmra.mrb[0].mxu0 %v2578
        %v2744 = vpop.f32.mrb[0].mxu0
        %v2745 = vadd.f32 0.0, %v2744
        %v2746 = vpop.f32.mrb[0].mxu0
        %2747 = vmatprep.mubr.f32.mxu0 %v2581
        %2748 = vmatmul.mubr.f32.gmra.mrb[0].mxu0 %v2580
        %v2749 = vpop.f32.mrb[0].mxu0
        %v2750 = vadd.f32 0.0, %v2749
        %v2751 = vpop.f32.mrb[0].mxu0
        %2752 = vmatprep.mubr.f32.mxu0 %v2583
        %2753 = vmatmul.mubr.f32.gmra.mrb[0].mxu0 %v2582
        %v2754 = vpop.f32.mrb[0].mxu0
        %v2755 = vadd.f32 0.0, %v2754
        %v2756 = vpop.f32.mrb[0].mxu0
        %2757 = vmatprep.mubr.f32.mxu0 %v2585
        %2758 = vmatmul.mubr.f32.gmra.mrb[0].mxu0 %v2584
        %v2759 = vpop.f32.mrb[0].mxu0
        %v2760 = vadd.f32 0.0, %v2759
        %v2761 = vpop.f32.mrb[0].mxu0
        %2762 = vmatprep.mubr.f32.mxu0 %v2587
        %2763 = vmatmul.mubr.f32.gmra.mrb[0].mxu0 %v2586
        %v2764 = vpop.f32.mrb[0].mxu0
        %v2765 = vadd.f32 0.0, %v2764
        %v2766 = vpop.f32.mrb[0].mxu0
        %2767 = vmatprep.mubr.f32.mxu0 %v2589
        %2768 = vmatmul.mubr.f32.gmra.mrb[0].mxu0 %v2588
        %v2769 = vpop.f32.mrb[0].mxu0
        %v2770 = vadd.f32 0.0, %v2769
        %v2771 = vpop.f32.mrb[0].mxu0
        %2772 = vmatprep.mubr.f32.mxu0 %v2591
        %2773 = vmatmul.mubr.f32.gmra.mrb[0].mxu0 %v2590
        %v2774 = vpop.f32.mrb[0].mxu0
        %v2775 = vadd.f32 0.0, %v2774
        %v2776 = vpop.f32.mrb[0].mxu0
        %2777 = vmatprep.mubr.f32.mxu0 %v2593
        %2778 = vmatmul.mubr.f32.gmra.mrb[0].mxu0 %v2592
        %v2779 = vpop.f32.mrb[0].mxu0
        %v2780 = vadd.f32 0.0, %v2779
        %v2781 = vpop.f32.mrb[0].mxu0
        %2782 = vmatprep.mubr.f32.mxu0 %v2595
        %2783 = vmatmul.mubr.f32.gmra.mrb[0].mxu0 %v2594
        %v2784 = vpop.f32.mrb[0].mxu0
        %v2785 = vadd.f32 0.0, %v2784
        %v2786 = vpop.f32.mrb[0].mxu0
        %2787 = vmatprep.mubr.f32.mxu0 %v2597
        %2788 = vmatmul.mubr.f32.gmra.mrb[0].mxu0 %v2596
        %v2789 = vpop.f32.mrb[0].mxu0
        %v2790 = vadd.f32 0.0, %v2789
        %v2791 = vpop.f32.mrb[0].mxu0
        %2792 = vmatprep.mubr.f32.mxu0 %v2599
        %2793 = vmatmul.mubr.f32.gmra.mrb[0].mxu0 %v2598
        %v2794 = vpop.f32.mrb[0].mxu0
        %v2795 = vadd.f32 0.0, %v2794
        %v2796 = vpop.f32.mrb[0].mxu0
        %2797 = vmatprep.mubr.f32.mxu0 %v2601
        %2798 = vmatmul.mubr.f32.gmra.mrb[0].mxu0 %v2600
        %v2799 = vpop.f32.mrb[0].mxu0
        %v2800 = vadd.f32 0.0, %v2799
        %v2801 = vpop.f32.mrb[0].mxu0
        %2802 = vmatprep.mubr.f32.mxu0 %v2603
        %2803 = vmatmul.mubr.f32.gmra.mrb[0].mxu0 %v2602
        %v2804 = vpop.f32.mrb[0].mxu0
        %v2805 = vadd.f32 0.0, %v2804
        %v2806 = vpop.f32.mrb[0].mxu0
        %2807 = vmatprep.mubr.f32.mxu0 %v2605
        %2808 = vmatmul.mubr.f32.gmra.mrb[0].mxu0 %v2604
        %v2809 = vpop.f32.mrb[0].mxu0
        %v2810 = vadd.f32 0.0, %v2809
        %v2811 = vpop.f32.mrb[0].mxu0
        %2812 = vmatprep.mubr.f32.mxu0 %v2607
        %2813 = vmatmul.mubr.f32.gmra.mrb[0].mxu0 %v2606
        %v2814 = vpop.f32.mrb[0].mxu0
        %v2815 = vadd.f32 0.0, %v2814
        %v2816 = vpop.f32.mrb[0].mxu0
        %2817 = vmatprep.mubr.f32.mxu0 %v2609
        %2818 = vmatmul.mubr.f32.gmra.mrb[0].mxu0 %v2608
        %v2819 = vpop.f32.mrb[0].mxu0
        %v2820 = vadd.f32 0.0, %v2819
        %v2821 = vpop.f32.mrb[0].mxu0
        %2822 = vmatprep.mubr.f32.mxu0 %v2611
        %2823 = vmatmul.mubr.f32.gmra.mrb[0].mxu0 %v2610
        %v2824 = vpop.f32.mrb[0].mxu0
        %v2825 = vadd.f32 0.0, %v2824
        %v2826 = vpop.f32.mrb[0].mxu0
        %2827 = vmatprep.mubr.f32.mxu0 %v2613
        %2828 = vmatmul.mubr.f32.gmra.mrb[0].mxu0 %v2612
        %v2829 = vpop.f32.mrb[0].mxu0
        %v2830 = vadd.f32 0.0, %v2829
        %v2831 = vpop.f32.mrb[0].mxu0
        %2832 = vmatprep.mubr.f32.mxu0 %v2615
        %2833 = vmatmul.mubr.f32.gmra.mrb[0].mxu0 %v2614
        %v2834 = vpop.f32.mrb[0].mxu0
        %v2835 = vadd.f32 0.0, %v2834
        %v2836 = vpop.f32.mrb[0].mxu0
        %2837 = vmatprep.mubr.f32.mxu0 %v2617
        %2838 = vmatmul.mubr.f32.gmra.mrb[0].mxu0 %v2616
        %v2839 = vpop.f32.mrb[0].mxu0
        %v2840 = vadd.f32 0.0, %v2839
        %v2841 = vpop.f32.mrb[0].mxu0
        %2842 = vdwg.mxu0
        %v2843 = vld [vmem:[%s4] sm:$0xff]
        %v2844 = vld [vmem:[%s4 + $0x8] sm:$0xff]
        %s2845 = scalar_lea.vmem %s2, 96
        %v2846 = vld [vmem:[%s2845] sm:$0xff]
        %v2847 = vld [vmem:[%s2845 + $0x8] sm:$0xff]
        %v2848 = vld [vmem:[%s2845 + $0x10] sm:$0xff]
        %v2849 = vld [vmem:[%s2845 + $0x18] sm:$0xff]
        %s2850 = scalar_lea.vmem %s2, 128
        %v2851 = vld [vmem:[%s2850] sm:$0xff]
        %v2852 = vld [vmem:[%s2850 + $0x8] sm:$0xff]
        %v2853 = vld [vmem:[%s2850 + $0x10] sm:$0xff]
        %v2854 = vld [vmem:[%s2850 + $0x18] sm:$0xff]
        %s2855 = scalar_lea.vmem %s2, 160
        %v2856 = vld [vmem:[%s2855] sm:$0xff]
        %v2857 = vld [vmem:[%s2855 + $0x8] sm:$0xff]
        %v2858 = vld [vmem:[%s2855 + $0x10] sm:$0xff]
        %v2859 = vld [vmem:[%s2855 + $0x18] sm:$0xff]
        %s2860 = scalar_lea.vmem %s3, 3
        %v2861 = vld [vmem:[%s2860] sm:$0x1]
        %s2862 = scalar_lea.vmem %s3, 4
        %v2863 = vld [vmem:[%s2862] sm:$0x1]
        %s2864 = scalar_lea.vmem %s3, 5
        %v2865 = vld [vmem:[%s2864] sm:$0x1]
        %v2867 = vlaneseq
        %v2868 = vshrl.u32 %v2867, 7
        %v2869 = vsub.s32 0, %v2868
        %v2870 = vrot.slane %v2861, %v2869
        %2872 = vmatprep.subr.mxu0 0.0
        %2873 = vmatpush1.msra.mxu0 %v2846
        %2874 = vmatprep.subr.mxu0 0.0
        %2875 = vmatpush1.msra.mxu0 %v2847
        %2876 = vmatprep.subr.mxu0 0.0
        %2877 = vmatpush1.msra.mxu0 %v2848
        %2878 = vmatprep.subr.mxu0 0.0
        %2879 = vmatpush1.msra.mxu0 %v2849
        %2880 = vmatprep.subr.mxu0 0.0
        %2881 = vmatpush1.msra.mxu0 0.0
        %2882 = vmatprep.subr.mxu0 0.0
        %2883 = vmatpush1.msra.mxu0 0.0
        %2884 = vmatprep.subr.mxu0 0.0
        %2885 = vmatpush1.msra.mxu0 0.0
        %2886 = vmatprep.subr.mxu0 0.0
        %2887 = vmatpush1.msra.mxu0 0.0
        %2888 = vmatprep.subr.mxu0 0.0
        %2889 = vmatpush1.msra.mxu0 0.0
        %2890 = vmatprep.subr.mxu0 0.0
        %2891 = vmatpush1.msra.mxu0 0.0
        %2892 = vmatprep.subr.mxu0 0.0
        %2893 = vmatpush1.msra.mxu0 0.0
        %2894 = vmatprep.subr.mxu0 0.0
        %2895 = vmatpush1.msra.mxu0 0.0
        %2896 = vmatprep.subr.mxu0 0.0
        %2897 = vmatpush1.msra.mxu0 0.0
        %2898 = vmatprep.subr.mxu0 0.0
        %2899 = vmatpush1.msra.mxu0 0.0
        %2900 = vmatprep.subr.mxu0 0.0
        %2901 = vmatpush1.msra.mxu0 0.0
        %2902 = vmatprep.subr.mxu0 0.0
        %2903 = vmatpush1.msra.mxu0 0.0
        %2904 = vmatprep.subr.mxu0 0.0
        %2905 = vmatpush1.msra.mxu0 0.0
        %2906 = vmatprep.subr.mxu0 0.0
        %2907 = vmatpush1.msra.mxu0 0.0
        %2908 = vmatprep.subr.mxu0 0.0
        %2909 = vmatpush1.msra.mxu0 0.0
        %2910 = vmatprep.subr.mxu0 0.0
        %2911 = vmatpush1.msra.mxu0 0.0
        %2912 = vmatprep.subr.mxu0 0.0
        %2913 = vmatpush1.msra.mxu0 0.0
        %2914 = vmatprep.subr.mxu0 0.0
        %2915 = vmatpush1.msra.mxu0 0.0
        %2916 = vmatprep.subr.mxu0 0.0
        %2917 = vmatpush1.msra.mxu0 0.0
        %2918 = vmatprep.subr.mxu0 0.0
        %2919 = vmatpush1.msra.mxu0 0.0
        %2920 = vmatprep.subr.mxu0 0.0
        %2921 = vmatpush1.msra.mxu0 0.0
        %2922 = vmatprep.subr.mxu0 0.0
        %2923 = vmatpush1.msra.mxu0 0.0
        %2924 = vmatprep.subr.mxu0 0.0
        %2925 = vmatpush1.msra.mxu0 0.0
        %2926 = vmatprep.subr.mxu0 0.0
        %2927 = vmatpush1.msra.mxu0 0.0
        %2928 = vmatprep.subr.mxu0 0.0
        %2929 = vmatpush1.msra.mxu0 0.0
        %2930 = vmatprep.subr.mxu0 0.0
        %2931 = vmatpush1.msra.mxu0 0.0
        %2932 = vmatprep.subr.mxu0 0.0
        %2933 = vmatpush1.msra.mxu0 0.0
        %2934 = vmatprep.subr.mxu0 0.0
        %2935 = vmatpush1.msra.mxu0 0.0
        %2936 = vmatprep.mubr.f32.mxu0 0.0
        %2937 = vmatmul.mubr.f32.gmra.mrb[0].mxu0 %v906
        %v2938 = vpop.f32.mrb[0].mxu0
        %v2939 = vadd.f32 %v2870, %v2938
        %v2940 = vpop.f32.mrb[0].mxu0
        %2941 = vmatprep.mubr.f32.mxu0 0.0
        %2942 = vmatmul.mubr.f32.gmra.mrb[0].mxu0 %v909
        %v2943 = vpop.f32.mrb[0].mxu0
        %v2944 = vadd.f32 %v2870, %v2943
        %v2945 = vpop.f32.mrb[0].mxu0
        %2946 = vmatprep.mubr.f32.mxu0 0.0
        %2947 = vmatmul.mubr.f32.gmra.mrb[0].mxu0 %v912
        %v2948 = vpop.f32.mrb[0].mxu0
        %v2949 = vadd.f32 %v2870, %v2948
        %v2950 = vpop.f32.mrb[0].mxu0
        %2951 = vmatprep.mubr.f32.mxu0 0.0
        %2952 = vmatmul.mubr.f32.gmra.mrb[0].mxu0 %v915
        %v2953 = vpop.f32.mrb[0].mxu0
        %v2954 = vadd.f32 %v2870, %v2953
        %v2955 = vpop.f32.mrb[0].mxu0
        %2956 = vmatprep.mubr.f32.mxu0 0.0
        %2957 = vmatmul.mubr.f32.gmra.mrb[0].mxu0 %v918
        %v2958 = vpop.f32.mrb[0].mxu0
        %v2959 = vadd.f32 %v2870, %v2958
        %v2960 = vpop.f32.mrb[0].mxu0
        %2961 = vmatprep.mubr.f32.mxu0 0.0
        %2962 = vmatmul.mubr.f32.gmra.mrb[0].mxu0 %v921
        %v2963 = vpop.f32.mrb[0].mxu0
        %v2964 = vadd.f32 %v2870, %v2963
        %v2965 = vpop.f32.mrb[0].mxu0
        %2966 = vmatprep.mubr.f32.mxu0 0.0
        %2967 = vmatmul.mubr.f32.gmra.mrb[0].mxu0 %v924
        %v2968 = vpop.f32.mrb[0].mxu0
        %v2969 = vadd.f32 %v2870, %v2968
        %v2970 = vpop.f32.mrb[0].mxu0
        %2971 = vmatprep.mubr.f32.mxu0 0.0
        %2972 = vmatmul.mubr.f32.gmra.mrb[0].mxu0 %v927
        %v2973 = vpop.f32.mrb[0].mxu0
        %v2974 = vadd.f32 %v2870, %v2973
        %v2975 = vpop.f32.mrb[0].mxu0
        %2976 = vmatprep.mubr.f32.mxu0 0.0
        %2977 = vmatmul.mubr.f32.gmra.mrb[0].mxu0 %v930
        %v2978 = vpop.f32.mrb[0].mxu0
        %v2979 = vadd.f32 %v2870, %v2978
        %v2980 = vpop.f32.mrb[0].mxu0
        %2981 = vmatprep.mubr.f32.mxu0 0.0
        %2982 = vmatmul.mubr.f32.gmra.mrb[0].mxu0 %v933
        %v2983 = vpop.f32.mrb[0].mxu0
        %v2984 = vadd.f32 %v2870, %v2983
        %v2985 = vpop.f32.mrb[0].mxu0
        %2986 = vmatprep.mubr.f32.mxu0 0.0
        %2987 = vmatmul.mubr.f32.gmra.mrb[0].mxu0 %v936
        %v2988 = vpop.f32.mrb[0].mxu0
        %v2989 = vadd.f32 %v2870, %v2988
        %v2990 = vpop.f32.mrb[0].mxu0
        %2991 = vmatprep.mubr.f32.mxu0 0.0
        %2992 = vmatmul.mubr.f32.gmra.mrb[0].mxu0 %v939
        %v2993 = vpop.f32.mrb[0].mxu0
        %v2994 = vadd.f32 %v2870, %v2993
        %v2995 = vpop.f32.mrb[0].mxu0
        %2996 = vmatprep.mubr.f32.mxu0 0.0
        %2997 = vmatmul.mubr.f32.gmra.mrb[0].mxu0 %v942
        %v2998 = vpop.f32.mrb[0].mxu0
        %v2999 = vadd.f32 %v2870, %v2998
        %v3000 = vpop.f32.mrb[0].mxu0
        %3001 = vmatprep.mubr.f32.mxu0 0.0
        %3002 = vmatmul.mubr.f32.gmra.mrb[0].mxu0 %v945
        %v3003 = vpop.f32.mrb[0].mxu0
        %v3004 = vadd.f32 %v2870, %v3003
        %v3005 = vpop.f32.mrb[0].mxu0
        %3006 = vmatprep.mubr.f32.mxu0 0.0
        %3007 = vmatmul.mubr.f32.gmra.mrb[0].mxu0 %v948
        %v3008 = vpop.f32.mrb[0].mxu0
        %v3009 = vadd.f32 %v2870, %v3008
        %v3010 = vpop.f32.mrb[0].mxu0
        %3011 = vmatprep.mubr.f32.mxu0 0.0
        %3012 = vmatmul.mubr.f32.gmra.mrb[0].mxu0 %v951
        %v3013 = vpop.f32.mrb[0].mxu0
        %v3014 = vadd.f32 %v2870, %v3013
        %v3015 = vpop.f32.mrb[0].mxu0
        %3016 = vmatprep.mubr.f32.mxu0 0.0
        %3017 = vmatmul.mubr.f32.gmra.mrb[0].mxu0 %v954
        %v3018 = vpop.f32.mrb[0].mxu0
        %v3019 = vadd.f32 %v2870, %v3018
        %v3020 = vpop.f32.mrb[0].mxu0
        %3021 = vmatprep.mubr.f32.mxu0 0.0
        %3022 = vmatmul.mubr.f32.gmra.mrb[0].mxu0 %v957
        %v3023 = vpop.f32.mrb[0].mxu0
        %v3024 = vadd.f32 %v2870, %v3023
        %v3025 = vpop.f32.mrb[0].mxu0
        %3026 = vmatprep.mubr.f32.mxu0 0.0
        %3027 = vmatmul.mubr.f32.gmra.mrb[0].mxu0 %v960
        %v3028 = vpop.f32.mrb[0].mxu0
        %v3029 = vadd.f32 %v2870, %v3028
        %v3030 = vpop.f32.mrb[0].mxu0
        %3031 = vmatprep.mubr.f32.mxu0 0.0
        %3032 = vmatmul.mubr.f32.gmra.mrb[0].mxu0 %v963
        %v3033 = vpop.f32.mrb[0].mxu0
        %v3034 = vadd.f32 %v2870, %v3033
        %v3035 = vpop.f32.mrb[0].mxu0
        %3036 = vmatprep.mubr.f32.mxu0 0.0
        %3037 = vmatmul.mubr.f32.gmra.mrb[0].mxu0 %v966
        %v3038 = vpop.f32.mrb[0].mxu0
        %v3039 = vadd.f32 %v2870, %v3038
        %v3040 = vpop.f32.mrb[0].mxu0
        %3041 = vmatprep.mubr.f32.mxu0 0.0
        %3042 = vmatmul.mubr.f32.gmra.mrb[0].mxu0 %v969
        %v3043 = vpop.f32.mrb[0].mxu0
        %v3044 = vadd.f32 %v2870, %v3043
        %v3045 = vpop.f32.mrb[0].mxu0
        %3046 = vmatprep.mubr.f32.mxu0 0.0
        %3047 = vmatmul.mubr.f32.gmra.mrb[0].mxu0 %v972
        %v3048 = vpop.f32.mrb[0].mxu0
        %v3049 = vadd.f32 %v2870, %v3048
        %v3050 = vpop.f32.mrb[0].mxu0
        %3051 = vmatprep.mubr.f32.mxu0 0.0
        %3052 = vmatmul.mubr.f32.gmra.mrb[0].mxu0 %v975
        %v3053 = vpop.f32.mrb[0].mxu0
        %v3054 = vadd.f32 %v2870, %v3053
        %v3055 = vpop.f32.mrb[0].mxu0
        %3056 = vmatprep.mubr.f32.mxu0 0.0
        %3057 = vmatmul.mubr.f32.gmra.mrb[0].mxu0 %v978
        %v3058 = vpop.f32.mrb[0].mxu0
        %v3059 = vadd.f32 %v2870, %v3058
        %v3060 = vpop.f32.mrb[0].mxu0
        %3061 = vmatprep.mubr.f32.mxu0 0.0
        %3062 = vmatmul.mubr.f32.gmra.mrb[0].mxu0 %v981
        %v3063 = vpop.f32.mrb[0].mxu0
        %v3064 = vadd.f32 %v2870, %v3063
        %v3065 = vpop.f32.mrb[0].mxu0
        %3066 = vmatprep.mubr.f32.mxu0 0.0
        %3067 = vmatmul.mubr.f32.gmra.mrb[0].mxu0 %v984
        %v3068 = vpop.f32.mrb[0].mxu0
        %v3069 = vadd.f32 %v2870, %v3068
        %v3070 = vpop.f32.mrb[0].mxu0
        %3071 = vmatprep.mubr.f32.mxu0 0.0
        %3072 = vmatmul.mubr.f32.gmra.mrb[0].mxu0 %v987
        %v3073 = vpop.f32.mrb[0].mxu0
        %v3074 = vadd.f32 %v2870, %v3073
        %v3075 = vpop.f32.mrb[0].mxu0
        %3076 = vmatprep.mubr.f32.mxu0 0.0
        %3077 = vmatmul.mubr.f32.gmra.mrb[0].mxu0 %v990
        %v3078 = vpop.f32.mrb[0].mxu0
        %v3079 = vadd.f32 %v2870, %v3078
        %v3080 = vpop.f32.mrb[0].mxu0
        %3081 = vmatprep.mubr.f32.mxu0 0.0
        %3082 = vmatmul.mubr.f32.gmra.mrb[0].mxu0 %v993
        %v3083 = vpop.f32.mrb[0].mxu0
        %v3084 = vadd.f32 %v2870, %v3083
        %v3085 = vpop.f32.mrb[0].mxu0
        %3086 = vmatprep.mubr.f32.mxu0 0.0
        %3087 = vmatmul.mubr.f32.gmra.mrb[0].mxu0 %v996
        %v3088 = vpop.f32.mrb[0].mxu0
        %v3089 = vadd.f32 %v2870, %v3088
        %v3090 = vpop.f32.mrb[0].mxu0
        %3091 = vmatprep.mubr.f32.mxu0 0.0
        %3092 = vmatmul.mubr.f32.gmra.mrb[0].mxu0 %v999
        %v3093 = vpop.f32.mrb[0].mxu0
        %v3094 = vadd.f32 %v2870, %v3093
        %v3095 = vpop.f32.mrb[0].mxu0
        %3096 = vdwg.mxu0
        %v3098 = vlaneseq
        %v3099 = vshrl.u32 %v3098, 7
        %v3100 = vsub.s32 0, %v3099
        %v3101 = vrot.slane %v2863, %v3100
        %3103 = vmatprep.subr.mxu0 0.0
        %3104 = vmatpush1.msra.mxu0 %v2851
        %3105 = vmatprep.subr.mxu0 0.0
        %3106 = vmatpush1.msra.mxu0 %v2852
        %3107 = vmatprep.subr.mxu0 0.0
        %3108 = vmatpush1.msra.mxu0 %v2853
        %3109 = vmatprep.subr.mxu0 0.0
        %3110 = vmatpush1.msra.mxu0 %v2854
        %3111 = vmatprep.subr.mxu0 0.0
        %3112 = vmatpush1.msra.mxu0 0.0
        %3113 = vmatprep.subr.mxu0 0.0
        %3114 = vmatpush1.msra.mxu0 0.0
        %3115 = vmatprep.subr.mxu0 0.0
        %3116 = vmatpush1.msra.mxu0 0.0
        %3117 = vmatprep.subr.mxu0 0.0
        %3118 = vmatpush1.msra.mxu0 0.0
        %3119 = vmatprep.subr.mxu0 0.0
        %3120 = vmatpush1.msra.mxu0 0.0
        %3121 = vmatprep.subr.mxu0 0.0
        %3122 = vmatpush1.msra.mxu0 0.0
        %3123 = vmatprep.subr.mxu0 0.0
        %3124 = vmatpush1.msra.mxu0 0.0
        %3125 = vmatprep.subr.mxu0 0.0
        %3126 = vmatpush1.msra.mxu0 0.0
        %3127 = vmatprep.subr.mxu0 0.0
        %3128 = vmatpush1.msra.mxu0 0.0
        %3129 = vmatprep.subr.mxu0 0.0
        %3130 = vmatpush1.msra.mxu0 0.0
        %3131 = vmatprep.subr.mxu0 0.0
        %3132 = vmatpush1.msra.mxu0 0.0
        %3133 = vmatprep.subr.mxu0 0.0
        %3134 = vmatpush1.msra.mxu0 0.0
        %3135 = vmatprep.subr.mxu0 0.0
        %3136 = vmatpush1.msra.mxu0 0.0
        %3137 = vmatprep.subr.mxu0 0.0
        %3138 = vmatpush1.msra.mxu0 0.0
        %3139 = vmatprep.subr.mxu0 0.0
        %3140 = vmatpush1.msra.mxu0 0.0
        %3141 = vmatprep.subr.mxu0 0.0
        %3142 = vmatpush1.msra.mxu0 0.0
        %3143 = vmatprep.subr.mxu0 0.0
        %3144 = vmatpush1.msra.mxu0 0.0
        %3145 = vmatprep.subr.mxu0 0.0
        %3146 = vmatpush1.msra.mxu0 0.0
        %3147 = vmatprep.subr.mxu0 0.0
        %3148 = vmatpush1.msra.mxu0 0.0
        %3149 = vmatprep.subr.mxu0 0.0
        %3150 = vmatpush1.msra.mxu0 0.0
        %3151 = vmatprep.subr.mxu0 0.0
        %3152 = vmatpush1.msra.mxu0 0.0
        %3153 = vmatprep.subr.mxu0 0.0
        %3154 = vmatpush1.msra.mxu0 0.0
        %3155 = vmatprep.subr.mxu0 0.0
        %3156 = vmatpush1.msra.mxu0 0.0
        %3157 = vmatprep.subr.mxu0 0.0
        %3158 = vmatpush1.msra.mxu0 0.0
        %3159 = vmatprep.subr.mxu0 0.0
        %3160 = vmatpush1.msra.mxu0 0.0
        %3161 = vmatprep.subr.mxu0 0.0
        %3162 = vmatpush1.msra.mxu0 0.0
        %3163 = vmatprep.subr.mxu0 0.0
        %3164 = vmatpush1.msra.mxu0 0.0
        %3165 = vmatprep.subr.mxu0 0.0
        %3166 = vmatpush1.msra.mxu0 0.0
        %3167 = vmatprep.mubr.f32.mxu0 0.0
        %3168 = vmatmul.mubr.f32.gmra.mrb[0].mxu0 %v906
        %v3169 = vpop.f32.mrb[0].mxu0
        %v3170 = vadd.f32 %v3101, %v3169
        %v3171 = vpop.f32.mrb[0].mxu0
        %3172 = vmatprep.mubr.f32.mxu0 0.0
        %3173 = vmatmul.mubr.f32.gmra.mrb[0].mxu0 %v909
        %v3174 = vpop.f32.mrb[0].mxu0
        %v3175 = vadd.f32 %v3101, %v3174
        %v3176 = vpop.f32.mrb[0].mxu0
        %3177 = vmatprep.mubr.f32.mxu0 0.0
        %3178 = vmatmul.mubr.f32.gmra.mrb[0].mxu0 %v912
        %v3179 = vpop.f32.mrb[0].mxu0
        %v3180 = vadd.f32 %v3101, %v3179
        %v3181 = vpop.f32.mrb[0].mxu0
        %3182 = vmatprep.mubr.f32.mxu0 0.0
        %3183 = vmatmul.mubr.f32.gmra.mrb[0].mxu0 %v915
        %v3184 = vpop.f32.mrb[0].mxu0
        %v3185 = vadd.f32 %v3101, %v3184
        %v3186 = vpop.f32.mrb[0].mxu0
        %3187 = vmatprep.mubr.f32.mxu0 0.0
        %3188 = vmatmul.mubr.f32.gmra.mrb[0].mxu0 %v918
        %v3189 = vpop.f32.mrb[0].mxu0
        %v3190 = vadd.f32 %v3101, %v3189
        %v3191 = vpop.f32.mrb[0].mxu0
        %3192 = vmatprep.mubr.f32.mxu0 0.0
        %3193 = vmatmul.mubr.f32.gmra.mrb[0].mxu0 %v921
        %v3194 = vpop.f32.mrb[0].mxu0
        %v3195 = vadd.f32 %v3101, %v3194
        %v3196 = vpop.f32.mrb[0].mxu0
        %3197 = vmatprep.mubr.f32.mxu0 0.0
        %3198 = vmatmul.mubr.f32.gmra.mrb[0].mxu0 %v924
        %v3199 = vpop.f32.mrb[0].mxu0
        %v3200 = vadd.f32 %v3101, %v3199
        %v3201 = vpop.f32.mrb[0].mxu0
        %3202 = vmatprep.mubr.f32.mxu0 0.0
        %3203 = vmatmul.mubr.f32.gmra.mrb[0].mxu0 %v927
        %v3204 = vpop.f32.mrb[0].mxu0
        %v3205 = vadd.f32 %v3101, %v3204
        %v3206 = vpop.f32.mrb[0].mxu0
        %3207 = vmatprep.mubr.f32.mxu0 0.0
        %3208 = vmatmul.mubr.f32.gmra.mrb[0].mxu0 %v930
        %v3209 = vpop.f32.mrb[0].mxu0
        %v3210 = vadd.f32 %v3101, %v3209
        %v3211 = vpop.f32.mrb[0].mxu0
        %3212 = vmatprep.mubr.f32.mxu0 0.0
        %3213 = vmatmul.mubr.f32.gmra.mrb[0].mxu0 %v933
        %v3214 = vpop.f32.mrb[0].mxu0
        %v3215 = vadd.f32 %v3101, %v3214
        %v3216 = vpop.f32.mrb[0].mxu0
        %3217 = vmatprep.mubr.f32.mxu0 0.0
        %3218 = vmatmul.mubr.f32.gmra.mrb[0].mxu0 %v936
        %v3219 = vpop.f32.mrb[0].mxu0
        %v3220 = vadd.f32 %v3101, %v3219
        %v3221 = vpop.f32.mrb[0].mxu0
        %3222 = vmatprep.mubr.f32.mxu0 0.0
        %3223 = vmatmul.mubr.f32.gmra.mrb[0].mxu0 %v939
        %v3224 = vpop.f32.mrb[0].mxu0
        %v3225 = vadd.f32 %v3101, %v3224
        %v3226 = vpop.f32.mrb[0].mxu0
        %3227 = vmatprep.mubr.f32.mxu0 0.0
        %3228 = vmatmul.mubr.f32.gmra.mrb[0].mxu0 %v942
        %v3229 = vpop.f32.mrb[0].mxu0
        %v3230 = vadd.f32 %v3101, %v3229
        %v3231 = vpop.f32.mrb[0].mxu0
        %3232 = vmatprep.mubr.f32.mxu0 0.0
        %3233 = vmatmul.mubr.f32.gmra.mrb[0].mxu0 %v945
        %v3234 = vpop.f32.mrb[0].mxu0
        %v3235 = vadd.f32 %v3101, %v3234
        %v3236 = vpop.f32.mrb[0].mxu0
        %3237 = vmatprep.mubr.f32.mxu0 0.0
        %3238 = vmatmul.mubr.f32.gmra.mrb[0].mxu0 %v948
        %v3239 = vpop.f32.mrb[0].mxu0
        %v3240 = vadd.f32 %v3101, %v3239
        %v3241 = vpop.f32.mrb[0].mxu0
        %3242 = vmatprep.mubr.f32.mxu0 0.0
        %3243 = vmatmul.mubr.f32.gmra.mrb[0].mxu0 %v951
        %v3244 = vpop.f32.mrb[0].mxu0
        %v3245 = vadd.f32 %v3101, %v3244
        %v3246 = vpop.f32.mrb[0].mxu0
        %3247 = vmatprep.mubr.f32.mxu0 0.0
        %3248 = vmatmul.mubr.f32.gmra.mrb[0].mxu0 %v954
        %v3249 = vpop.f32.mrb[0].mxu0
        %v3250 = vadd.f32 %v3101, %v3249
        %v3251 = vpop.f32.mrb[0].mxu0
        %3252 = vmatprep.mubr.f32.mxu0 0.0
        %3253 = vmatmul.mubr.f32.gmra.mrb[0].mxu0 %v957
        %v3254 = vpop.f32.mrb[0].mxu0
        %v3255 = vadd.f32 %v3101, %v3254
        %v3256 = vpop.f32.mrb[0].mxu0
        %3257 = vmatprep.mubr.f32.mxu0 0.0
        %3258 = vmatmul.mubr.f32.gmra.mrb[0].mxu0 %v960
        %v3259 = vpop.f32.mrb[0].mxu0
        %v3260 = vadd.f32 %v3101, %v3259
        %v3261 = vpop.f32.mrb[0].mxu0
        %3262 = vmatprep.mubr.f32.mxu0 0.0
        %3263 = vmatmul.mubr.f32.gmra.mrb[0].mxu0 %v963
        %v3264 = vpop.f32.mrb[0].mxu0
        %v3265 = vadd.f32 %v3101, %v3264
        %v3266 = vpop.f32.mrb[0].mxu0
        %3267 = vmatprep.mubr.f32.mxu0 0.0
        %3268 = vmatmul.mubr.f32.gmra.mrb[0].mxu0 %v966
        %v3269 = vpop.f32.mrb[0].mxu0
        %v3270 = vadd.f32 %v3101, %v3269
        %v3271 = vpop.f32.mrb[0].mxu0
        %3272 = vmatprep.mubr.f32.mxu0 0.0
        %3273 = vmatmul.mubr.f32.gmra.mrb[0].mxu0 %v969
        %v3274 = vpop.f32.mrb[0].mxu0
        %v3275 = vadd.f32 %v3101, %v3274
        %v3276 = vpop.f32.mrb[0].mxu0
        %3277 = vmatprep.mubr.f32.mxu0 0.0
        %3278 = vmatmul.mubr.f32.gmra.mrb[0].mxu0 %v972
        %v3279 = vpop.f32.mrb[0].mxu0
        %v3280 = vadd.f32 %v3101, %v3279
        %v3281 = vpop.f32.mrb[0].mxu0
        %3282 = vmatprep.mubr.f32.mxu0 0.0
        %3283 = vmatmul.mubr.f32.gmra.mrb[0].mxu0 %v975
        %v3284 = vpop.f32.mrb[0].mxu0
        %v3285 = vadd.f32 %v3101, %v3284
        %v3286 = vpop.f32.mrb[0].mxu0
        %3287 = vmatprep.mubr.f32.mxu0 0.0
        %3288 = vmatmul.mubr.f32.gmra.mrb[0].mxu0 %v978
        %v3289 = vpop.f32.mrb[0].mxu0
        %v3290 = vadd.f32 %v3101, %v3289
        %v3291 = vpop.f32.mrb[0].mxu0
        %3292 = vmatprep.mubr.f32.mxu0 0.0
        %3293 = vmatmul.mubr.f32.gmra.mrb[0].mxu0 %v981
        %v3294 = vpop.f32.mrb[0].mxu0
        %v3295 = vadd.f32 %v3101, %v3294
        %v3296 = vpop.f32.mrb[0].mxu0
        %3297 = vmatprep.mubr.f32.mxu0 0.0
        %3298 = vmatmul.mubr.f32.gmra.mrb[0].mxu0 %v984
        %v3299 = vpop.f32.mrb[0].mxu0
        %v3300 = vadd.f32 %v3101, %v3299
        %v3301 = vpop.f32.mrb[0].mxu0
        %3302 = vmatprep.mubr.f32.mxu0 0.0
        %3303 = vmatmul.mubr.f32.gmra.mrb[0].mxu0 %v987
        %v3304 = vpop.f32.mrb[0].mxu0
        %v3305 = vadd.f32 %v3101, %v3304
        %v3306 = vpop.f32.mrb[0].mxu0
        %3307 = vmatprep.mubr.f32.mxu0 0.0
        %3308 = vmatmul.mubr.f32.gmra.mrb[0].mxu0 %v990
        %v3309 = vpop.f32.mrb[0].mxu0
        %v3310 = vadd.f32 %v3101, %v3309
        %v3311 = vpop.f32.mrb[0].mxu0
        %3312 = vmatprep.mubr.f32.mxu0 0.0
        %3313 = vmatmul.mubr.f32.gmra.mrb[0].mxu0 %v993
        %v3314 = vpop.f32.mrb[0].mxu0
        %v3315 = vadd.f32 %v3101, %v3314
        %v3316 = vpop.f32.mrb[0].mxu0
        %3317 = vmatprep.mubr.f32.mxu0 0.0
        %3318 = vmatmul.mubr.f32.gmra.mrb[0].mxu0 %v996
        %v3319 = vpop.f32.mrb[0].mxu0
        %v3320 = vadd.f32 %v3101, %v3319
        %v3321 = vpop.f32.mrb[0].mxu0
        %3322 = vmatprep.mubr.f32.mxu0 0.0
        %3323 = vmatmul.mubr.f32.gmra.mrb[0].mxu0 %v999
        %v3324 = vpop.f32.mrb[0].mxu0
        %v3325 = vadd.f32 %v3101, %v3324
        %v3326 = vpop.f32.mrb[0].mxu0
        %3327 = vdwg.mxu0
        %v3329 = vlaneseq
        %v3330 = vshrl.u32 %v3329, 7
        %v3331 = vsub.s32 0, %v3330
        %v3332 = vrot.slane %v2865, %v3331
        %3334 = vmatprep.subr.mxu0 0.0
        %3335 = vmatpush1.msra.mxu0 %v2856
        %3336 = vmatprep.subr.mxu0 0.0
        %3337 = vmatpush1.msra.mxu0 %v2857
        %3338 = vmatprep.subr.mxu0 0.0
        %3339 = vmatpush1.msra.mxu0 %v2858
        %3340 = vmatprep.subr.mxu0 0.0
        %3341 = vmatpush1.msra.mxu0 %v2859
        %3342 = vmatprep.subr.mxu0 0.0
        %3343 = vmatpush1.msra.mxu0 0.0
        %3344 = vmatprep.subr.mxu0 0.0
        %3345 = vmatpush1.msra.mxu0 0.0
        %3346 = vmatprep.subr.mxu0 0.0
        %3347 = vmatpush1.msra.mxu0 0.0
        %3348 = vmatprep.subr.mxu0 0.0
        %3349 = vmatpush1.msra.mxu0 0.0
        %3350 = vmatprep.subr.mxu0 0.0
        %3351 = vmatpush1.msra.mxu0 0.0
        %3352 = vmatprep.subr.mxu0 0.0
        %3353 = vmatpush1.msra.mxu0 0.0
        %3354 = vmatprep.subr.mxu0 0.0
        %3355 = vmatpush1.msra.mxu0 0.0
        %3356 = vmatprep.subr.mxu0 0.0
        %3357 = vmatpush1.msra.mxu0 0.0
        %3358 = vmatprep.subr.mxu0 0.0
        %3359 = vmatpush1.msra.mxu0 0.0
        %3360 = vmatprep.subr.mxu0 0.0
        %3361 = vmatpush1.msra.mxu0 0.0
        %3362 = vmatprep.subr.mxu0 0.0
        %3363 = vmatpush1.msra.mxu0 0.0
        %3364 = vmatprep.subr.mxu0 0.0
        %3365 = vmatpush1.msra.mxu0 0.0
        %3366 = vmatprep.subr.mxu0 0.0
        %3367 = vmatpush1.msra.mxu0 0.0
        %3368 = vmatprep.subr.mxu0 0.0
        %3369 = vmatpush1.msra.mxu0 0.0
        %3370 = vmatprep.subr.mxu0 0.0
        %3371 = vmatpush1.msra.mxu0 0.0
        %3372 = vmatprep.subr.mxu0 0.0
        %3373 = vmatpush1.msra.mxu0 0.0
        %3374 = vmatprep.subr.mxu0 0.0
        %3375 = vmatpush1.msra.mxu0 0.0
        %3376 = vmatprep.subr.mxu0 0.0
        %3377 = vmatpush1.msra.mxu0 0.0
        %3378 = vmatprep.subr.mxu0 0.0
        %3379 = vmatpush1.msra.mxu0 0.0
        %3380 = vmatprep.subr.mxu0 0.0
        %3381 = vmatpush1.msra.mxu0 0.0
        %3382 = vmatprep.subr.mxu0 0.0
        %3383 = vmatpush1.msra.mxu0 0.0
        %3384 = vmatprep.subr.mxu0 0.0
        %3385 = vmatpush1.msra.mxu0 0.0
        %3386 = vmatprep.subr.mxu0 0.0
        %3387 = vmatpush1.msra.mxu0 0.0
        %3388 = vmatprep.subr.mxu0 0.0
        %3389 = vmatpush1.msra.mxu0 0.0
        %3390 = vmatprep.subr.mxu0 0.0
        %3391 = vmatpush1.msra.mxu0 0.0
        %3392 = vmatprep.subr.mxu0 0.0
        %3393 = vmatpush1.msra.mxu0 0.0
        %3394 = vmatprep.subr.mxu0 0.0
        %3395 = vmatpush1.msra.mxu0 0.0
        %3396 = vmatprep.subr.mxu0 0.0
        %3397 = vmatpush1.msra.mxu0 0.0
        %3398 = vmatprep.mubr.f32.mxu0 0.0
        %3399 = vmatmul.mubr.f32.gmra.mrb[0].mxu0 %v906
        %v3400 = vpop.f32.mrb[0].mxu0
        %v3401 = vadd.f32 %v3332, %v3400
        %v3402 = vpop.f32.mrb[0].mxu0
        %3403 = vmatprep.mubr.f32.mxu0 0.0
        %3404 = vmatmul.mubr.f32.gmra.mrb[0].mxu0 %v909
        %v3405 = vpop.f32.mrb[0].mxu0
        %v3406 = vadd.f32 %v3332, %v3405
        %v3407 = vpop.f32.mrb[0].mxu0
        %3408 = vmatprep.mubr.f32.mxu0 0.0
        %3409 = vmatmul.mubr.f32.gmra.mrb[0].mxu0 %v912
        %v3410 = vpop.f32.mrb[0].mxu0
        %v3411 = vadd.f32 %v3332, %v3410
        %v3412 = vpop.f32.mrb[0].mxu0
        %3413 = vmatprep.mubr.f32.mxu0 0.0
        %3414 = vmatmul.mubr.f32.gmra.mrb[0].mxu0 %v915
        %v3415 = vpop.f32.mrb[0].mxu0
        %v3416 = vadd.f32 %v3332, %v3415
        %v3417 = vpop.f32.mrb[0].mxu0
        %3418 = vmatprep.mubr.f32.mxu0 0.0
        %3419 = vmatmul.mubr.f32.gmra.mrb[0].mxu0 %v918
        %v3420 = vpop.f32.mrb[0].mxu0
        %v3421 = vadd.f32 %v3332, %v3420
        %v3422 = vpop.f32.mrb[0].mxu0
        %3423 = vmatprep.mubr.f32.mxu0 0.0
        %3424 = vmatmul.mubr.f32.gmra.mrb[0].mxu0 %v921
        %v3425 = vpop.f32.mrb[0].mxu0
        %v3426 = vadd.f32 %v3332, %v3425
        %v3427 = vpop.f32.mrb[0].mxu0
        %3428 = vmatprep.mubr.f32.mxu0 0.0
        %3429 = vmatmul.mubr.f32.gmra.mrb[0].mxu0 %v924
        %v3430 = vpop.f32.mrb[0].mxu0
        %v3431 = vadd.f32 %v3332, %v3430
        %v3432 = vpop.f32.mrb[0].mxu0
        %3433 = vmatprep.mubr.f32.mxu0 0.0
        %3434 = vmatmul.mubr.f32.gmra.mrb[0].mxu0 %v927
        %v3435 = vpop.f32.mrb[0].mxu0
        %v3436 = vadd.f32 %v3332, %v3435
        %v3437 = vpop.f32.mrb[0].mxu0
        %3438 = vmatprep.mubr.f32.mxu0 0.0
        %3439 = vmatmul.mubr.f32.gmra.mrb[0].mxu0 %v930
        %v3440 = vpop.f32.mrb[0].mxu0
        %v3441 = vadd.f32 %v3332, %v3440
        %v3442 = vpop.f32.mrb[0].mxu0
        %3443 = vmatprep.mubr.f32.mxu0 0.0
        %3444 = vmatmul.mubr.f32.gmra.mrb[0].mxu0 %v933
        %v3445 = vpop.f32.mrb[0].mxu0
        %v3446 = vadd.f32 %v3332, %v3445
        %v3447 = vpop.f32.mrb[0].mxu0
        %3448 = vmatprep.mubr.f32.mxu0 0.0
        %3449 = vmatmul.mubr.f32.gmra.mrb[0].mxu0 %v936
        %v3450 = vpop.f32.mrb[0].mxu0
        %v3451 = vadd.f32 %v3332, %v3450
        %v3452 = vpop.f32.mrb[0].mxu0
        %3453 = vmatprep.mubr.f32.mxu0 0.0
        %3454 = vmatmul.mubr.f32.gmra.mrb[0].mxu0 %v939
        %v3455 = vpop.f32.mrb[0].mxu0
        %v3456 = vadd.f32 %v3332, %v3455
        %v3457 = vpop.f32.mrb[0].mxu0
        %3458 = vmatprep.mubr.f32.mxu0 0.0
        %3459 = vmatmul.mubr.f32.gmra.mrb[0].mxu0 %v942
        %v3460 = vpop.f32.mrb[0].mxu0
        %v3461 = vadd.f32 %v3332, %v3460
        %v3462 = vpop.f32.mrb[0].mxu0
        %3463 = vmatprep.mubr.f32.mxu0 0.0
        %3464 = vmatmul.mubr.f32.gmra.mrb[0].mxu0 %v945
        %v3465 = vpop.f32.mrb[0].mxu0
        %v3466 = vadd.f32 %v3332, %v3465
        %v3467 = vpop.f32.mrb[0].mxu0
        %3468 = vmatprep.mubr.f32.mxu0 0.0
        %3469 = vmatmul.mubr.f32.gmra.mrb[0].mxu0 %v948
        %v3470 = vpop.f32.mrb[0].mxu0
        %v3471 = vadd.f32 %v3332, %v3470
        %v3472 = vpop.f32.mrb[0].mxu0
        %3473 = vmatprep.mubr.f32.mxu0 0.0
        %3474 = vmatmul.mubr.f32.gmra.mrb[0].mxu0 %v951
        %v3475 = vpop.f32.mrb[0].mxu0
        %v3476 = vadd.f32 %v3332, %v3475
        %v3477 = vpop.f32.mrb[0].mxu0
        %3478 = vmatprep.mubr.f32.mxu0 0.0
        %3479 = vmatmul.mubr.f32.gmra.mrb[0].mxu0 %v954
        %v3480 = vpop.f32.mrb[0].mxu0
        %v3481 = vadd.f32 %v3332, %v3480
        %v3482 = vpop.f32.mrb[0].mxu0
        %3483 = vmatprep.mubr.f32.mxu0 0.0
        %3484 = vmatmul.mubr.f32.gmra.mrb[0].mxu0 %v957
        %v3485 = vpop.f32.mrb[0].mxu0
        %v3486 = vadd.f32 %v3332, %v3485
        %v3487 = vpop.f32.mrb[0].mxu0
        %3488 = vmatprep.mubr.f32.mxu0 0.0
        %3489 = vmatmul.mubr.f32.gmra.mrb[0].mxu0 %v960
        %v3490 = vpop.f32.mrb[0].mxu0
        %v3491 = vadd.f32 %v3332, %v3490
        %v3492 = vpop.f32.mrb[0].mxu0
        %3493 = vmatprep.mubr.f32.mxu0 0.0
        %3494 = vmatmul.mubr.f32.gmra.mrb[0].mxu0 %v963
        %v3495 = vpop.f32.mrb[0].mxu0
        %v3496 = vadd.f32 %v3332, %v3495
        %v3497 = vpop.f32.mrb[0].mxu0
        %3498 = vmatprep.mubr.f32.mxu0 0.0
        %3499 = vmatmul.mubr.f32.gmra.mrb[0].mxu0 %v966
        %v3500 = vpop.f32.mrb[0].mxu0
        %v3501 = vadd.f32 %v3332, %v3500
        %v3502 = vpop.f32.mrb[0].mxu0
        %3503 = vmatprep.mubr.f32.mxu0 0.0
        %3504 = vmatmul.mubr.f32.gmra.mrb[0].mxu0 %v969
        %v3505 = vpop.f32.mrb[0].mxu0
        %v3506 = vadd.f32 %v3332, %v3505
        %v3507 = vpop.f32.mrb[0].mxu0
        %3508 = vmatprep.mubr.f32.mxu0 0.0
        %3509 = vmatmul.mubr.f32.gmra.mrb[0].mxu0 %v972
        %v3510 = vpop.f32.mrb[0].mxu0
        %v3511 = vadd.f32 %v3332, %v3510
        %v3512 = vpop.f32.mrb[0].mxu0
        %3513 = vmatprep.mubr.f32.mxu0 0.0
        %3514 = vmatmul.mubr.f32.gmra.mrb[0].mxu0 %v975
        %v3515 = vpop.f32.mrb[0].mxu0
        %v3516 = vadd.f32 %v3332, %v3515
        %v3517 = vpop.f32.mrb[0].mxu0
        %3518 = vmatprep.mubr.f32.mxu0 0.0
        %3519 = vmatmul.mubr.f32.gmra.mrb[0].mxu0 %v978
        %v3520 = vpop.f32.mrb[0].mxu0
        %v3521 = vadd.f32 %v3332, %v3520
        %v3522 = vpop.f32.mrb[0].mxu0
        %3523 = vmatprep.mubr.f32.mxu0 0.0
        %3524 = vmatmul.mubr.f32.gmra.mrb[0].mxu0 %v981
        %v3525 = vpop.f32.mrb[0].mxu0
        %v3526 = vadd.f32 %v3332, %v3525
        %v3527 = vpop.f32.mrb[0].mxu0
        %3528 = vmatprep.mubr.f32.mxu0 0.0
        %3529 = vmatmul.mubr.f32.gmra.mrb[0].mxu0 %v984
        %v3530 = vpop.f32.mrb[0].mxu0
        %v3531 = vadd.f32 %v3332, %v3530
        %v3532 = vpop.f32.mrb[0].mxu0
        %3533 = vmatprep.mubr.f32.mxu0 0.0
        %3534 = vmatmul.mubr.f32.gmra.mrb[0].mxu0 %v987
        %v3535 = vpop.f32.mrb[0].mxu0
        %v3536 = vadd.f32 %v3332, %v3535
        %v3537 = vpop.f32.mrb[0].mxu0
        %3538 = vmatprep.mubr.f32.mxu0 0.0
        %3539 = vmatmul.mubr.f32.gmra.mrb[0].mxu0 %v990
        %v3540 = vpop.f32.mrb[0].mxu0
        %v3541 = vadd.f32 %v3332, %v3540
        %v3542 = vpop.f32.mrb[0].mxu0
        %3543 = vmatprep.mubr.f32.mxu0 0.0
        %3544 = vmatmul.mubr.f32.gmra.mrb[0].mxu0 %v993
        %v3545 = vpop.f32.mrb[0].mxu0
        %v3546 = vadd.f32 %v3332, %v3545
        %v3547 = vpop.f32.mrb[0].mxu0
        %3548 = vmatprep.mubr.f32.mxu0 0.0
        %3549 = vmatmul.mubr.f32.gmra.mrb[0].mxu0 %v996
        %v3550 = vpop.f32.mrb[0].mxu0
        %v3551 = vadd.f32 %v3332, %v3550
        %v3552 = vpop.f32.mrb[0].mxu0
        %3553 = vmatprep.mubr.f32.mxu0 0.0
        %3554 = vmatmul.mubr.f32.gmra.mrb[0].mxu0 %v999
        %v3555 = vpop.f32.mrb[0].mxu0
        %v3556 = vadd.f32 %v3332, %v3555
        %v3557 = vpop.f32.mrb[0].mxu0
        %3558 = vdwg.mxu0
        %v3560 = vsel %vm1688, %v2939, 0
        %v3563 = vsel %vm1688, %v2944, 0
        %v3566 = vsel %vm1688, %v2949, 0
        %v3569 = vsel %vm1688, %v2954, 0
        %v3572 = vsel %vm1688, %v2959, 0
        %v3575 = vsel %vm1688, %v2964, 0
        %v3578 = vsel %vm1688, %v2969, 0
        %v3581 = vsel %vm1688, %v2974, 0
        %v3584 = vsel %vm1688, %v2979, 0
        %v3587 = vsel %vm1688, %v2984, 0
        %v3590 = vsel %vm1688, %v2989, 0
        %v3593 = vsel %vm1688, %v2994, 0
        %v3596 = vsel %vm1688, %v2999, 0
        %v3599 = vsel %vm1688, %v3004, 0
        %v3602 = vsel %vm1688, %v3009, 0
        %v3605 = vsel %vm1688, %v3014, 0
        %v3608 = vsel %vm1688, %v3019, 0
        %v3611 = vsel %vm1688, %v3024, 0
        %v3614 = vsel %vm1688, %v3029, 0
        %v3617 = vsel %vm1688, %v3034, 0
        %v3620 = vsel %vm1688, %v3039, 0
        %v3623 = vsel %vm1688, %v3044, 0
        %v3626 = vsel %vm1688, %v3049, 0
        %v3629 = vsel %vm1688, %v3054, 0
        %v3632 = vsel %vm1688, %v3059, 0
        %v3635 = vsel %vm1688, %v3064, 0
        %v3638 = vsel %vm1688, %v3069, 0
        %v3641 = vsel %vm1688, %v3074, 0
        %v3644 = vsel %vm1688, %v3079, 0
        %v3647 = vsel %vm1688, %v3084, 0
        %v3650 = vsel %vm1688, %v3089, 0
        %v3653 = vsel %vm1688, %v3094, 0
        %v3656 = vsel %vm1688, %v3170, 0
        %v3659 = vsel %vm1688, %v3175, 0
        %v3662 = vsel %vm1688, %v3180, 0
        %v3665 = vsel %vm1688, %v3185, 0
        %v3668 = vsel %vm1688, %v3190, 0
        %v3671 = vsel %vm1688, %v3195, 0
        %v3674 = vsel %vm1688, %v3200, 0
        %v3677 = vsel %vm1688, %v3205, 0
        %v3680 = vsel %vm1688, %v3210, 0
        %v3683 = vsel %vm1688, %v3215, 0
        %v3686 = vsel %vm1688, %v3220, 0
        %v3689 = vsel %vm1688, %v3225, 0
        %v3692 = vsel %vm1688, %v3230, 0
        %v3695 = vsel %vm1688, %v3235, 0
        %v3698 = vsel %vm1688, %v3240, 0
        %v3701 = vsel %vm1688, %v3245, 0
        %v3704 = vsel %vm1688, %v3250, 0
        %v3707 = vsel %vm1688, %v3255, 0
        %v3710 = vsel %vm1688, %v3260, 0
        %v3713 = vsel %vm1688, %v3265, 0
        %v3716 = vsel %vm1688, %v3270, 0
        %v3719 = vsel %vm1688, %v3275, 0
        %v3722 = vsel %vm1688, %v3280, 0
        %v3725 = vsel %vm1688, %v3285, 0
        %v3728 = vsel %vm1688, %v3290, 0
        %v3731 = vsel %vm1688, %v3295, 0
        %v3734 = vsel %vm1688, %v3300, 0
        %v3737 = vsel %vm1688, %v3305, 0
        %v3740 = vsel %vm1688, %v3310, 0
        %v3743 = vsel %vm1688, %v3315, 0
        %v3746 = vsel %vm1688, %v3320, 0
        %v3749 = vsel %vm1688, %v3325, 0
        %3751 = vmatprep.subr.mxu0 0.0
        %3752 = vmatpush1.xpose.msra.mxu0 %v3656
        %3753 = vmatprep.subr.mxu0 0.0
        %3754 = vmatpush1.xpose.msra.mxu0 %v3659
        %3755 = vmatprep.subr.mxu0 0.0
        %3756 = vmatpush1.xpose.msra.mxu0 %v3662
        %3757 = vmatprep.subr.mxu0 0.0
        %3758 = vmatpush1.xpose.msra.mxu0 %v3665
        %3759 = vmatprep.subr.mxu0 0.0
        %3760 = vmatpush1.xpose.msra.mxu0 %v3668
        %3761 = vmatprep.subr.mxu0 0.0
        %3762 = vmatpush1.xpose.msra.mxu0 %v3671
        %3763 = vmatprep.subr.mxu0 0.0
        %3764 = vmatpush1.xpose.msra.mxu0 %v3674
        %3765 = vmatprep.subr.mxu0 0.0
        %3766 = vmatpush1.xpose.msra.mxu0 %v3677
        %3767 = vmatprep.subr.mxu0 0.0
        %3768 = vmatpush1.xpose.msra.mxu0 %v3680
        %3769 = vmatprep.subr.mxu0 0.0
        %3770 = vmatpush1.xpose.msra.mxu0 %v3683
        %3771 = vmatprep.subr.mxu0 0.0
        %3772 = vmatpush1.xpose.msra.mxu0 %v3686
        %3773 = vmatprep.subr.mxu0 0.0
        %3774 = vmatpush1.xpose.msra.mxu0 %v3689
        %3775 = vmatprep.subr.mxu0 0.0
        %3776 = vmatpush1.xpose.msra.mxu0 %v3692
        %3777 = vmatprep.subr.mxu0 0.0
        %3778 = vmatpush1.xpose.msra.mxu0 %v3695
        %3779 = vmatprep.subr.mxu0 0.0
        %3780 = vmatpush1.xpose.msra.mxu0 %v3698
        %3781 = vmatprep.subr.mxu0 0.0
        %3782 = vmatpush1.xpose.msra.mxu0 %v3701
        %3783 = vmatprep.subr.mxu0 0.0
        %3784 = vmatpush1.xpose.msra.mxu0 %v3704
        %3785 = vmatprep.subr.mxu0 0.0
        %3786 = vmatpush1.xpose.msra.mxu0 %v3707
        %3787 = vmatprep.subr.mxu0 0.0
        %3788 = vmatpush1.xpose.msra.mxu0 %v3710
        %3789 = vmatprep.subr.mxu0 0.0
        %3790 = vmatpush1.xpose.msra.mxu0 %v3713
        %3791 = vmatprep.subr.mxu0 0.0
        %3792 = vmatpush1.xpose.msra.mxu0 %v3716
        %3793 = vmatprep.subr.mxu0 0.0
        %3794 = vmatpush1.xpose.msra.mxu0 %v3719
        %3795 = vmatprep.subr.mxu0 0.0
        %3796 = vmatpush1.xpose.msra.mxu0 %v3722
        %3797 = vmatprep.subr.mxu0 0.0
        %3798 = vmatpush1.xpose.msra.mxu0 %v3725
        %3799 = vmatprep.subr.mxu0 0.0
        %3800 = vmatpush1.xpose.msra.mxu0 %v3728
        %3801 = vmatprep.subr.mxu0 0.0
        %3802 = vmatpush1.xpose.msra.mxu0 %v3731
        %3803 = vmatprep.subr.mxu0 0.0
        %3804 = vmatpush1.xpose.msra.mxu0 %v3734
        %3805 = vmatprep.subr.mxu0 0.0
        %3806 = vmatpush1.xpose.msra.mxu0 %v3737
        %3807 = vmatprep.subr.mxu0 0.0
        %3808 = vmatpush1.xpose.msra.mxu0 %v3740
        %3809 = vmatprep.subr.mxu0 0.0
        %3810 = vmatpush1.xpose.msra.mxu0 %v3743
        %3811 = vmatprep.subr.mxu0 0.0
        %3812 = vmatpush1.xpose.msra.mxu0 %v3746
        %3813 = vmatprep.subr.mxu0 0.0
        %3814 = vmatpush1.xpose.msra.mxu0 %v3749
        %3815 = vmatprep.mubr.f32.mxu0 0.0
        %3816 = vmatmul.mubr.f32.gmra.mrb[0].mxu0 %v3560
        %v3817 = vpop.f32.mrb[0].mxu0
        %v3818 = vadd.f32 0.0, %v3817
        %v3819 = vpop.f32.mrb[0].mxu0
        %v3820 = vadd.f32 0.0, %v3819
        %3821 = vmatprep.mubr.f32.mxu0 0.0
        %3822 = vmatmul.mubr.f32.gmra.mrb[0].mxu0 %v3563
        %v3823 = vpop.f32.mrb[0].mxu0
        %v3824 = vadd.f32 0.0, %v3823
        %v3825 = vpop.f32.mrb[0].mxu0
        %v3826 = vadd.f32 0.0, %v3825
        %3827 = vmatprep.mubr.f32.mxu0 0.0
        %3828 = vmatmul.mubr.f32.gmra.mrb[0].mxu0 %v3566
        %v3829 = vpop.f32.mrb[0].mxu0
        %v3830 = vadd.f32 0.0, %v3829
        %v3831 = vpop.f32.mrb[0].mxu0
        %v3832 = vadd.f32 0.0, %v3831
        %3833 = vmatprep.mubr.f32.mxu0 0.0
        %3834 = vmatmul.mubr.f32.gmra.mrb[0].mxu0 %v3569
        %v3835 = vpop.f32.mrb[0].mxu0
        %v3836 = vadd.f32 0.0, %v3835
        %v3837 = vpop.f32.mrb[0].mxu0
        %v3838 = vadd.f32 0.0, %v3837
        %3839 = vmatprep.mubr.f32.mxu0 0.0
        %3840 = vmatmul.mubr.f32.gmra.mrb[0].mxu0 %v3572
        %v3841 = vpop.f32.mrb[0].mxu0
        %v3842 = vadd.f32 0.0, %v3841
        %v3843 = vpop.f32.mrb[0].mxu0
        %v3844 = vadd.f32 0.0, %v3843
        %3845 = vmatprep.mubr.f32.mxu0 0.0
        %3846 = vmatmul.mubr.f32.gmra.mrb[0].mxu0 %v3575
        %v3847 = vpop.f32.mrb[0].mxu0
        %v3848 = vadd.f32 0.0, %v3847
        %v3849 = vpop.f32.mrb[0].mxu0
        %v3850 = vadd.f32 0.0, %v3849
        %3851 = vmatprep.mubr.f32.mxu0 0.0
        %3852 = vmatmul.mubr.f32.gmra.mrb[0].mxu0 %v3578
        %v3853 = vpop.f32.mrb[0].mxu0
        %v3854 = vadd.f32 0.0, %v3853
        %v3855 = vpop.f32.mrb[0].mxu0
        %v3856 = vadd.f32 0.0, %v3855
        %3857 = vmatprep.mubr.f32.mxu0 0.0
        %3858 = vmatmul.mubr.f32.gmra.mrb[0].mxu0 %v3581
        %v3859 = vpop.f32.mrb[0].mxu0
        %v3860 = vadd.f32 0.0, %v3859
        %v3861 = vpop.f32.mrb[0].mxu0
        %v3862 = vadd.f32 0.0, %v3861
        %3863 = vmatprep.mubr.f32.mxu0 0.0
        %3864 = vmatmul.mubr.f32.gmra.mrb[0].mxu0 %v3584
        %v3865 = vpop.f32.mrb[0].mxu0
        %v3866 = vadd.f32 0.0, %v3865
        %v3867 = vpop.f32.mrb[0].mxu0
        %v3868 = vadd.f32 0.0, %v3867
        %3869 = vmatprep.mubr.f32.mxu0 0.0
        %3870 = vmatmul.mubr.f32.gmra.mrb[0].mxu0 %v3587
        %v3871 = vpop.f32.mrb[0].mxu0
        %v3872 = vadd.f32 0.0, %v3871
        %v3873 = vpop.f32.mrb[0].mxu0
        %v3874 = vadd.f32 0.0, %v3873
        %3875 = vmatprep.mubr.f32.mxu0 0.0
        %3876 = vmatmul.mubr.f32.gmra.mrb[0].mxu0 %v3590
        %v3877 = vpop.f32.mrb[0].mxu0
        %v3878 = vadd.f32 0.0, %v3877
        %v3879 = vpop.f32.mrb[0].mxu0
        %v3880 = vadd.f32 0.0, %v3879
        %3881 = vmatprep.mubr.f32.mxu0 0.0
        %3882 = vmatmul.mubr.f32.gmra.mrb[0].mxu0 %v3593
        %v3883 = vpop.f32.mrb[0].mxu0
        %v3884 = vadd.f32 0.0, %v3883
        %v3885 = vpop.f32.mrb[0].mxu0
        %v3886 = vadd.f32 0.0, %v3885
        %3887 = vmatprep.mubr.f32.mxu0 0.0
        %3888 = vmatmul.mubr.f32.gmra.mrb[0].mxu0 %v3596
        %v3889 = vpop.f32.mrb[0].mxu0
        %v3890 = vadd.f32 0.0, %v3889
        %v3891 = vpop.f32.mrb[0].mxu0
        %v3892 = vadd.f32 0.0, %v3891
        %3893 = vmatprep.mubr.f32.mxu0 0.0
        %3894 = vmatmul.mubr.f32.gmra.mrb[0].mxu0 %v3599
        %v3895 = vpop.f32.mrb[0].mxu0
        %v3896 = vadd.f32 0.0, %v3895
        %v3897 = vpop.f32.mrb[0].mxu0
        %v3898 = vadd.f32 0.0, %v3897
        %3899 = vmatprep.mubr.f32.mxu0 0.0
        %3900 = vmatmul.mubr.f32.gmra.mrb[0].mxu0 %v3602
        %v3901 = vpop.f32.mrb[0].mxu0
        %v3902 = vadd.f32 0.0, %v3901
        %v3903 = vpop.f32.mrb[0].mxu0
        %v3904 = vadd.f32 0.0, %v3903
        %3905 = vmatprep.mubr.f32.mxu0 0.0
        %3906 = vmatmul.mubr.f32.gmra.mrb[0].mxu0 %v3605
        %v3907 = vpop.f32.mrb[0].mxu0
        %v3908 = vadd.f32 0.0, %v3907
        %v3909 = vpop.f32.mrb[0].mxu0
        %v3910 = vadd.f32 0.0, %v3909
        %3911 = vmatprep.mubr.f32.mxu0 0.0
        %3912 = vmatmul.mubr.f32.gmra.mrb[0].mxu0 %v3608
        %v3913 = vpop.f32.mrb[0].mxu0
        %v3914 = vadd.f32 0.0, %v3913
        %v3915 = vpop.f32.mrb[0].mxu0
        %v3916 = vadd.f32 0.0, %v3915
        %3917 = vmatprep.mubr.f32.mxu0 0.0
        %3918 = vmatmul.mubr.f32.gmra.mrb[0].mxu0 %v3611
        %v3919 = vpop.f32.mrb[0].mxu0
        %v3920 = vadd.f32 0.0, %v3919
        %v3921 = vpop.f32.mrb[0].mxu0
        %v3922 = vadd.f32 0.0, %v3921
        %3923 = vmatprep.mubr.f32.mxu0 0.0
        %3924 = vmatmul.mubr.f32.gmra.mrb[0].mxu0 %v3614
        %v3925 = vpop.f32.mrb[0].mxu0
        %v3926 = vadd.f32 0.0, %v3925
        %v3927 = vpop.f32.mrb[0].mxu0
        %v3928 = vadd.f32 0.0, %v3927
        %3929 = vmatprep.mubr.f32.mxu0 0.0
        %3930 = vmatmul.mubr.f32.gmra.mrb[0].mxu0 %v3617
        %v3931 = vpop.f32.mrb[0].mxu0
        %v3932 = vadd.f32 0.0, %v3931
        %v3933 = vpop.f32.mrb[0].mxu0
        %v3934 = vadd.f32 0.0, %v3933
        %3935 = vmatprep.mubr.f32.mxu0 0.0
        %3936 = vmatmul.mubr.f32.gmra.mrb[0].mxu0 %v3620
        %v3937 = vpop.f32.mrb[0].mxu0
        %v3938 = vadd.f32 0.0, %v3937
        %v3939 = vpop.f32.mrb[0].mxu0
        %v3940 = vadd.f32 0.0, %v3939
        %3941 = vmatprep.mubr.f32.mxu0 0.0
        %3942 = vmatmul.mubr.f32.gmra.mrb[0].mxu0 %v3623
        %v3943 = vpop.f32.mrb[0].mxu0
        %v3944 = vadd.f32 0.0, %v3943
        %v3945 = vpop.f32.mrb[0].mxu0
        %v3946 = vadd.f32 0.0, %v3945
        %3947 = vmatprep.mubr.f32.mxu0 0.0
        %3948 = vmatmul.mubr.f32.gmra.mrb[0].mxu0 %v3626
        %v3949 = vpop.f32.mrb[0].mxu0
        %v3950 = vadd.f32 0.0, %v3949
        %v3951 = vpop.f32.mrb[0].mxu0
        %v3952 = vadd.f32 0.0, %v3951
        %3953 = vmatprep.mubr.f32.mxu0 0.0
        %3954 = vmatmul.mubr.f32.gmra.mrb[0].mxu0 %v3629
        %v3955 = vpop.f32.mrb[0].mxu0
        %v3956 = vadd.f32 0.0, %v3955
        %v3957 = vpop.f32.mrb[0].mxu0
        %v3958 = vadd.f32 0.0, %v3957
        %3959 = vmatprep.mubr.f32.mxu0 0.0
        %3960 = vmatmul.mubr.f32.gmra.mrb[0].mxu0 %v3632
        %v3961 = vpop.f32.mrb[0].mxu0
        %v3962 = vadd.f32 0.0, %v3961
        %v3963 = vpop.f32.mrb[0].mxu0
        %v3964 = vadd.f32 0.0, %v3963
        %3965 = vmatprep.mubr.f32.mxu0 0.0
        %3966 = vmatmul.mubr.f32.gmra.mrb[0].mxu0 %v3635
        %v3967 = vpop.f32.mrb[0].mxu0
        %v3968 = vadd.f32 0.0, %v3967
        %v3969 = vpop.f32.mrb[0].mxu0
        %v3970 = vadd.f32 0.0, %v3969
        %3971 = vmatprep.mubr.f32.mxu0 0.0
        %3972 = vmatmul.mubr.f32.gmra.mrb[0].mxu0 %v3638
        %v3973 = vpop.f32.mrb[0].mxu0
        %v3974 = vadd.f32 0.0, %v3973
        %v3975 = vpop.f32.mrb[0].mxu0
        %v3976 = vadd.f32 0.0, %v3975
        %3977 = vmatprep.mubr.f32.mxu0 0.0
        %3978 = vmatmul.mubr.f32.gmra.mrb[0].mxu0 %v3641
        %v3979 = vpop.f32.mrb[0].mxu0
        %v3980 = vadd.f32 0.0, %v3979
        %v3981 = vpop.f32.mrb[0].mxu0
        %v3982 = vadd.f32 0.0, %v3981
        %3983 = vmatprep.mubr.f32.mxu0 0.0
        %3984 = vmatmul.mubr.f32.gmra.mrb[0].mxu0 %v3644
        %v3985 = vpop.f32.mrb[0].mxu0
        %v3986 = vadd.f32 0.0, %v3985
        %v3987 = vpop.f32.mrb[0].mxu0
        %v3988 = vadd.f32 0.0, %v3987
        %3989 = vmatprep.mubr.f32.mxu0 0.0
        %3990 = vmatmul.mubr.f32.gmra.mrb[0].mxu0 %v3647
        %v3991 = vpop.f32.mrb[0].mxu0
        %v3992 = vadd.f32 0.0, %v3991
        %v3993 = vpop.f32.mrb[0].mxu0
        %v3994 = vadd.f32 0.0, %v3993
        %3995 = vmatprep.mubr.f32.mxu0 0.0
        %3996 = vmatmul.mubr.f32.gmra.mrb[0].mxu0 %v3650
        %v3997 = vpop.f32.mrb[0].mxu0
        %v3998 = vadd.f32 0.0, %v3997
        %v3999 = vpop.f32.mrb[0].mxu0
        %v4000 = vadd.f32 0.0, %v3999
        %4001 = vmatprep.mubr.f32.mxu0 0.0
        %4002 = vmatmul.mubr.f32.gmra.mrb[0].mxu0 %v3653
        %v4003 = vpop.f32.mrb[0].mxu0
        %v4004 = vadd.f32 0.0, %v4003
        %v4005 = vpop.f32.mrb[0].mxu0
        %v4006 = vadd.f32 0.0, %v4005
        %4007 = vdwg.mxu0
        %v4008 = vmax.f32 %v3818, %v3820
        %4009 = vmax.xlane.f32.xlu0 %v4008
        %v4010 = vpop.xlane.xlu0 %4009
        %v4011 = vmax.f32 %v3824, %v3826
        %4012 = vmax.xlane.f32.xlu0 %v4011
        %v4013 = vpop.xlane.xlu0 %4012
        %v4014 = vmax.f32 %v3830, %v3832
        %4015 = vmax.xlane.f32.xlu0 %v4014
        %v4016 = vpop.xlane.xlu0 %4015
        %v4017 = vmax.f32 %v3836, %v3838
        %4018 = vmax.xlane.f32.xlu0 %v4017
        %v4019 = vpop.xlane.xlu0 %4018
        %v4020 = vmax.f32 %v3842, %v3844
        %4021 = vmax.xlane.f32.xlu0 %v4020
        %v4022 = vpop.xlane.xlu0 %4021
        %v4023 = vmax.f32 %v3848, %v3850
        %4024 = vmax.xlane.f32.xlu0 %v4023
        %v4025 = vpop.xlane.xlu0 %4024
        %v4026 = vmax.f32 %v3854, %v3856
        %4027 = vmax.xlane.f32.xlu0 %v4026
        %v4028 = vpop.xlane.xlu0 %4027
        %v4029 = vmax.f32 %v3860, %v3862
        %4030 = vmax.xlane.f32.xlu0 %v4029
        %v4031 = vpop.xlane.xlu0 %4030
        %v4032 = vmax.f32 %v3866, %v3868
        %4033 = vmax.xlane.f32.xlu0 %v4032
        %v4034 = vpop.xlane.xlu0 %4033
        %v4035 = vmax.f32 %v3872, %v3874
        %4036 = vmax.xlane.f32.xlu0 %v4035
        %v4037 = vpop.xlane.xlu0 %4036
        %v4038 = vmax.f32 %v3878, %v3880
        %4039 = vmax.xlane.f32.xlu0 %v4038
        %v4040 = vpop.xlane.xlu0 %4039
        %v4041 = vmax.f32 %v3884, %v3886
        %4042 = vmax.xlane.f32.xlu0 %v4041
        %v4043 = vpop.xlane.xlu0 %4042
        %v4044 = vmax.f32 %v3890, %v3892
        %4045 = vmax.xlane.f32.xlu0 %v4044
        %v4046 = vpop.xlane.xlu0 %4045
        %v4047 = vmax.f32 %v3896, %v3898
        %4048 = vmax.xlane.f32.xlu0 %v4047
        %v4049 = vpop.xlane.xlu0 %4048
        %v4050 = vmax.f32 %v3902, %v3904
        %4051 = vmax.xlane.f32.xlu0 %v4050
        %v4052 = vpop.xlane.xlu0 %4051
        %v4053 = vmax.f32 %v3908, %v3910
        %4054 = vmax.xlane.f32.xlu0 %v4053
        %v4055 = vpop.xlane.xlu0 %4054
        %v4056 = vmax.f32 %v3914, %v3916
        %4057 = vmax.xlane.f32.xlu0 %v4056
        %v4058 = vpop.xlane.xlu0 %4057
        %v4059 = vmax.f32 %v3920, %v3922
        %4060 = vmax.xlane.f32.xlu0 %v4059
        %v4061 = vpop.xlane.xlu0 %4060
        %v4062 = vmax.f32 %v3926, %v3928
        %4063 = vmax.xlane.f32.xlu0 %v4062
        %v4064 = vpop.xlane.xlu0 %4063
        %v4065 = vmax.f32 %v3932, %v3934
        %4066 = vmax.xlane.f32.xlu0 %v4065
        %v4067 = vpop.xlane.xlu0 %4066
        %v4068 = vmax.f32 %v3938, %v3940
        %4069 = vmax.xlane.f32.xlu0 %v4068
        %v4070 = vpop.xlane.xlu0 %4069
        %v4071 = vmax.f32 %v3944, %v3946
        %4072 = vmax.xlane.f32.xlu0 %v4071
        %v4073 = vpop.xlane.xlu0 %4072
        %v4074 = vmax.f32 %v3950, %v3952
        %4075 = vmax.xlane.f32.xlu0 %v4074
        %v4076 = vpop.xlane.xlu0 %4075
        %v4077 = vmax.f32 %v3956, %v3958
        %4078 = vmax.xlane.f32.xlu0 %v4077
        %v4079 = vpop.xlane.xlu0 %4078
        %v4080 = vmax.f32 %v3962, %v3964
        %4081 = vmax.xlane.f32.xlu0 %v4080
        %v4082 = vpop.xlane.xlu0 %4081
        %v4083 = vmax.f32 %v3968, %v3970
        %4084 = vmax.xlane.f32.xlu0 %v4083
        %v4085 = vpop.xlane.xlu0 %4084
        %v4086 = vmax.f32 %v3974, %v3976
        %4087 = vmax.xlane.f32.xlu0 %v4086
        %v4088 = vpop.xlane.xlu0 %4087
        %v4089 = vmax.f32 %v3980, %v3982
        %4090 = vmax.xlane.f32.xlu0 %v4089
        %v4091 = vpop.xlane.xlu0 %4090
        %v4092 = vmax.f32 %v3986, %v3988
        %4093 = vmax.xlane.f32.xlu0 %v4092
        %v4094 = vpop.xlane.xlu0 %4093
        %v4095 = vmax.f32 %v3992, %v3994
        %4096 = vmax.xlane.f32.xlu0 %v4095
        %v4097 = vpop.xlane.xlu0 %4096
        %v4098 = vmax.f32 %v3998, %v4000
        %4099 = vmax.xlane.f32.xlu0 %v4098
        %v4100 = vpop.xlane.xlu0 %4099
        %v4101 = vmax.f32 %v4004, %v4006
        %4102 = vmax.xlane.f32.xlu0 %v4101
        %v4103 = vpop.xlane.xlu0 %4102
        %v4104 = vsub.f32 %v3818, %v4010
        %v4105 = vsub.f32 %v3820, %v4010
        %v4106 = vsub.f32 %v3824, %v4013
        %v4107 = vsub.f32 %v3826, %v4013
        %v4108 = vsub.f32 %v3830, %v4016
        %v4109 = vsub.f32 %v3832, %v4016
        %v4110 = vsub.f32 %v3836, %v4019
        %v4111 = vsub.f32 %v3838, %v4019
        %v4112 = vsub.f32 %v3842, %v4022
        %v4113 = vsub.f32 %v3844, %v4022
        %v4114 = vsub.f32 %v3848, %v4025
        %v4115 = vsub.f32 %v3850, %v4025
        %v4116 = vsub.f32 %v3854, %v4028
        %v4117 = vsub.f32 %v3856, %v4028
        %v4118 = vsub.f32 %v3860, %v4031
        %v4119 = vsub.f32 %v3862, %v4031
        %v4120 = vsub.f32 %v3866, %v4034
        %v4121 = vsub.f32 %v3868, %v4034
        %v4122 = vsub.f32 %v3872, %v4037
        %v4123 = vsub.f32 %v3874, %v4037
        %v4124 = vsub.f32 %v3878, %v4040
        %v4125 = vsub.f32 %v3880, %v4040
        %v4126 = vsub.f32 %v3884, %v4043
        %v4127 = vsub.f32 %v3886, %v4043
        %v4128 = vsub.f32 %v3890, %v4046
        %v4129 = vsub.f32 %v3892, %v4046
        %v4130 = vsub.f32 %v3896, %v4049
        %v4131 = vsub.f32 %v3898, %v4049
        %v4132 = vsub.f32 %v3902, %v4052
        %v4133 = vsub.f32 %v3904, %v4052
        %v4134 = vsub.f32 %v3908, %v4055
        %v4135 = vsub.f32 %v3910, %v4055
        %v4136 = vsub.f32 %v3914, %v4058
        %v4137 = vsub.f32 %v3916, %v4058
        %v4138 = vsub.f32 %v3920, %v4061
        %v4139 = vsub.f32 %v3922, %v4061
        %v4140 = vsub.f32 %v3926, %v4064
        %v4141 = vsub.f32 %v3928, %v4064
        %v4142 = vsub.f32 %v3932, %v4067
        %v4143 = vsub.f32 %v3934, %v4067
        %v4144 = vsub.f32 %v3938, %v4070
        %v4145 = vsub.f32 %v3940, %v4070
        %v4146 = vsub.f32 %v3944, %v4073
        %v4147 = vsub.f32 %v3946, %v4073
        %v4148 = vsub.f32 %v3950, %v4076
        %v4149 = vsub.f32 %v3952, %v4076
        %v4150 = vsub.f32 %v3956, %v4079
        %v4151 = vsub.f32 %v3958, %v4079
        %v4152 = vsub.f32 %v3962, %v4082
        %v4153 = vsub.f32 %v3964, %v4082
        %v4154 = vsub.f32 %v3968, %v4085
        %v4155 = vsub.f32 %v3970, %v4085
        %v4156 = vsub.f32 %v3974, %v4088
        %v4157 = vsub.f32 %v3976, %v4088
        %v4158 = vsub.f32 %v3980, %v4091
        %v4159 = vsub.f32 %v3982, %v4091
        %v4160 = vsub.f32 %v3986, %v4094
        %v4161 = vsub.f32 %v3988, %v4094
        %v4162 = vsub.f32 %v3992, %v4097
        %v4163 = vsub.f32 %v3994, %v4097
        %v4164 = vsub.f32 %v3998, %v4100
        %v4165 = vsub.f32 %v4000, %v4100
        %v4166 = vsub.f32 %v4004, %v4103
        %v4167 = vsub.f32 %v4006, %v4103
        %v4168 = vmul.f32 %v4104, 1.442695
        %v4169 = vpow.pop %v4168
        %v4170 = vmul.f32 %v4105, 1.442695
        %v4171 = vpow.pop %v4170
        %v4172 = vmul.f32 %v4106, 1.442695
        %v4173 = vpow.pop %v4172
        %v4174 = vmul.f32 %v4107, 1.442695
        %v4175 = vpow.pop %v4174
        %v4176 = vmul.f32 %v4108, 1.442695
        %v4177 = vpow.pop %v4176
        %v4178 = vmul.f32 %v4109, 1.442695
        %v4179 = vpow.pop %v4178
        %v4180 = vmul.f32 %v4110, 1.442695
        %v4181 = vpow.pop %v4180
        %v4182 = vmul.f32 %v4111, 1.442695
        %v4183 = vpow.pop %v4182
        %v4184 = vmul.f32 %v4112, 1.442695
        %v4185 = vpow.pop %v4184
        %v4186 = vmul.f32 %v4113, 1.442695
        %v4187 = vpow.pop %v4186
        %v4188 = vmul.f32 %v4114, 1.442695
        %v4189 = vpow.pop %v4188
        %v4190 = vmul.f32 %v4115, 1.442695
        %v4191 = vpow.pop %v4190
        %v4192 = vmul.f32 %v4116, 1.442695
        %v4193 = vpow.pop %v4192
        %v4194 = vmul.f32 %v4117, 1.442695
        %v4195 = vpow.pop %v4194
        %v4196 = vmul.f32 %v4118, 1.442695
        %v4197 = vpow.pop %v4196
        %v4198 = vmul.f32 %v4119, 1.442695
        %v4199 = vpow.pop %v4198
        %v4200 = vmul.f32 %v4120, 1.442695
        %v4201 = vpow.pop %v4200
        %v4202 = vmul.f32 %v4121, 1.442695
        %v4203 = vpow.pop %v4202
        %v4204 = vmul.f32 %v4122, 1.442695
        %v4205 = vpow.pop %v4204
        %v4206 = vmul.f32 %v4123, 1.442695
        %v4207 = vpow.pop %v4206
        %v4208 = vmul.f32 %v4124, 1.442695
        %v4209 = vpow.pop %v4208
        %v4210 = vmul.f32 %v4125, 1.442695
        %v4211 = vpow.pop %v4210
        %v4212 = vmul.f32 %v4126, 1.442695
        %v4213 = vpow.pop %v4212
        %v4214 = vmul.f32 %v4127, 1.442695
        %v4215 = vpow.pop %v4214
        %v4216 = vmul.f32 %v4128, 1.442695
        %v4217 = vpow.pop %v4216
        %v4218 = vmul.f32 %v4129, 1.442695
        %v4219 = vpow.pop %v4218
        %v4220 = vmul.f32 %v4130, 1.442695
        %v4221 = vpow.pop %v4220
        %v4222 = vmul.f32 %v4131, 1.442695
        %v4223 = vpow.pop %v4222
        %v4224 = vmul.f32 %v4132, 1.442695
        %v4225 = vpow.pop %v4224
        %v4226 = vmul.f32 %v4133, 1.442695
        %v4227 = vpow.pop %v4226
        %v4228 = vmul.f32 %v4134, 1.442695
        %v4229 = vpow.pop %v4228
        %v4230 = vmul.f32 %v4135, 1.442695
        %v4231 = vpow.pop %v4230
        %v4232 = vmul.f32 %v4136, 1.442695
        %v4233 = vpow.pop %v4232
        %v4234 = vmul.f32 %v4137, 1.442695
        %v4235 = vpow.pop %v4234
        %v4236 = vmul.f32 %v4138, 1.442695
        %v4237 = vpow.pop %v4236
        %v4238 = vmul.f32 %v4139, 1.442695
        %v4239 = vpow.pop %v4238
        %v4240 = vmul.f32 %v4140, 1.442695
        %v4241 = vpow.pop %v4240
        %v4242 = vmul.f32 %v4141, 1.442695
        %v4243 = vpow.pop %v4242
        %v4244 = vmul.f32 %v4142, 1.442695
        %v4245 = vpow.pop %v4244
        %v4246 = vmul.f32 %v4143, 1.442695
        %v4247 = vpow.pop %v4246
        %v4248 = vmul.f32 %v4144, 1.442695
        %v4249 = vpow.pop %v4248
        %v4250 = vmul.f32 %v4145, 1.442695
        %v4251 = vpow.pop %v4250
        %v4252 = vmul.f32 %v4146, 1.442695
        %v4253 = vpow.pop %v4252
        %v4254 = vmul.f32 %v4147, 1.442695
        %v4255 = vpow.pop %v4254
        %v4256 = vmul.f32 %v4148, 1.442695
        %v4257 = vpow.pop %v4256
        %v4258 = vmul.f32 %v4149, 1.442695
        %v4259 = vpow.pop %v4258
        %v4260 = vmul.f32 %v4150, 1.442695
        %v4261 = vpow.pop %v4260
        %v4262 = vmul.f32 %v4151, 1.442695
        %v4263 = vpow.pop %v4262
        %v4264 = vmul.f32 %v4152, 1.442695
        %v4265 = vpow.pop %v4264
        %v4266 = vmul.f32 %v4153, 1.442695
        %v4267 = vpow.pop %v4266
        %v4268 = vmul.f32 %v4154, 1.442695
        %v4269 = vpow.pop %v4268
        %v4270 = vmul.f32 %v4155, 1.442695
        %v4271 = vpow.pop %v4270
        %v4272 = vmul.f32 %v4156, 1.442695
        %v4273 = vpow.pop %v4272
        %v4274 = vmul.f32 %v4157, 1.442695
        %v4275 = vpow.pop %v4274
        %v4276 = vmul.f32 %v4158, 1.442695
        %v4277 = vpow.pop %v4276
        %v4278 = vmul.f32 %v4159, 1.442695
        %v4279 = vpow.pop %v4278
        %v4280 = vmul.f32 %v4160, 1.442695
        %v4281 = vpow.pop %v4280
        %v4282 = vmul.f32 %v4161, 1.442695
        %v4283 = vpow.pop %v4282
        %v4284 = vmul.f32 %v4162, 1.442695
        %v4285 = vpow.pop %v4284
        %v4286 = vmul.f32 %v4163, 1.442695
        %v4287 = vpow.pop %v4286
        %v4288 = vmul.f32 %v4164, 1.442695
        %v4289 = vpow.pop %v4288
        %v4290 = vmul.f32 %v4165, 1.442695
        %v4291 = vpow.pop %v4290
        %v4292 = vmul.f32 %v4166, 1.442695
        %v4293 = vpow.pop %v4292
        %v4294 = vmul.f32 %v4167, 1.442695
        %v4295 = vpow.pop %v4294
        %v4296 = vadd.f32 %v4169, %v4171
        %4297 = vadd.xlane.f32.xlu0 %v4296
        %v4298 = vpop.xlane.xlu0 %4297
        %v4299 = vadd.f32 %v4173, %v4175
        %4300 = vadd.xlane.f32.xlu0 %v4299
        %v4301 = vpop.xlane.xlu0 %4300
        %v4302 = vadd.f32 %v4177, %v4179
        %4303 = vadd.xlane.f32.xlu0 %v4302
        %v4304 = vpop.xlane.xlu0 %4303
        %v4305 = vadd.f32 %v4181, %v4183
        %4306 = vadd.xlane.f32.xlu0 %v4305
        %v4307 = vpop.xlane.xlu0 %4306
        %v4308 = vadd.f32 %v4185, %v4187
        %4309 = vadd.xlane.f32.xlu0 %v4308
        %v4310 = vpop.xlane.xlu0 %4309
        %v4311 = vadd.f32 %v4189, %v4191
        %4312 = vadd.xlane.f32.xlu0 %v4311
        %v4313 = vpop.xlane.xlu0 %4312
        %v4314 = vadd.f32 %v4193, %v4195
        %4315 = vadd.xlane.f32.xlu0 %v4314
        %v4316 = vpop.xlane.xlu0 %4315
        %v4317 = vadd.f32 %v4197, %v4199
        %4318 = vadd.xlane.f32.xlu0 %v4317
        %v4319 = vpop.xlane.xlu0 %4318
        %v4320 = vadd.f32 %v4201, %v4203
        %4321 = vadd.xlane.f32.xlu0 %v4320
        %v4322 = vpop.xlane.xlu0 %4321
        %v4323 = vadd.f32 %v4205, %v4207
        %4324 = vadd.xlane.f32.xlu0 %v4323
        %v4325 = vpop.xlane.xlu0 %4324
        %v4326 = vadd.f32 %v4209, %v4211
        %4327 = vadd.xlane.f32.xlu0 %v4326
        %v4328 = vpop.xlane.xlu0 %4327
        %v4329 = vadd.f32 %v4213, %v4215
        %4330 = vadd.xlane.f32.xlu0 %v4329
        %v4331 = vpop.xlane.xlu0 %4330
        %v4332 = vadd.f32 %v4217, %v4219
        %4333 = vadd.xlane.f32.xlu0 %v4332
        %v4334 = vpop.xlane.xlu0 %4333
        %v4335 = vadd.f32 %v4221, %v4223
        %4336 = vadd.xlane.f32.xlu0 %v4335
        %v4337 = vpop.xlane.xlu0 %4336
        %v4338 = vadd.f32 %v4225, %v4227
        %4339 = vadd.xlane.f32.xlu0 %v4338
        %v4340 = vpop.xlane.xlu0 %4339
        %v4341 = vadd.f32 %v4229, %v4231
        %4342 = vadd.xlane.f32.xlu0 %v4341
        %v4343 = vpop.xlane.xlu0 %4342
        %v4344 = vadd.f32 %v4233, %v4235
        %4345 = vadd.xlane.f32.xlu0 %v4344
        %v4346 = vpop.xlane.xlu0 %4345
        %v4347 = vadd.f32 %v4237, %v4239
        %4348 = vadd.xlane.f32.xlu0 %v4347
        %v4349 = vpop.xlane.xlu0 %4348
        %v4350 = vadd.f32 %v4241, %v4243
        %4351 = vadd.xlane.f32.xlu0 %v4350
        %v4352 = vpop.xlane.xlu0 %4351
        %v4353 = vadd.f32 %v4245, %v4247
        %4354 = vadd.xlane.f32.xlu0 %v4353
        %v4355 = vpop.xlane.xlu0 %4354
        %v4356 = vadd.f32 %v4249, %v4251
        %4357 = vadd.xlane.f32.xlu0 %v4356
        %v4358 = vpop.xlane.xlu0 %4357
        %v4359 = vadd.f32 %v4253, %v4255
        %4360 = vadd.xlane.f32.xlu0 %v4359
        %v4361 = vpop.xlane.xlu0 %4360
        %v4362 = vadd.f32 %v4257, %v4259
        %4363 = vadd.xlane.f32.xlu0 %v4362
        %v4364 = vpop.xlane.xlu0 %4363
        %v4365 = vadd.f32 %v4261, %v4263
        %4366 = vadd.xlane.f32.xlu0 %v4365
        %v4367 = vpop.xlane.xlu0 %4366
        %v4368 = vadd.f32 %v4265, %v4267
        %4369 = vadd.xlane.f32.xlu0 %v4368
        %v4370 = vpop.xlane.xlu0 %4369
        %v4371 = vadd.f32 %v4269, %v4271
        %4372 = vadd.xlane.f32.xlu0 %v4371
        %v4373 = vpop.xlane.xlu0 %4372
        %v4374 = vadd.f32 %v4273, %v4275
        %4375 = vadd.xlane.f32.xlu0 %v4374
        %v4376 = vpop.xlane.xlu0 %4375
        %v4377 = vadd.f32 %v4277, %v4279
        %4378 = vadd.xlane.f32.xlu0 %v4377
        %v4379 = vpop.xlane.xlu0 %4378
        %v4380 = vadd.f32 %v4281, %v4283
        %4381 = vadd.xlane.f32.xlu0 %v4380
        %v4382 = vpop.xlane.xlu0 %4381
        %v4383 = vadd.f32 %v4285, %v4287
        %4384 = vadd.xlane.f32.xlu0 %v4383
        %v4385 = vpop.xlane.xlu0 %4384
        %v4386 = vadd.f32 %v4289, %v4291
        %4387 = vadd.xlane.f32.xlu0 %v4386
        %v4388 = vpop.xlane.xlu0 %4387
        %v4389 = vadd.f32 %v4293, %v4295
        %4390 = vadd.xlane.f32.xlu0 %v4389
        %v4391 = vpop.xlane.xlu0 %4390
        %v4392 = vrcp.pop %v4298
        %v4393 = vrcp.pop %v4301
        %v4394 = vrcp.pop %v4304
        %v4395 = vrcp.pop %v4307
        %v4396 = vrcp.pop %v4310
        %v4397 = vrcp.pop %v4313
        %v4398 = vrcp.pop %v4316
        %v4399 = vrcp.pop %v4319
        %v4400 = vrcp.pop %v4322
        %v4401 = vrcp.pop %v4325
        %v4402 = vrcp.pop %v4328
        %v4403 = vrcp.pop %v4331
        %v4404 = vrcp.pop %v4334
        %v4405 = vrcp.pop %v4337
        %v4406 = vrcp.pop %v4340
        %v4407 = vrcp.pop %v4343
        %v4408 = vrcp.pop %v4346
        %v4409 = vrcp.pop %v4349
        %v4410 = vrcp.pop %v4352
        %v4411 = vrcp.pop %v4355
        %v4412 = vrcp.pop %v4358
        %v4413 = vrcp.pop %v4361
        %v4414 = vrcp.pop %v4364
        %v4415 = vrcp.pop %v4367
        %v4416 = vrcp.pop %v4370
        %v4417 = vrcp.pop %v4373
        %v4418 = vrcp.pop %v4376
        %v4419 = vrcp.pop %v4379
        %v4420 = vrcp.pop %v4382
        %v4421 = vrcp.pop %v4385
        %v4422 = vrcp.pop %v4388
        %v4423 = vrcp.pop %v4391
        %v4424 = vmul.f32 %v4169, %v4392
        %v4425 = vmul.f32 %v4171, %v4392
        %v4426 = vmul.f32 %v4173, %v4393
        %v4427 = vmul.f32 %v4175, %v4393
        %v4428 = vmul.f32 %v4177, %v4394
        %v4429 = vmul.f32 %v4179, %v4394
        %v4430 = vmul.f32 %v4181, %v4395
        %v4431 = vmul.f32 %v4183, %v4395
        %v4432 = vmul.f32 %v4185, %v4396
        %v4433 = vmul.f32 %v4187, %v4396
        %v4434 = vmul.f32 %v4189, %v4397
        %v4435 = vmul.f32 %v4191, %v4397
        %v4436 = vmul.f32 %v4193, %v4398
        %v4437 = vmul.f32 %v4195, %v4398
        %v4438 = vmul.f32 %v4197, %v4399
        %v4439 = vmul.f32 %v4199, %v4399
        %v4440 = vmul.f32 %v4201, %v4400
        %v4441 = vmul.f32 %v4203, %v4400
        %v4442 = vmul.f32 %v4205, %v4401
        %v4443 = vmul.f32 %v4207, %v4401
        %v4444 = vmul.f32 %v4209, %v4402
        %v4445 = vmul.f32 %v4211, %v4402
        %v4446 = vmul.f32 %v4213, %v4403
        %v4447 = vmul.f32 %v4215, %v4403
        %v4448 = vmul.f32 %v4217, %v4404
        %v4449 = vmul.f32 %v4219, %v4404
        %v4450 = vmul.f32 %v4221, %v4405
        %v4451 = vmul.f32 %v4223, %v4405
        %v4452 = vmul.f32 %v4225, %v4406
        %v4453 = vmul.f32 %v4227, %v4406
        %v4454 = vmul.f32 %v4229, %v4407
        %v4455 = vmul.f32 %v4231, %v4407
        %v4456 = vmul.f32 %v4233, %v4408
        %v4457 = vmul.f32 %v4235, %v4408
        %v4458 = vmul.f32 %v4237, %v4409
        %v4459 = vmul.f32 %v4239, %v4409
        %v4460 = vmul.f32 %v4241, %v4410
        %v4461 = vmul.f32 %v4243, %v4410
        %v4462 = vmul.f32 %v4245, %v4411
        %v4463 = vmul.f32 %v4247, %v4411
        %v4464 = vmul.f32 %v4249, %v4412
        %v4465 = vmul.f32 %v4251, %v4412
        %v4466 = vmul.f32 %v4253, %v4413
        %v4467 = vmul.f32 %v4255, %v4413
        %v4468 = vmul.f32 %v4257, %v4414
        %v4469 = vmul.f32 %v4259, %v4414
        %v4470 = vmul.f32 %v4261, %v4415
        %v4471 = vmul.f32 %v4263, %v4415
        %v4472 = vmul.f32 %v4265, %v4416
        %v4473 = vmul.f32 %v4267, %v4416
        %v4474 = vmul.f32 %v4269, %v4417
        %v4475 = vmul.f32 %v4271, %v4417
        %v4476 = vmul.f32 %v4273, %v4418
        %v4477 = vmul.f32 %v4275, %v4418
        %v4478 = vmul.f32 %v4277, %v4419
        %v4479 = vmul.f32 %v4279, %v4419
        %v4480 = vmul.f32 %v4281, %v4420
        %v4481 = vmul.f32 %v4283, %v4420
        %v4482 = vmul.f32 %v4285, %v4421
        %v4483 = vmul.f32 %v4287, %v4421
        %v4484 = vmul.f32 %v4289, %v4422
        %v4485 = vmul.f32 %v4291, %v4422
        %v4486 = vmul.f32 %v4293, %v4423
        %v4487 = vmul.f32 %v4295, %v4423
        %4488 = vmatprep.subr.mxu0 0.0
        %4489 = vmatpush1.msra.mxu0 %v3401
        %4490 = vmatprep.subr.mxu0 0.0
        %4491 = vmatpush1.msra.mxu0 %v3406
        %4492 = vmatprep.subr.mxu0 0.0
        %4493 = vmatpush1.msra.mxu0 %v3411
        %4494 = vmatprep.subr.mxu0 0.0
        %4495 = vmatpush1.msra.mxu0 %v3416
        %4496 = vmatprep.subr.mxu0 0.0
        %4497 = vmatpush1.msra.mxu0 %v3421
        %4498 = vmatprep.subr.mxu0 0.0
        %4499 = vmatpush1.msra.mxu0 %v3426
        %4500 = vmatprep.subr.mxu0 0.0
        %4501 = vmatpush1.msra.mxu0 %v3431
        %4502 = vmatprep.subr.mxu0 0.0
        %4503 = vmatpush1.msra.mxu0 %v3436
        %4504 = vmatprep.subr.mxu0 0.0
        %4505 = vmatpush1.msra.mxu0 %v3441
        %4506 = vmatprep.subr.mxu0 0.0
        %4507 = vmatpush1.msra.mxu0 %v3446
        %4508 = vmatprep.subr.mxu0 0.0
        %4509 = vmatpush1.msra.mxu0 %v3451
        %4510 = vmatprep.subr.mxu0 0.0
        %4511 = vmatpush1.msra.mxu0 %v3456
        %4512 = vmatprep.subr.mxu0 0.0
        %4513 = vmatpush1.msra.mxu0 %v3461
        %4514 = vmatprep.subr.mxu0 0.0
        %4515 = vmatpush1.msra.mxu0 %v3466
        %4516 = vmatprep.subr.mxu0 0.0
        %4517 = vmatpush1.msra.mxu0 %v3471
        %4518 = vmatprep.subr.mxu0 0.0
        %4519 = vmatpush1.msra.mxu0 %v3476
        %4520 = vmatprep.subr.mxu0 0.0
        %4521 = vmatpush1.msra.mxu0 %v3481
        %4522 = vmatprep.subr.mxu0 0.0
        %4523 = vmatpush1.msra.mxu0 %v3486
        %4524 = vmatprep.subr.mxu0 0.0
        %4525 = vmatpush1.msra.mxu0 %v3491
        %4526 = vmatprep.subr.mxu0 0.0
        %4527 = vmatpush1.msra.mxu0 %v3496
        %4528 = vmatprep.subr.mxu0 0.0
        %4529 = vmatpush1.msra.mxu0 %v3501
        %4530 = vmatprep.subr.mxu0 0.0
        %4531 = vmatpush1.msra.mxu0 %v3506
        %4532 = vmatprep.subr.mxu0 0.0
        %4533 = vmatpush1.msra.mxu0 %v3511
        %4534 = vmatprep.subr.mxu0 0.0
        %4535 = vmatpush1.msra.mxu0 %v3516
        %4536 = vmatprep.subr.mxu0 0.0
        %4537 = vmatpush1.msra.mxu0 %v3521
        %4538 = vmatprep.subr.mxu0 0.0
        %4539 = vmatpush1.msra.mxu0 %v3526
        %4540 = vmatprep.subr.mxu0 0.0
        %4541 = vmatpush1.msra.mxu0 %v3531
        %4542 = vmatprep.subr.mxu0 0.0
        %4543 = vmatpush1.msra.mxu0 %v3536
        %4544 = vmatprep.subr.mxu0 0.0
        %4545 = vmatpush1.msra.mxu0 %v3541
        %4546 = vmatprep.subr.mxu0 0.0
        %4547 = vmatpush1.msra.mxu0 %v3546
        %4548 = vmatprep.subr.mxu0 0.0
        %4549 = vmatpush1.msra.mxu0 %v3551
        %4550 = vmatprep.subr.mxu0 0.0
        %4551 = vmatpush1.msra.mxu0 %v3556
        %4552 = vmatprep.mubr.f32.mxu0 %v4425
        %4553 = vmatmul.mubr.f32.gmra.mrb[0].mxu0 %v4424
        %v4554 = vpop.f32.mrb[0].mxu0
        %v4555 = vadd.f32 0.0, %v4554
        %v4556 = vpop.f32.mrb[0].mxu0
        %4557 = vmatprep.mubr.f32.mxu0 %v4427
        %4558 = vmatmul.mubr.f32.gmra.mrb[0].mxu0 %v4426
        %v4559 = vpop.f32.mrb[0].mxu0
        %v4560 = vadd.f32 0.0, %v4559
        %v4561 = vpop.f32.mrb[0].mxu0
        %4562 = vmatprep.mubr.f32.mxu0 %v4429
        %4563 = vmatmul.mubr.f32.gmra.mrb[0].mxu0 %v4428
        %v4564 = vpop.f32.mrb[0].mxu0
        %v4565 = vadd.f32 0.0, %v4564
        %v4566 = vpop.f32.mrb[0].mxu0
        %4567 = vmatprep.mubr.f32.mxu0 %v4431
        %4568 = vmatmul.mubr.f32.gmra.mrb[0].mxu0 %v4430
        %v4569 = vpop.f32.mrb[0].mxu0
        %v4570 = vadd.f32 0.0, %v4569
        %v4571 = vpop.f32.mrb[0].mxu0
        %4572 = vmatprep.mubr.f32.mxu0 %v4433
        %4573 = vmatmul.mubr.f32.gmra.mrb[0].mxu0 %v4432
        %v4574 = vpop.f32.mrb[0].mxu0
        %v4575 = vadd.f32 0.0, %v4574
        %v4576 = vpop.f32.mrb[0].mxu0
        %4577 = vmatprep.mubr.f32.mxu0 %v4435
        %4578 = vmatmul.mubr.f32.gmra.mrb[0].mxu0 %v4434
        %v4579 = vpop.f32.mrb[0].mxu0
        %v4580 = vadd.f32 0.0, %v4579
        %v4581 = vpop.f32.mrb[0].mxu0
        %4582 = vmatprep.mubr.f32.mxu0 %v4437
        %4583 = vmatmul.mubr.f32.gmra.mrb[0].mxu0 %v4436
        %v4584 = vpop.f32.mrb[0].mxu0
        %v4585 = vadd.f32 0.0, %v4584
        %v4586 = vpop.f32.mrb[0].mxu0
        %4587 = vmatprep.mubr.f32.mxu0 %v4439
        %4588 = vmatmul.mubr.f32.gmra.mrb[0].mxu0 %v4438
        %v4589 = vpop.f32.mrb[0].mxu0
        %v4590 = vadd.f32 0.0, %v4589
        %v4591 = vpop.f32.mrb[0].mxu0
        %4592 = vmatprep.mubr.f32.mxu0 %v4441
        %4593 = vmatmul.mubr.f32.gmra.mrb[0].mxu0 %v4440
        %v4594 = vpop.f32.mrb[0].mxu0
        %v4595 = vadd.f32 0.0, %v4594
        %v4596 = vpop.f32.mrb[0].mxu0
        %4597 = vmatprep.mubr.f32.mxu0 %v4443
        %4598 = vmatmul.mubr.f32.gmra.mrb[0].mxu0 %v4442
        %v4599 = vpop.f32.mrb[0].mxu0
        %v4600 = vadd.f32 0.0, %v4599
        %v4601 = vpop.f32.mrb[0].mxu0
        %4602 = vmatprep.mubr.f32.mxu0 %v4445
        %4603 = vmatmul.mubr.f32.gmra.mrb[0].mxu0 %v4444
        %v4604 = vpop.f32.mrb[0].mxu0
        %v4605 = vadd.f32 0.0, %v4604
        %v4606 = vpop.f32.mrb[0].mxu0
        %4607 = vmatprep.mubr.f32.mxu0 %v4447
        %4608 = vmatmul.mubr.f32.gmra.mrb[0].mxu0 %v4446
        %v4609 = vpop.f32.mrb[0].mxu0
        %v4610 = vadd.f32 0.0, %v4609
        %v4611 = vpop.f32.mrb[0].mxu0
        %4612 = vmatprep.mubr.f32.mxu0 %v4449
        %4613 = vmatmul.mubr.f32.gmra.mrb[0].mxu0 %v4448
        %v4614 = vpop.f32.mrb[0].mxu0
        %v4615 = vadd.f32 0.0, %v4614
        %v4616 = vpop.f32.mrb[0].mxu0
        %4617 = vmatprep.mubr.f32.mxu0 %v4451
        %4618 = vmatmul.mubr.f32.gmra.mrb[0].mxu0 %v4450
        %v4619 = vpop.f32.mrb[0].mxu0
        %v4620 = vadd.f32 0.0, %v4619
        %v4621 = vpop.f32.mrb[0].mxu0
        %4622 = vmatprep.mubr.f32.mxu0 %v4453
        %4623 = vmatmul.mubr.f32.gmra.mrb[0].mxu0 %v4452
        %v4624 = vpop.f32.mrb[0].mxu0
        %v4625 = vadd.f32 0.0, %v4624
        %v4626 = vpop.f32.mrb[0].mxu0
        %4627 = vmatprep.mubr.f32.mxu0 %v4455
        %4628 = vmatmul.mubr.f32.gmra.mrb[0].mxu0 %v4454
        %v4629 = vpop.f32.mrb[0].mxu0
        %v4630 = vadd.f32 0.0, %v4629
        %v4631 = vpop.f32.mrb[0].mxu0
        %4632 = vmatprep.mubr.f32.mxu0 %v4457
        %4633 = vmatmul.mubr.f32.gmra.mrb[0].mxu0 %v4456
        %v4634 = vpop.f32.mrb[0].mxu0
        %v4635 = vadd.f32 0.0, %v4634
        %v4636 = vpop.f32.mrb[0].mxu0
        %4637 = vmatprep.mubr.f32.mxu0 %v4459
        %4638 = vmatmul.mubr.f32.gmra.mrb[0].mxu0 %v4458
        %v4639 = vpop.f32.mrb[0].mxu0
        %v4640 = vadd.f32 0.0, %v4639
        %v4641 = vpop.f32.mrb[0].mxu0
        %4642 = vmatprep.mubr.f32.mxu0 %v4461
        %4643 = vmatmul.mubr.f32.gmra.mrb[0].mxu0 %v4460
        %v4644 = vpop.f32.mrb[0].mxu0
        %v4645 = vadd.f32 0.0, %v4644
        %v4646 = vpop.f32.mrb[0].mxu0
        %4647 = vmatprep.mubr.f32.mxu0 %v4463
        %4648 = vmatmul.mubr.f32.gmra.mrb[0].mxu0 %v4462
        %v4649 = vpop.f32.mrb[0].mxu0
        %v4650 = vadd.f32 0.0, %v4649
        %v4651 = vpop.f32.mrb[0].mxu0
        %4652 = vmatprep.mubr.f32.mxu0 %v4465
        %4653 = vmatmul.mubr.f32.gmra.mrb[0].mxu0 %v4464
        %v4654 = vpop.f32.mrb[0].mxu0
        %v4655 = vadd.f32 0.0, %v4654
        %v4656 = vpop.f32.mrb[0].mxu0
        %4657 = vmatprep.mubr.f32.mxu0 %v4467
        %4658 = vmatmul.mubr.f32.gmra.mrb[0].mxu0 %v4466
        %v4659 = vpop.f32.mrb[0].mxu0
        %v4660 = vadd.f32 0.0, %v4659
        %v4661 = vpop.f32.mrb[0].mxu0
        %4662 = vmatprep.mubr.f32.mxu0 %v4469
        %4663 = vmatmul.mubr.f32.gmra.mrb[0].mxu0 %v4468
        %v4664 = vpop.f32.mrb[0].mxu0
        %v4665 = vadd.f32 0.0, %v4664
        %v4666 = vpop.f32.mrb[0].mxu0
        %4667 = vmatprep.mubr.f32.mxu0 %v4471
        %4668 = vmatmul.mubr.f32.gmra.mrb[0].mxu0 %v4470
        %v4669 = vpop.f32.mrb[0].mxu0
        %v4670 = vadd.f32 0.0, %v4669
        %v4671 = vpop.f32.mrb[0].mxu0
        %4672 = vmatprep.mubr.f32.mxu0 %v4473
        %4673 = vmatmul.mubr.f32.gmra.mrb[0].mxu0 %v4472
        %v4674 = vpop.f32.mrb[0].mxu0
        %v4675 = vadd.f32 0.0, %v4674
        %v4676 = vpop.f32.mrb[0].mxu0
        %4677 = vmatprep.mubr.f32.mxu0 %v4475
        %4678 = vmatmul.mubr.f32.gmra.mrb[0].mxu0 %v4474
        %v4679 = vpop.f32.mrb[0].mxu0
        %v4680 = vadd.f32 0.0, %v4679
        %v4681 = vpop.f32.mrb[0].mxu0
        %4682 = vmatprep.mubr.f32.mxu0 %v4477
        %4683 = vmatmul.mubr.f32.gmra.mrb[0].mxu0 %v4476
        %v4684 = vpop.f32.mrb[0].mxu0
        %v4685 = vadd.f32 0.0, %v4684
        %v4686 = vpop.f32.mrb[0].mxu0
        %4687 = vmatprep.mubr.f32.mxu0 %v4479
        %4688 = vmatmul.mubr.f32.gmra.mrb[0].mxu0 %v4478
        %v4689 = vpop.f32.mrb[0].mxu0
        %v4690 = vadd.f32 0.0, %v4689
        %v4691 = vpop.f32.mrb[0].mxu0
        %4692 = vmatprep.mubr.f32.mxu0 %v4481
        %4693 = vmatmul.mubr.f32.gmra.mrb[0].mxu0 %v4480
        %v4694 = vpop.f32.mrb[0].mxu0
        %v4695 = vadd.f32 0.0, %v4694
        %v4696 = vpop.f32.mrb[0].mxu0
        %4697 = vmatprep.mubr.f32.mxu0 %v4483
        %4698 = vmatmul.mubr.f32.gmra.mrb[0].mxu0 %v4482
        %v4699 = vpop.f32.mrb[0].mxu0
        %v4700 = vadd.f32 0.0, %v4699
        %v4701 = vpop.f32.mrb[0].mxu0
        %4702 = vmatprep.mubr.f32.mxu0 %v4485
        %4703 = vmatmul.mubr.f32.gmra.mrb[0].mxu0 %v4484
        %v4704 = vpop.f32.mrb[0].mxu0
        %v4705 = vadd.f32 0.0, %v4704
        %v4706 = vpop.f32.mrb[0].mxu0
        %4707 = vmatprep.mubr.f32.mxu0 %v4487
        %4708 = vmatmul.mubr.f32.gmra.mrb[0].mxu0 %v4486
        %v4709 = vpop.f32.mrb[0].mxu0
        %v4710 = vadd.f32 0.0, %v4709
        %v4711 = vpop.f32.mrb[0].mxu0
        %4712 = vdwg.mxu0
        %s4713 = scalar_lea.vmem %s4, 16
        %v4714 = vld [vmem:[%s4713] sm:$0xff]
        %v4715 = vld [vmem:[%s4713 + $0x8] sm:$0xff]
        %v4717 = vsel %vm1688, %v4555, 0
        %v4720 = vsel %vm1688, %v4560, 0
        %v4723 = vsel %vm1688, %v4565, 0
        %v4726 = vsel %vm1688, %v4570, 0
        %v4729 = vsel %vm1688, %v4575, 0
        %v4732 = vsel %vm1688, %v4580, 0
        %v4735 = vsel %vm1688, %v4585, 0
        %v4738 = vsel %vm1688, %v4590, 0
        %v4741 = vsel %vm1688, %v4595, 0
        %v4744 = vsel %vm1688, %v4600, 0
        %v4747 = vsel %vm1688, %v4605, 0
        %v4750 = vsel %vm1688, %v4610, 0
        %v4753 = vsel %vm1688, %v4615, 0
        %v4756 = vsel %vm1688, %v4620, 0
        %v4759 = vsel %vm1688, %v4625, 0
        %v4762 = vsel %vm1688, %v4630, 0
        %v4765 = vsel %vm1688, %v4635, 0
        %v4768 = vsel %vm1688, %v4640, 0
        %v4771 = vsel %vm1688, %v4645, 0
        %v4774 = vsel %vm1688, %v4650, 0
        %v4777 = vsel %vm1688, %v4655, 0
        %v4780 = vsel %vm1688, %v4660, 0
        %v4783 = vsel %vm1688, %v4665, 0
        %v4786 = vsel %vm1688, %v4670, 0
        %v4789 = vsel %vm1688, %v4675, 0
        %v4792 = vsel %vm1688, %v4680, 0
        %v4795 = vsel %vm1688, %v4685, 0
        %v4798 = vsel %vm1688, %v4690, 0
        %v4801 = vsel %vm1688, %v4695, 0
        %v4804 = vsel %vm1688, %v4700, 0
        %v4807 = vsel %vm1688, %v4705, 0
        %v4810 = vsel %vm1688, %v4710, 0
        %4812 = vmatprep.subr.mxu0 0.0
        %4813 = vmatpush1.msra.mxu0 %v4714
        %4814 = vmatprep.subr.mxu0 0.0
        %4815 = vmatpush1.msra.mxu0 %v4715
        %4816 = vmatprep.subr.mxu0 0.0
        %4817 = vmatpush1.msra.mxu0 0.0
        %4818 = vmatprep.subr.mxu0 0.0
        %4819 = vmatpush1.msra.mxu0 0.0
        %4820 = vmatprep.subr.mxu0 0.0
        %4821 = vmatpush1.msra.mxu0 0.0
        %4822 = vmatprep.subr.mxu0 0.0
        %4823 = vmatpush1.msra.mxu0 0.0
        %4824 = vmatprep.subr.mxu0 0.0
        %4825 = vmatpush1.msra.mxu0 0.0
        %4826 = vmatprep.subr.mxu0 0.0
        %4827 = vmatpush1.msra.mxu0 0.0
        %4828 = vmatprep.subr.mxu0 0.0
        %4829 = vmatpush1.msra.mxu0 0.0
        %4830 = vmatprep.subr.mxu0 0.0
        %4831 = vmatpush1.msra.mxu0 0.0
        %4832 = vmatprep.subr.mxu0 0.0
        %4833 = vmatpush1.msra.mxu0 0.0
        %4834 = vmatprep.subr.mxu0 0.0
        %4835 = vmatpush1.msra.mxu0 0.0
        %4836 = vmatprep.subr.mxu0 0.0
        %4837 = vmatpush1.msra.mxu0 0.0
        %4838 = vmatprep.subr.mxu0 0.0
        %4839 = vmatpush1.msra.mxu0 0.0
        %4840 = vmatprep.subr.mxu0 0.0
        %4841 = vmatpush1.msra.mxu0 0.0
        %4842 = vmatprep.subr.mxu0 0.0
        %4843 = vmatpush1.msra.mxu0 0.0
        %4844 = vmatprep.subr.mxu0 0.0
        %4845 = vmatpush1.msra.mxu0 0.0
        %4846 = vmatprep.subr.mxu0 0.0
        %4847 = vmatpush1.msra.mxu0 0.0
        %4848 = vmatprep.subr.mxu0 0.0
        %4849 = vmatpush1.msra.mxu0 0.0
        %4850 = vmatprep.subr.mxu0 0.0
        %4851 = vmatpush1.msra.mxu0 0.0
        %4852 = vmatprep.subr.mxu0 0.0
        %4853 = vmatpush1.msra.mxu0 0.0
        %4854 = vmatprep.subr.mxu0 0.0
        %4855 = vmatpush1.msra.mxu0 0.0
        %4856 = vmatprep.subr.mxu0 0.0
        %4857 = vmatpush1.msra.mxu0 0.0
        %4858 = vmatprep.subr.mxu0 0.0
        %4859 = vmatpush1.msra.mxu0 0.0
        %4860 = vmatprep.subr.mxu0 0.0
        %4861 = vmatpush1.msra.mxu0 0.0
        %4862 = vmatprep.subr.mxu0 0.0
        %4863 = vmatpush1.msra.mxu0 0.0
        %4864 = vmatprep.subr.mxu0 0.0
        %4865 = vmatpush1.msra.mxu0 0.0
        %4866 = vmatprep.subr.mxu0 0.0
        %4867 = vmatpush1.msra.mxu0 0.0
        %4868 = vmatprep.subr.mxu0 0.0
        %4869 = vmatpush1.msra.mxu0 0.0
        %4870 = vmatprep.subr.mxu0 0.0
        %4871 = vmatpush1.msra.mxu0 0.0
        %4872 = vmatprep.subr.mxu0 0.0
        %4873 = vmatpush1.msra.mxu0 0.0
        %4874 = vmatprep.subr.mxu0 0.0
        %4875 = vmatpush1.msra.mxu0 0.0
        %4876 = vmatprep.mubr.f32.mxu0 0.0
        %4877 = vmatmul.mubr.f32.gmra.mrb[0].mxu0 %v4717
        %v4878 = vpop.f32.mrb[0].mxu0
        %v4879 = vadd.f32 0.0, %v4878
        %v4880 = vpop.f32.mrb[0].mxu0
        %4881 = vmatprep.mubr.f32.mxu0 0.0
        %4882 = vmatmul.mubr.f32.gmra.mrb[0].mxu0 %v4720
        %v4883 = vpop.f32.mrb[0].mxu0
        %v4884 = vadd.f32 0.0, %v4883
        %v4885 = vpop.f32.mrb[0].mxu0
        %4886 = vmatprep.mubr.f32.mxu0 0.0
        %4887 = vmatmul.mubr.f32.gmra.mrb[0].mxu0 %v4723
        %v4888 = vpop.f32.mrb[0].mxu0
        %v4889 = vadd.f32 0.0, %v4888
        %v4890 = vpop.f32.mrb[0].mxu0
        %4891 = vmatprep.mubr.f32.mxu0 0.0
        %4892 = vmatmul.mubr.f32.gmra.mrb[0].mxu0 %v4726
        %v4893 = vpop.f32.mrb[0].mxu0
        %v4894 = vadd.f32 0.0, %v4893
        %v4895 = vpop.f32.mrb[0].mxu0
        %4896 = vmatprep.mubr.f32.mxu0 0.0
        %4897 = vmatmul.mubr.f32.gmra.mrb[0].mxu0 %v4729
        %v4898 = vpop.f32.mrb[0].mxu0
        %v4899 = vadd.f32 0.0, %v4898
        %v4900 = vpop.f32.mrb[0].mxu0
        %4901 = vmatprep.mubr.f32.mxu0 0.0
        %4902 = vmatmul.mubr.f32.gmra.mrb[0].mxu0 %v4732
        %v4903 = vpop.f32.mrb[0].mxu0
        %v4904 = vadd.f32 0.0, %v4903
        %v4905 = vpop.f32.mrb[0].mxu0
        %4906 = vmatprep.mubr.f32.mxu0 0.0
        %4907 = vmatmul.mubr.f32.gmra.mrb[0].mxu0 %v4735
        %v4908 = vpop.f32.mrb[0].mxu0
        %v4909 = vadd.f32 0.0, %v4908
        %v4910 = vpop.f32.mrb[0].mxu0
        %4911 = vmatprep.mubr.f32.mxu0 0.0
        %4912 = vmatmul.mubr.f32.gmra.mrb[0].mxu0 %v4738
        %v4913 = vpop.f32.mrb[0].mxu0
        %v4914 = vadd.f32 0.0, %v4913
        %v4915 = vpop.f32.mrb[0].mxu0
        %4916 = vmatprep.mubr.f32.mxu0 0.0
        %4917 = vmatmul.mubr.f32.gmra.mrb[0].mxu0 %v4741
        %v4918 = vpop.f32.mrb[0].mxu0
        %v4919 = vadd.f32 0.0, %v4918
        %v4920 = vpop.f32.mrb[0].mxu0
        %4921 = vmatprep.mubr.f32.mxu0 0.0
        %4922 = vmatmul.mubr.f32.gmra.mrb[0].mxu0 %v4744
        %v4923 = vpop.f32.mrb[0].mxu0
        %v4924 = vadd.f32 0.0, %v4923
        %v4925 = vpop.f32.mrb[0].mxu0
        %4926 = vmatprep.mubr.f32.mxu0 0.0
        %4927 = vmatmul.mubr.f32.gmra.mrb[0].mxu0 %v4747
        %v4928 = vpop.f32.mrb[0].mxu0
        %v4929 = vadd.f32 0.0, %v4928
        %v4930 = vpop.f32.mrb[0].mxu0
        %4931 = vmatprep.mubr.f32.mxu0 0.0
        %4932 = vmatmul.mubr.f32.gmra.mrb[0].mxu0 %v4750
        %v4933 = vpop.f32.mrb[0].mxu0
        %v4934 = vadd.f32 0.0, %v4933
        %v4935 = vpop.f32.mrb[0].mxu0
        %4936 = vmatprep.mubr.f32.mxu0 0.0
        %4937 = vmatmul.mubr.f32.gmra.mrb[0].mxu0 %v4753
        %v4938 = vpop.f32.mrb[0].mxu0
        %v4939 = vadd.f32 0.0, %v4938
        %v4940 = vpop.f32.mrb[0].mxu0
        %4941 = vmatprep.mubr.f32.mxu0 0.0
        %4942 = vmatmul.mubr.f32.gmra.mrb[0].mxu0 %v4756
        %v4943 = vpop.f32.mrb[0].mxu0
        %v4944 = vadd.f32 0.0, %v4943
        %v4945 = vpop.f32.mrb[0].mxu0
        %4946 = vmatprep.mubr.f32.mxu0 0.0
        %4947 = vmatmul.mubr.f32.gmra.mrb[0].mxu0 %v4759
        %v4948 = vpop.f32.mrb[0].mxu0
        %v4949 = vadd.f32 0.0, %v4948
        %v4950 = vpop.f32.mrb[0].mxu0
        %4951 = vmatprep.mubr.f32.mxu0 0.0
        %4952 = vmatmul.mubr.f32.gmra.mrb[0].mxu0 %v4762
        %v4953 = vpop.f32.mrb[0].mxu0
        %v4954 = vadd.f32 0.0, %v4953
        %v4955 = vpop.f32.mrb[0].mxu0
        %4956 = vmatprep.mubr.f32.mxu0 0.0
        %4957 = vmatmul.mubr.f32.gmra.mrb[0].mxu0 %v4765
        %v4958 = vpop.f32.mrb[0].mxu0
        %v4959 = vadd.f32 0.0, %v4958
        %v4960 = vpop.f32.mrb[0].mxu0
        %4961 = vmatprep.mubr.f32.mxu0 0.0
        %4962 = vmatmul.mubr.f32.gmra.mrb[0].mxu0 %v4768
        %v4963 = vpop.f32.mrb[0].mxu0
        %v4964 = vadd.f32 0.0, %v4963
        %v4965 = vpop.f32.mrb[0].mxu0
        %4966 = vmatprep.mubr.f32.mxu0 0.0
        %4967 = vmatmul.mubr.f32.gmra.mrb[0].mxu0 %v4771
        %v4968 = vpop.f32.mrb[0].mxu0
        %v4969 = vadd.f32 0.0, %v4968
        %v4970 = vpop.f32.mrb[0].mxu0
        %4971 = vmatprep.mubr.f32.mxu0 0.0
        %4972 = vmatmul.mubr.f32.gmra.mrb[0].mxu0 %v4774
        %v4973 = vpop.f32.mrb[0].mxu0
        %v4974 = vadd.f32 0.0, %v4973
        %v4975 = vpop.f32.mrb[0].mxu0
        %4976 = vmatprep.mubr.f32.mxu0 0.0
        %4977 = vmatmul.mubr.f32.gmra.mrb[0].mxu0 %v4777
        %v4978 = vpop.f32.mrb[0].mxu0
        %v4979 = vadd.f32 0.0, %v4978
        %v4980 = vpop.f32.mrb[0].mxu0
        %4981 = vmatprep.mubr.f32.mxu0 0.0
        %4982 = vmatmul.mubr.f32.gmra.mrb[0].mxu0 %v4780
        %v4983 = vpop.f32.mrb[0].mxu0
        %v4984 = vadd.f32 0.0, %v4983
        %v4985 = vpop.f32.mrb[0].mxu0
        %4986 = vmatprep.mubr.f32.mxu0 0.0
        %4987 = vmatmul.mubr.f32.gmra.mrb[0].mxu0 %v4783
        %v4988 = vpop.f32.mrb[0].mxu0
        %v4989 = vadd.f32 0.0, %v4988
        %v4990 = vpop.f32.mrb[0].mxu0
        %4991 = vmatprep.mubr.f32.mxu0 0.0
        %4992 = vmatmul.mubr.f32.gmra.mrb[0].mxu0 %v4786
        %v4993 = vpop.f32.mrb[0].mxu0
        %v4994 = vadd.f32 0.0, %v4993
        %v4995 = vpop.f32.mrb[0].mxu0
        %4996 = vmatprep.mubr.f32.mxu0 0.0
        %4997 = vmatmul.mubr.f32.gmra.mrb[0].mxu0 %v4789
        %v4998 = vpop.f32.mrb[0].mxu0
        %v4999 = vadd.f32 0.0, %v4998
        %v5000 = vpop.f32.mrb[0].mxu0
        %5001 = vmatprep.mubr.f32.mxu0 0.0
        %5002 = vmatmul.mubr.f32.gmra.mrb[0].mxu0 %v4792
        %v5003 = vpop.f32.mrb[0].mxu0
        %v5004 = vadd.f32 0.0, %v5003
        %v5005 = vpop.f32.mrb[0].mxu0
        %5006 = vmatprep.mubr.f32.mxu0 0.0
        %5007 = vmatmul.mubr.f32.gmra.mrb[0].mxu0 %v4795
        %v5008 = vpop.f32.mrb[0].mxu0
        %v5009 = vadd.f32 0.0, %v5008
        %v5010 = vpop.f32.mrb[0].mxu0
        %5011 = vmatprep.mubr.f32.mxu0 0.0
        %5012 = vmatmul.mubr.f32.gmra.mrb[0].mxu0 %v4798
        %v5013 = vpop.f32.mrb[0].mxu0
        %v5014 = vadd.f32 0.0, %v5013
        %v5015 = vpop.f32.mrb[0].mxu0
        %5016 = vmatprep.mubr.f32.mxu0 0.0
        %5017 = vmatmul.mubr.f32.gmra.mrb[0].mxu0 %v4801
        %v5018 = vpop.f32.mrb[0].mxu0
        %v5019 = vadd.f32 0.0, %v5018
        %v5020 = vpop.f32.mrb[0].mxu0
        %5021 = vmatprep.mubr.f32.mxu0 0.0
        %5022 = vmatmul.mubr.f32.gmra.mrb[0].mxu0 %v4804
        %v5023 = vpop.f32.mrb[0].mxu0
        %v5024 = vadd.f32 0.0, %v5023
        %v5025 = vpop.f32.mrb[0].mxu0
        %5026 = vmatprep.mubr.f32.mxu0 0.0
        %5027 = vmatmul.mubr.f32.gmra.mrb[0].mxu0 %v4807
        %v5028 = vpop.f32.mrb[0].mxu0
        %v5029 = vadd.f32 0.0, %v5028
        %v5030 = vpop.f32.mrb[0].mxu0
        %5031 = vmatprep.mubr.f32.mxu0 0.0
        %5032 = vmatmul.mubr.f32.gmra.mrb[0].mxu0 %v4810
        %v5033 = vpop.f32.mrb[0].mxu0
        %v5034 = vadd.f32 0.0, %v5033
        %v5035 = vpop.f32.mrb[0].mxu0
        %5036 = vdwg.mxu0
        %v5038 = vsel %vm1688, %v2685, 0
        %v5041 = vsel %vm1688, %v2690, 0
        %v5044 = vsel %vm1688, %v2695, 0
        %v5047 = vsel %vm1688, %v2700, 0
        %v5050 = vsel %vm1688, %v2705, 0
        %v5053 = vsel %vm1688, %v2710, 0
        %v5056 = vsel %vm1688, %v2715, 0
        %v5059 = vsel %vm1688, %v2720, 0
        %v5062 = vsel %vm1688, %v2725, 0
        %v5065 = vsel %vm1688, %v2730, 0
        %v5068 = vsel %vm1688, %v2735, 0
        %v5071 = vsel %vm1688, %v2740, 0
        %v5074 = vsel %vm1688, %v2745, 0
        %v5077 = vsel %vm1688, %v2750, 0
        %v5080 = vsel %vm1688, %v2755, 0
        %v5083 = vsel %vm1688, %v2760, 0
        %v5086 = vsel %vm1688, %v2765, 0
        %v5089 = vsel %vm1688, %v2770, 0
        %v5092 = vsel %vm1688, %v2775, 0
        %v5095 = vsel %vm1688, %v2780, 0
        %v5098 = vsel %vm1688, %v2785, 0
        %v5101 = vsel %vm1688, %v2790, 0
        %v5104 = vsel %vm1688, %v2795, 0
        %v5107 = vsel %vm1688, %v2800, 0
        %v5110 = vsel %vm1688, %v2805, 0
        %v5113 = vsel %vm1688, %v2810, 0
        %v5116 = vsel %vm1688, %v2815, 0
        %v5119 = vsel %vm1688, %v2820, 0
        %v5122 = vsel %vm1688, %v2825, 0
        %v5125 = vsel %vm1688, %v2830, 0
        %v5128 = vsel %vm1688, %v2835, 0
        %v5131 = vsel %vm1688, %v2840, 0
        %5133 = vmatprep.subr.mxu0 0.0
        %5134 = vmatpush1.msra.mxu0 %v2843
        %5135 = vmatprep.subr.mxu0 0.0
        %5136 = vmatpush1.msra.mxu0 %v2844
        %5137 = vmatprep.subr.mxu0 0.0
        %5138 = vmatpush1.msra.mxu0 0.0
        %5139 = vmatprep.subr.mxu0 0.0
        %5140 = vmatpush1.msra.mxu0 0.0
        %5141 = vmatprep.subr.mxu0 0.0
        %5142 = vmatpush1.msra.mxu0 0.0
        %5143 = vmatprep.subr.mxu0 0.0
        %5144 = vmatpush1.msra.mxu0 0.0
        %5145 = vmatprep.subr.mxu0 0.0
        %5146 = vmatpush1.msra.mxu0 0.0
        %5147 = vmatprep.subr.mxu0 0.0
        %5148 = vmatpush1.msra.mxu0 0.0
        %5149 = vmatprep.subr.mxu0 0.0
        %5150 = vmatpush1.msra.mxu0 0.0
        %5151 = vmatprep.subr.mxu0 0.0
        %5152 = vmatpush1.msra.mxu0 0.0
        %5153 = vmatprep.subr.mxu0 0.0
        %5154 = vmatpush1.msra.mxu0 0.0
        %5155 = vmatprep.subr.mxu0 0.0
        %5156 = vmatpush1.msra.mxu0 0.0
        %5157 = vmatprep.subr.mxu0 0.0
        %5158 = vmatpush1.msra.mxu0 0.0
        %5159 = vmatprep.subr.mxu0 0.0
        %5160 = vmatpush1.msra.mxu0 0.0
        %5161 = vmatprep.subr.mxu0 0.0
        %5162 = vmatpush1.msra.mxu0 0.0
        %5163 = vmatprep.subr.mxu0 0.0
        %5164 = vmatpush1.msra.mxu0 0.0
        %5165 = vmatprep.subr.mxu0 0.0
        %5166 = vmatpush1.msra.mxu0 0.0
        %5167 = vmatprep.subr.mxu0 0.0
        %5168 = vmatpush1.msra.mxu0 0.0
        %5169 = vmatprep.subr.mxu0 0.0
        %5170 = vmatpush1.msra.mxu0 0.0
        %5171 = vmatprep.subr.mxu0 0.0
        %5172 = vmatpush1.msra.mxu0 0.0
        %5173 = vmatprep.subr.mxu0 0.0
        %5174 = vmatpush1.msra.mxu0 0.0
        %5175 = vmatprep.subr.mxu0 0.0
        %5176 = vmatpush1.msra.mxu0 0.0
        %5177 = vmatprep.subr.mxu0 0.0
        %5178 = vmatpush1.msra.mxu0 0.0
        %5179 = vmatprep.subr.mxu0 0.0
        %5180 = vmatpush1.msra.mxu0 0.0
        %5181 = vmatprep.subr.mxu0 0.0
        %5182 = vmatpush1.msra.mxu0 0.0
        %5183 = vmatprep.subr.mxu0 0.0
        %5184 = vmatpush1.msra.mxu0 0.0
        %5185 = vmatprep.subr.mxu0 0.0
        %5186 = vmatpush1.msra.mxu0 0.0
        %5187 = vmatprep.subr.mxu0 0.0
        %5188 = vmatpush1.msra.mxu0 0.0
        %5189 = vmatprep.subr.mxu0 0.0
        %5190 = vmatpush1.msra.mxu0 0.0
        %5191 = vmatprep.subr.mxu0 0.0
        %5192 = vmatpush1.msra.mxu0 0.0
        %5193 = vmatprep.subr.mxu0 0.0
        %5194 = vmatpush1.msra.mxu0 0.0
        %5195 = vmatprep.subr.mxu0 0.0
        %5196 = vmatpush1.msra.mxu0 0.0
        %5197 = vmatprep.mubr.f32.mxu0 0.0
        %5198 = vmatmul.mubr.f32.gmra.mrb[0].mxu0 %v5038
        %v5199 = vpop.f32.mrb[0].mxu0
        %v5200 = vadd.f32 %v4879, %v5199
        %v5201 = vpop.f32.mrb[0].mxu0
        %5202 = vmatprep.mubr.f32.mxu0 0.0
        %5203 = vmatmul.mubr.f32.gmra.mrb[0].mxu0 %v5041
        %v5204 = vpop.f32.mrb[0].mxu0
        %v5205 = vadd.f32 %v4884, %v5204
        %v5206 = vpop.f32.mrb[0].mxu0
        %5207 = vmatprep.mubr.f32.mxu0 0.0
        %5208 = vmatmul.mubr.f32.gmra.mrb[0].mxu0 %v5044
        %v5209 = vpop.f32.mrb[0].mxu0
        %v5210 = vadd.f32 %v4889, %v5209
        %v5211 = vpop.f32.mrb[0].mxu0
        %5212 = vmatprep.mubr.f32.mxu0 0.0
        %5213 = vmatmul.mubr.f32.gmra.mrb[0].mxu0 %v5047
        %v5214 = vpop.f32.mrb[0].mxu0
        %v5215 = vadd.f32 %v4894, %v5214
        %v5216 = vpop.f32.mrb[0].mxu0
        %5217 = vmatprep.mubr.f32.mxu0 0.0
        %5218 = vmatmul.mubr.f32.gmra.mrb[0].mxu0 %v5050
        %v5219 = vpop.f32.mrb[0].mxu0
        %v5220 = vadd.f32 %v4899, %v5219
        %v5221 = vpop.f32.mrb[0].mxu0
        %5222 = vmatprep.mubr.f32.mxu0 0.0
        %5223 = vmatmul.mubr.f32.gmra.mrb[0].mxu0 %v5053
        %v5224 = vpop.f32.mrb[0].mxu0
        %v5225 = vadd.f32 %v4904, %v5224
        %v5226 = vpop.f32.mrb[0].mxu0
        %5227 = vmatprep.mubr.f32.mxu0 0.0
        %5228 = vmatmul.mubr.f32.gmra.mrb[0].mxu0 %v5056
        %v5229 = vpop.f32.mrb[0].mxu0
        %v5230 = vadd.f32 %v4909, %v5229
        %v5231 = vpop.f32.mrb[0].mxu0
        %5232 = vmatprep.mubr.f32.mxu0 0.0
        %5233 = vmatmul.mubr.f32.gmra.mrb[0].mxu0 %v5059
        %v5234 = vpop.f32.mrb[0].mxu0
        %v5235 = vadd.f32 %v4914, %v5234
        %v5236 = vpop.f32.mrb[0].mxu0
        %5237 = vmatprep.mubr.f32.mxu0 0.0
        %5238 = vmatmul.mubr.f32.gmra.mrb[0].mxu0 %v5062
        %v5239 = vpop.f32.mrb[0].mxu0
        %v5240 = vadd.f32 %v4919, %v5239
        %v5241 = vpop.f32.mrb[0].mxu0
        %5242 = vmatprep.mubr.f32.mxu0 0.0
        %5243 = vmatmul.mubr.f32.gmra.mrb[0].mxu0 %v5065
        %v5244 = vpop.f32.mrb[0].mxu0
        %v5245 = vadd.f32 %v4924, %v5244
        %v5246 = vpop.f32.mrb[0].mxu0
        %5247 = vmatprep.mubr.f32.mxu0 0.0
        %5248 = vmatmul.mubr.f32.gmra.mrb[0].mxu0 %v5068
        %v5249 = vpop.f32.mrb[0].mxu0
        %v5250 = vadd.f32 %v4929, %v5249
        %v5251 = vpop.f32.mrb[0].mxu0
        %5252 = vmatprep.mubr.f32.mxu0 0.0
        %5253 = vmatmul.mubr.f32.gmra.mrb[0].mxu0 %v5071
        %v5254 = vpop.f32.mrb[0].mxu0
        %v5255 = vadd.f32 %v4934, %v5254
        %v5256 = vpop.f32.mrb[0].mxu0
        %5257 = vmatprep.mubr.f32.mxu0 0.0
        %5258 = vmatmul.mubr.f32.gmra.mrb[0].mxu0 %v5074
        %v5259 = vpop.f32.mrb[0].mxu0
        %v5260 = vadd.f32 %v4939, %v5259
        %v5261 = vpop.f32.mrb[0].mxu0
        %5262 = vmatprep.mubr.f32.mxu0 0.0
        %5263 = vmatmul.mubr.f32.gmra.mrb[0].mxu0 %v5077
        %v5264 = vpop.f32.mrb[0].mxu0
        %v5265 = vadd.f32 %v4944, %v5264
        %v5266 = vpop.f32.mrb[0].mxu0
        %5267 = vmatprep.mubr.f32.mxu0 0.0
        %5268 = vmatmul.mubr.f32.gmra.mrb[0].mxu0 %v5080
        %v5269 = vpop.f32.mrb[0].mxu0
        %v5270 = vadd.f32 %v4949, %v5269
        %v5271 = vpop.f32.mrb[0].mxu0
        %5272 = vmatprep.mubr.f32.mxu0 0.0
        %5273 = vmatmul.mubr.f32.gmra.mrb[0].mxu0 %v5083
        %v5274 = vpop.f32.mrb[0].mxu0
        %v5275 = vadd.f32 %v4954, %v5274
        %v5276 = vpop.f32.mrb[0].mxu0
        %5277 = vmatprep.mubr.f32.mxu0 0.0
        %5278 = vmatmul.mubr.f32.gmra.mrb[0].mxu0 %v5086
        %v5279 = vpop.f32.mrb[0].mxu0
        %v5280 = vadd.f32 %v4959, %v5279
        %v5281 = vpop.f32.mrb[0].mxu0
        %5282 = vmatprep.mubr.f32.mxu0 0.0
        %5283 = vmatmul.mubr.f32.gmra.mrb[0].mxu0 %v5089
        %v5284 = vpop.f32.mrb[0].mxu0
        %v5285 = vadd.f32 %v4964, %v5284
        %v5286 = vpop.f32.mrb[0].mxu0
        %5287 = vmatprep.mubr.f32.mxu0 0.0
        %5288 = vmatmul.mubr.f32.gmra.mrb[0].mxu0 %v5092
        %v5289 = vpop.f32.mrb[0].mxu0
        %v5290 = vadd.f32 %v4969, %v5289
        %v5291 = vpop.f32.mrb[0].mxu0
        %5292 = vmatprep.mubr.f32.mxu0 0.0
        %5293 = vmatmul.mubr.f32.gmra.mrb[0].mxu0 %v5095
        %v5294 = vpop.f32.mrb[0].mxu0
        %v5295 = vadd.f32 %v4974, %v5294
        %v5296 = vpop.f32.mrb[0].mxu0
        %5297 = vmatprep.mubr.f32.mxu0 0.0
        %5298 = vmatmul.mubr.f32.gmra.mrb[0].mxu0 %v5098
        %v5299 = vpop.f32.mrb[0].mxu0
        %v5300 = vadd.f32 %v4979, %v5299
        %v5301 = vpop.f32.mrb[0].mxu0
        %5302 = vmatprep.mubr.f32.mxu0 0.0
        %5303 = vmatmul.mubr.f32.gmra.mrb[0].mxu0 %v5101
        %v5304 = vpop.f32.mrb[0].mxu0
        %v5305 = vadd.f32 %v4984, %v5304
        %v5306 = vpop.f32.mrb[0].mxu0
        %5307 = vmatprep.mubr.f32.mxu0 0.0
        %5308 = vmatmul.mubr.f32.gmra.mrb[0].mxu0 %v5104
        %v5309 = vpop.f32.mrb[0].mxu0
        %v5310 = vadd.f32 %v4989, %v5309
        %v5311 = vpop.f32.mrb[0].mxu0
        %5312 = vmatprep.mubr.f32.mxu0 0.0
        %5313 = vmatmul.mubr.f32.gmra.mrb[0].mxu0 %v5107
        %v5314 = vpop.f32.mrb[0].mxu0
        %v5315 = vadd.f32 %v4994, %v5314
        %v5316 = vpop.f32.mrb[0].mxu0
        %5317 = vmatprep.mubr.f32.mxu0 0.0
        %5318 = vmatmul.mubr.f32.gmra.mrb[0].mxu0 %v5110
        %v5319 = vpop.f32.mrb[0].mxu0
        %v5320 = vadd.f32 %v4999, %v5319
        %v5321 = vpop.f32.mrb[0].mxu0
        %5322 = vmatprep.mubr.f32.mxu0 0.0
        %5323 = vmatmul.mubr.f32.gmra.mrb[0].mxu0 %v5113
        %v5324 = vpop.f32.mrb[0].mxu0
        %v5325 = vadd.f32 %v5004, %v5324
        %v5326 = vpop.f32.mrb[0].mxu0
        %5327 = vmatprep.mubr.f32.mxu0 0.0
        %5328 = vmatmul.mubr.f32.gmra.mrb[0].mxu0 %v5116
        %v5329 = vpop.f32.mrb[0].mxu0
        %v5330 = vadd.f32 %v5009, %v5329
        %v5331 = vpop.f32.mrb[0].mxu0
        %5332 = vmatprep.mubr.f32.mxu0 0.0
        %5333 = vmatmul.mubr.f32.gmra.mrb[0].mxu0 %v5119
        %v5334 = vpop.f32.mrb[0].mxu0
        %v5335 = vadd.f32 %v5014, %v5334
        %v5336 = vpop.f32.mrb[0].mxu0
        %5337 = vmatprep.mubr.f32.mxu0 0.0
        %5338 = vmatmul.mubr.f32.gmra.mrb[0].mxu0 %v5122
        %v5339 = vpop.f32.mrb[0].mxu0
        %v5340 = vadd.f32 %v5019, %v5339
        %v5341 = vpop.f32.mrb[0].mxu0
        %5342 = vmatprep.mubr.f32.mxu0 0.0
        %5343 = vmatmul.mubr.f32.gmra.mrb[0].mxu0 %v5125
        %v5344 = vpop.f32.mrb[0].mxu0
        %v5345 = vadd.f32 %v5024, %v5344
        %v5346 = vpop.f32.mrb[0].mxu0
        %5347 = vmatprep.mubr.f32.mxu0 0.0
        %5348 = vmatmul.mubr.f32.gmra.mrb[0].mxu0 %v5128
        %v5349 = vpop.f32.mrb[0].mxu0
        %v5350 = vadd.f32 %v5029, %v5349
        %v5351 = vpop.f32.mrb[0].mxu0
        %5352 = vmatprep.mubr.f32.mxu0 0.0
        %5353 = vmatmul.mubr.f32.gmra.mrb[0].mxu0 %v5131
        %v5354 = vpop.f32.mrb[0].mxu0
        %v5355 = vadd.f32 %v5034, %v5354
        %v5356 = vpop.f32.mrb[0].mxu0
        %5357 = vdwg.mxu0
        %v5358 = vld [vmem:[%s5] sm:$0x1]
        %v5360 = vlaneseq
        %v5361 = vshrl.u32 %v5360, 7
        %v5362 = vsub.s32 0, %v5361
        %v5363 = vrot.slane %v5358, %v5362
        %v5365 = vadd.f32 %v5200, %v5363
        %v5366 = vadd.f32 %v5205, %v5363
        %v5367 = vadd.f32 %v5210, %v5363
        %v5368 = vadd.f32 %v5215, %v5363
        %v5369 = vadd.f32 %v5220, %v5363
        %v5370 = vadd.f32 %v5225, %v5363
        %v5371 = vadd.f32 %v5230, %v5363
        %v5372 = vadd.f32 %v5235, %v5363
        %v5373 = vadd.f32 %v5240, %v5363
        %v5374 = vadd.f32 %v5245, %v5363
        %v5375 = vadd.f32 %v5250, %v5363
        %v5376 = vadd.f32 %v5255, %v5363
        %v5377 = vadd.f32 %v5260, %v5363
        %v5378 = vadd.f32 %v5265, %v5363
        %v5379 = vadd.f32 %v5270, %v5363
        %v5380 = vadd.f32 %v5275, %v5363
        %v5381 = vadd.f32 %v5280, %v5363
        %v5382 = vadd.f32 %v5285, %v5363
        %v5383 = vadd.f32 %v5290, %v5363
        %v5384 = vadd.f32 %v5295, %v5363
        %v5385 = vadd.f32 %v5300, %v5363
        %v5386 = vadd.f32 %v5305, %v5363
        %v5387 = vadd.f32 %v5310, %v5363
        %v5388 = vadd.f32 %v5315, %v5363
        %v5389 = vadd.f32 %v5320, %v5363
        %v5390 = vadd.f32 %v5325, %v5363
        %v5391 = vadd.f32 %v5330, %v5363
        %v5392 = vadd.f32 %v5335, %v5363
        %v5393 = vadd.f32 %v5340, %v5363
        %v5394 = vadd.f32 %v5345, %v5363
        %v5395 = vadd.f32 %v5350, %v5363
        %v5396 = vadd.f32 %v5355, %v5363
        %5397 = vxpose.xlu0.b32.start [1/16] %v5365, 128
        %5398 = vxpose.xlu0.b32.cont [2/16] %v5366, 128
        %5399 = vxpose.xlu0.b32.cont [3/16] %v5367, 128
        %5400 = vxpose.xlu0.b32.cont [4/16] %v5368, 128
        %5401 = vxpose.xlu0.b32.cont [5/16] %v5369, 128
        %5402 = vxpose.xlu0.b32.cont [6/16] %v5370, 128
        %5403 = vxpose.xlu0.b32.cont [7/16] %v5371, 128
        %5404 = vxpose.xlu0.b32.cont [8/16] %v5372, 128
        %5405 = vxpose.xlu0.b32.cont [9/16] %v5373, 128
        %5406 = vxpose.xlu0.b32.cont [10/16] %v5374, 128
        %5407 = vxpose.xlu0.b32.cont [11/16] %v5375, 128
        %5408 = vxpose.xlu0.b32.cont [12/16] %v5376, 128
        %5409 = vxpose.xlu0.b32.cont [13/16] %v5377, 128
        %5410 = vxpose.xlu0.b32.cont [14/16] %v5378, 128
        %5411 = vxpose.xlu0.b32.cont [15/16] %v5379, 128
        %5412 = vxpose.xlu0.b32.end [16/16] %v5380, 128
        %v5413 = vpop.trf.xlu0
        %v5414 = vpop.trf.xlu0
        %v5415 = vpop.trf.xlu0
        %v5416 = vpop.trf.xlu0
        %v5417 = vpop.trf.xlu0
        %v5418 = vpop.trf.xlu0
        %v5419 = vpop.trf.xlu0
        %v5420 = vpop.trf.xlu0
        %v5421 = vpop.trf.xlu0
        %v5422 = vpop.trf.xlu0
        %v5423 = vpop.trf.xlu0
        %v5424 = vpop.trf.xlu0
        %v5425 = vpop.trf.xlu0
        %v5426 = vpop.trf.xlu0
        %v5427 = vpop.trf.xlu0
        %v5428 = vpop.trf.xlu0
        %5429 = vxpose.xlu0.b32.start [1/16] %v5381, 128
        %5430 = vxpose.xlu0.b32.cont [2/16] %v5382, 128
        %5431 = vxpose.xlu0.b32.cont [3/16] %v5383, 128
        %5432 = vxpose.xlu0.b32.cont [4/16] %v5384, 128
        %5433 = vxpose.xlu0.b32.cont [5/16] %v5385, 128
        %5434 = vxpose.xlu0.b32.cont [6/16] %v5386, 128
        %5435 = vxpose.xlu0.b32.cont [7/16] %v5387, 128
        %5436 = vxpose.xlu0.b32.cont [8/16] %v5388, 128
        %5437 = vxpose.xlu0.b32.cont [9/16] %v5389, 128
        %5438 = vxpose.xlu0.b32.cont [10/16] %v5390, 128
        %5439 = vxpose.xlu0.b32.cont [11/16] %v5391, 128
        %5440 = vxpose.xlu0.b32.cont [12/16] %v5392, 128
        %5441 = vxpose.xlu0.b32.cont [13/16] %v5393, 128
        %5442 = vxpose.xlu0.b32.cont [14/16] %v5394, 128
        %5443 = vxpose.xlu0.b32.cont [15/16] %v5395, 128
        %5444 = vxpose.xlu0.b32.end [16/16] %v5396, 128
        %v5445 = vpop.trf.xlu0
        %v5446 = vpop.trf.xlu0
        %v5447 = vpop.trf.xlu0
        %v5448 = vpop.trf.xlu0
        %v5449 = vpop.trf.xlu0
        %v5450 = vpop.trf.xlu0
        %v5451 = vpop.trf.xlu0
        %v5452 = vpop.trf.xlu0
        %v5453 = vpop.trf.xlu0
        %v5454 = vpop.trf.xlu0
        %v5455 = vpop.trf.xlu0
        %v5456 = vpop.trf.xlu0
        %v5457 = vpop.trf.xlu0
        %v5458 = vpop.trf.xlu0
        %v5459 = vpop.trf.xlu0
        %v5460 = vpop.trf.xlu0
        %v5461 = vadd.f32 %v5413, %v250
        %v5462 = vadd.f32 %v5445, %v251
        %v5463 = vadd.f32 %v5414, %v252
        %v5464 = vadd.f32 %v5446, %v253
        %v5465 = vadd.f32 %v5415, %v254
        %v5466 = vadd.f32 %v5447, %v255
        %v5467 = vadd.f32 %v5416, %v256
        %v5468 = vadd.f32 %v5448, %v257
        %5469 = vst [vmem:[%s244] sm:$0xff] %v5461
        %5470 = vst [vmem:[%s244 + $0x8] sm:$0xff] %v5462
        %5471 = vst [vmem:[%s244 + $0x10] sm:$0xff] %v5463
        %5472 = vst [vmem:[%s244 + $0x18] sm:$0xff] %v5464
        %5473 = vst [vmem:[%s244 + $0x20] sm:$0xff] %v5465
        %5474 = vst [vmem:[%s244 + $0x28] sm:$0xff] %v5466
        %5475 = vst [vmem:[%s244 + $0x30] sm:$0xff] %v5467
        %5476 = vst [vmem:[%s244 + $0x38] sm:$0xff] %v5468
        %s5477 = sand.u32 %s159, 1
        %s5478 = scalar_lea.sflag [#allocation3], %s5477
        %s5479 = sand.u32 %s159, 1
        %s5480 = smul.addr %s5479, 64
        %s5481 = scalar_lea.vmem [#allocation2], %s5480
        // Predicated region
        $region45: #{tpu_custom_call.1} parent=43 // pred_check
          %p5482 = pneg %p169
        $region46: #{tpu_custom_call.1} parent=43 // pred_check_branch
          %5484 = sbr.rel (%p5482) target = $region48
        $region47: #{tpu_custom_call.1} parent=43 // pred_region
          %s5486 = ssub.s32 1024, 1024
          %5487 = vsyncadd %s5478, %s5486
          %s5488 = smul.addr %s20, 8
          %s5489 = smul.addr %s5488, 128
          %s5490 = scalar_lea.hbm %s6, %s5489
          %s5491 = sshll.u32 %s5481, 4
          %s5492 = int_to_ptr.vmem [resolvable:$true] %s5491
          %5497 = dma.vmem_to_hbm [thread:$0]  %s5492, 1024, %s5490, %s5478, 256, 256, 16
        $region48: #{tpu_custom_call.1} parent=43 // pred_fallthru
          _
      $region44: #{tpu_custom_call.1} parent=5 // pred_fallthru
        _
      %p5498 = scmp.le.s32.totalorder 2, %s15
      // Predicated region
      $region49: #{tpu_custom_call.1} parent=5 // pred_check
        %p5499 = pneg %p5498
      $region50: #{tpu_custom_call.1} parent=5 // pred_check_branch
        %5501 = sbr.rel (%p5499) target = $region52
      $region51: #{tpu_custom_call.1} parent=5 // pred_region
        %s5502 = ssub.s32 %s15, 2
        // Predicated region
        $region53: #{tpu_custom_call.1} parent=51 // pred_check
          %p5503 = pneg %p175
        $region54: #{tpu_custom_call.1} parent=51 // pred_check_branch
          %5505 = sbr.rel (%p5503) target = $region56
        $region55: #{tpu_custom_call.1} parent=51 // pred_region
          %s5506 = sand.u32 %s160, 1
          %s5507 = scalar_lea.sflag [#allocation3], %s5506
          %s5508 = sand.u32 %s160, 1
          %s5509 = smul.addr %s5508, 64
          %s5510 = scalar_lea.vmem [#allocation2], %s5509
          %5511 = dma.done %s5507, 1024
        $region56: #{tpu_custom_call.1} parent=51 // pred_fallthru
          _
      $region52: #{tpu_custom_call.1} parent=5 // pred_fallthru
        _
    $region6: #{tpu_custom_call.1} parent=1 // loop_footer
      %s19 = sadd.s32 1, %s15
    $region7: #{tpu_custom_call.1} parent=1 // loop_footer_branch
      %14 = sbr.rel target = $region3
    $region8: #{tpu_custom_call.1} parent=1 // loop_exit
      _
    %5512 = vsyncpa [#allocation3], 1
    %s5513 = scalar_lea.sflag [#allocation3], 1
    %5514 = vsyncpa %s5513, 1

</llo_original>
